<compile_context>
chip_gen: v7x
topology: tpu7x:2x2x1
jax: 0.10.0
libtpu: 0.0.40
codegen_flags: <defaults>
</compile_context>

<pallas_src>
import jax
import jax.numpy as jnp
from jax.experimental import pallas as pl
from jax.experimental.pallas import tpu as pltpu

H = 64            # LSTM hidden size
HH = 2 * H        # 128 = bidirectional feature width
G = 4 * H         # 256 = per-direction gate width ([i | f | o | g] after permute)
NL_PAD = 128      # classifier outputs padded to a lane-dense 128 columns
W_COLS = 2 * G    # 512 = packed slab width

# Row offsets of each weight matrix inside the packed (896, 512) bf16 slab.
_R_ENC_X = 0      # (64, 512)   encoder  W_ih   [fwd | bwd]
_R_ENC_H = 64     # (128, 512)  encoder  W_hh   block-diag(fwd, bwd)
_R_DEC_X = 192    # (64, 512)   token    W_ih   [fwd | bwd]
_R_DEC_H = 256    # (128, 512)  token    W_hh   block-diag(fwd, bwd)
_R_COMB1 = 384    # (128, 64)   attn_combine rows for the rnn half of the input
_R_COMB2 = 512    # (128, 64)   attn_combine rows for the attn_applied half
_R_CLS1 = 640     # (128, 128)  classifier1 (cols zero-padded past num_labels)
_R_CLS2 = 768     # (128, 128)  classifier2
_W_ROWS = 896


# ---------------------------------------------------------------------------
# Fused kernel: encoder bi-LSTM -> classifier1 -> attention (once) -> decoder
#               token bi-LSTM loop -> classifier2
# ---------------------------------------------------------------------------
def _multi_fused_kernel(x_ref, w_ref, b_ref, enc_logits_ref, dec_logits_ref):
    B, T, E = x_ref.shape
    f32 = jnp.float32
    bf16 = jnp.bfloat16

    # ---- static views into the packed parameter slabs ----------------------
    w_enc_x = w_ref[_R_ENC_X:_R_ENC_X + E, :]
    w_enc_h = w_ref[_R_ENC_H:_R_ENC_H + HH, :]
    w_dec_x = w_ref[_R_DEC_X:_R_DEC_X + H, :]
    w_dec_h = w_ref[_R_DEC_H:_R_DEC_H + HH, :]
    w_comb1 = w_ref[_R_COMB1:_R_COMB1 + HH, 0:H]
    w_comb2 = w_ref[_R_COMB2:_R_COMB2 + HH, 0:H]
    w_cls1 = w_ref[_R_CLS1:_R_CLS1 + HH, 0:NL_PAD]
    w_cls2 = w_ref[_R_CLS2:_R_CLS2 + HH, 0:NL_PAD]

    enc_b = b_ref[0:1, :]                         # (1, 512)
    dec_b = b_ref[1:2, :]                         # (1, 512)
    comb_b = b_ref[2:3, 0:H]                      # (1, 64)
    w_attn = b_ref[3:4, 0:HH]                     # (1, 128) encoder attn weight
    cls1_b = b_ref[3:4, HH:HH + NL_PAD]           # (1, 128)
    cls2_b = b_ref[3:4, HH + NL_PAD:HH + 2 * NL_PAD]

    def mm(a, w):
        # MXU matmul: bf16 operands, f32 accumulation.
        return jnp.dot(a.astype(bf16), w, preferred_element_type=f32)

    def lstm_gates(g, c):
        # g: (B, 256) pre-activation with columns [i | f | o | g] (f32 math)
        sig = jax.nn.sigmoid(g[:, :3 * H])
        gg = jnp.tanh(g[:, 3 * H:])
        c_new = sig[:, H:2 * H] * c + sig[:, :H] * gg
        return sig[:, 2 * H:3 * H] * jnp.tanh(c_new), c_new

    # ---- encoder bi-LSTM ----------------------------------------------------
    # x -> gate projections for every timestep in ONE batched matmul; only the
    # (B,128)@(128,512) hidden-state matmul stays on the serial chain.
    gx_enc = (mm(x_ref[...].reshape(B * T, E), w_enc_x) + enc_b).reshape(B, T, 2 * G)

    h_f = jnp.zeros((B, H), f32)
    c_f = jnp.zeros((B, H), f32)
    h_b = jnp.zeros((B, H), f32)
    c_b = jnp.zeros((B, H), f32)
    out_f = [None] * T
    out_b = [None] * T
    for t in range(T):                                   # fully unrolled (T static)
        gh = mm(jnp.concatenate([h_f, h_b], axis=-1), w_enc_h)       # (B, 512)
        tb = T - 1 - t
        h_f, c_f = lstm_gates(gx_enc[:, t, :G] + gh[:, :G], c_f)
        h_b, c_b = lstm_gates(gx_enc[:, tb, G:] + gh[:, G:], c_b)
        out_f[t] = h_f
        out_b[tb] = h_b

    rnn = jnp.concatenate([jnp.stack(out_f, axis=1),
                           jnp.stack(out_b, axis=1)], axis=-1)       # (B, T, 128)

    # ---- classifier1 on the last timestep (lane-dense padded output) -------
    enc_logits_ref[...] = mm(rnn[:, T - 1, :], w_cls1) + cls1_b

    # ---- attention (computed once) ------------------------------------------
    # softmax over T is shift-invariant; the decoder-hidden contribution and the
    # attn bias are constant over T, so they cancel exactly -> attention weights
    # and attn_applied are identical for every decoder step.
    s = jnp.sum(rnn * w_attn[None, :, :], axis=-1)                   # (B, T)
    e = jnp.exp(s - jnp.max(s, axis=-1, keepdims=True))
    aw = e * pl.reciprocal(jnp.sum(e, axis=-1, keepdims=True), approx=True)
    applied = jnp.sum(aw[:, :, None] * rnn, axis=1)                  # (B, 128)

    # ---- decoder x-path (attn_combine + token-LSTM input proj), batched ----
    part_rnn = mm(rnn.reshape(B * T, HH), w_comb1).reshape(B, T, H)  # (B, T, 64)
    part_app = (mm(applied, w_comb2) + comb_b)[:, None, :]           # (B, 1, 64)
    x_dec = jnp.maximum(part_rnn + part_app, 0.0).reshape(B * T, H)  # ReLU
    gx_dec = (mm(x_dec, w_dec_x) + dec_b).reshape(B, T, 2 * G)

    # ---- decoder recurrence: bidirectional token LSTM on length-1 inputs ---
    dec_outs = [None] * T
    for di in range(T):                                  # fully unrolled
        gh = mm(jnp.concatenate([h_f, h_b], axis=-1), w_dec_h)       # (B, 512)
        g = gx_dec[:, di, :] + gh
        h_f, c_f = lstm_gates(g[:, :G], c_f)
        h_b, c_b = lstm_gates(g[:, G:], c_b)
        dec_outs[di] = jnp.concatenate([h_f, h_b], axis=-1)

    dec_all = jnp.stack(dec_outs, axis=1).reshape(B * T, HH)         # (B*T, 128)
    dec_logits_ref[...] = mm(dec_all, w_cls2) + cls2_b


def multi_forward_impl(x_inputs, kp, num_labels):
    X = jnp.take(kp['embedding'], x_inputs, axis=0)      # (B, T, 64) gather glue
    B, T, _ = X.shape
    enc_pad, dec_pad = pl.pallas_call(
        _multi_fused_kernel,
        out_shape=(jax.ShapeDtypeStruct((B, NL_PAD), jnp.float32),
                   jax.ShapeDtypeStruct((B * T, NL_PAD), jnp.float32)),
        in_specs=[pl.BlockSpec(memory_space=pltpu.MemorySpace.VMEM)] * 3,
        out_specs=(pl.BlockSpec(memory_space=pltpu.MemorySpace.VMEM),) * 2,
    )(X, kp['w_slab'], kp['b_slab'])
    return (enc_pad[:, :num_labels],
            dec_pad.reshape(B, T, NL_PAD)[:, :, :num_labels])


multi_forward = jax.jit(multi_forward_impl, static_argnums=(2,))


# ---------------------------------------------------------------------------
# Parameter init (torch-like layout) + offline packing into the two slabs
# ---------------------------------------------------------------------------
def init_params(key, vocab_size, num_labels=2):
    keys = iter(jax.random.split(key, 40))

    def nrm(shape, scale=0.1):
        return (scale * jax.random.normal(next(keys), shape)).astype(jnp.float32)

    p = {'embedding': nrm((vocab_size, H), 0.5)}
    for tag in ('enc', 'tok'):
        for d in ('f', 'b'):
            p[f'{tag}_wih_{d}_t'] = nrm((H, 4 * H))      # transposed (in, 4H)
            p[f'{tag}_whh_{d}_t'] = nrm((H, 4 * H))
            p[f'{tag}_b_{d}'] = nrm((1, 4 * H))          # bias_ih + bias_hh
    attn_w = nrm((1, 2 * HH))                            # nn.Linear(256, 1) weight
    p['attn_w_enc'] = attn_w[:, :HH]                     # (1, 128)
    p['attn_w_hid'] = attn_w[:, HH:]                     # (1, 128)
    p['attn_b'] = nrm((1, 1))
    p['comb_w_t'] = nrm((2 * HH, H))                     # nn.Linear(256, 64)^T
    p['comb_b'] = nrm((1, H))
    p['cls1_w_t'] = nrm((HH, num_labels))
    p['cls1_b'] = nrm((1, num_labels))
    p['cls2_w_t'] = nrm((HH, num_labels))
    p['cls2_b'] = nrm((1, num_labels))
    return p


def pack_params(p):
    """Pack torch-layout params into two VMEM slabs (weights bf16, vectors f32)."""
    f32 = jnp.float32

    def gate_perm(w):   # torch gate columns [i, f, g, o] -> [i, f, o, g]
        return jnp.concatenate([w[..., :2 * H], w[..., 3 * H:], w[..., 2 * H:3 * H]],
                               axis=-1)

    def blockdiag(w_f, w_b):
        z = jnp.zeros((H, G), f32)
        return jnp.concatenate(
            [jnp.concatenate([gate_perm(w_f), z], axis=1),
             jnp.concatenate([z, gate_perm(w_b)], axis=1)], axis=0)   # (128, 512)

    def pad_cols(w, width=W_COLS):
        return jnp.concatenate(
            [w, jnp.zeros((w.shape[0], width - w.shape[1]), w.dtype)], axis=1)

    w_slab = jnp.concatenate([
        jnp.concatenate([gate_perm(p['enc_wih_f_t']),
                         gate_perm(p['enc_wih_b_t'])], axis=1),       # _R_ENC_X
        blockdiag(p['enc_whh_f_t'], p['enc_whh_b_t']),                # _R_ENC_H
        jnp.concatenate([gate_perm(p['tok_wih_f_t']),
                         gate_perm(p['tok_wih_b_t'])], axis=1),       # _R_DEC_X
        blockdiag(p['tok_whh_f_t'], p['tok_whh_b_t']),                # _R_DEC_H
        pad_cols(p['comb_w_t']),                                      # _R_COMB1/2
        pad_cols(p['cls1_w_t']),                                      # _R_CLS1
        pad_cols(p['cls2_w_t']),                                      # _R_CLS2
    ], axis=0).astype(jnp.bfloat16)
    assert w_slab.shape == (_W_ROWS, W_COLS)

    b_slab = jnp.concatenate([
        jnp.concatenate([gate_perm(p['enc_b_f']), gate_perm(p['enc_b_b'])], axis=1),
        jnp.concatenate([gate_perm(p['tok_b_f']), gate_perm(p['tok_b_b'])], axis=1),
        pad_cols(p['comb_b']),
        jnp.concatenate([p['attn_w_enc'],
                         pad_cols(p['cls1_b'], NL_PAD),
                         pad_cols(p['cls2_b'], NL_PAD),
                         jnp.zeros((1, 128), f32)], axis=1),
        jnp.zeros((4, W_COLS), f32),
    ], axis=0).astype(f32)                                            # (8, 512)
    # attn_w_hid / attn_b are intentionally not packed: softmax over T is
    # shift-invariant, so the hidden-state and bias attention terms cancel.
    return {'embedding': p['embedding'], 'w_slab': w_slab, 'b_slab': b_slab}


# ---------------------------------------------------------------------------
# Pure-JAX reference (torch-layout params, full f32) for verification
# ---------------------------------------------------------------------------
def reference_forward(x_inputs, params):
    X = params['embedding'][x_inputs]
    B, T, _ = X.shape

    def cell(x, h, c, wih_t, whh_t, b):
        g = x @ wih_t + h @ whh_t + b
        i = jax.nn.sigmoid(g[:, :H]); f = jax.nn.sigmoid(g[:, H:2 * H])
        gg = jnp.tanh(g[:, 2 * H:3 * H]); o = jax.nn.sigmoid(g[:, 3 * H:])
        c2 = f * c + i * gg
        return o * jnp.tanh(c2), c2

    h_f = c_f = h_b = c_b = jnp.zeros((B, H), jnp.float32)
    of = [None] * T
    ob = [None] * T
    for t in range(T):
        h_f, c_f = cell(X[:, t], h_f, c_f, params['enc_wih_f_t'],
                        params['enc_whh_f_t'], params['enc_b_f'])
        of[t] = h_f
        tb = T - 1 - t
        h_b, c_b = cell(X[:, tb], h_b, c_b, params['enc_wih_b_t'],
                        params['enc_whh_b_t'], params['enc_b_b'])
        ob[tb] = h_b
    rnn_out = jnp.concatenate([jnp.stack(of, 1), jnp.stack(ob, 1)], axis=-1)
    enc_logits = rnn_out[:, -1, :] @ params['cls1_w_t'] + params['cls1_b']

    w_a = jnp.concatenate([params['attn_w_enc'], params['attn_w_hid']], axis=1).T
    dh_f, dh_b, dc_f, dc_b = h_f, h_b, c_f, c_b
    dec_outs = []
    for di in range(T):
        hid = jnp.stack([dh_f, dh_b], 0).reshape(-1, HH)     # torch .view(-1, 128)
        hr = jnp.repeat(hid[:, None, :], T, axis=1)
        cat = jnp.concatenate([rnn_out, hr], axis=2)
        aw = jax.nn.softmax(cat @ w_a + params['attn_b'], axis=1)    # (B, T, 1)
        applied = jnp.einsum('btk,btx->bk', rnn_out, aw)
        out = jnp.concatenate([rnn_out[:, di, :], applied], axis=1)
        out = jnp.maximum(out @ params['comb_w_t'] + params['comb_b'], 0.0)
        dh_f, dc_f = cell(out, dh_f, dc_f, params['tok_wih_f_t'],
                          params['tok_whh_f_t'], params['tok_b_f'])
        dh_b, dc_b = cell(out, dh_b, dc_b, params['tok_wih_b_t'],
                          params['tok_whh_b_t'], params['tok_b_b'])
        dec_outs.append(jnp.concatenate([dh_f, dh_b], axis=-1))
    decoder_outputs = jnp.stack(dec_outs, axis=1)
    dec_logits = decoder_outputs @ params['cls2_w_t'] + params['cls2_b']
    return enc_logits, dec_logits


if __name__ == "__main__":
    B, T, VOCAB, NUM_LABELS = 2, 8, 100, 2
    key = jax.random.PRNGKey(0)
    k_param, k_data = jax.random.split(key)
    params = init_params(k_param, VOCAB, NUM_LABELS)
    kparams = pack_params(params)
    x_inputs = jax.random.randint(k_data, (B, T), 0, VOCAB, dtype=jnp.int32)

    enc_logits, dec_logits = multi_forward(x_inputs, kparams, NUM_LABELS)
    enc_logits = jax.block_until_ready(enc_logits)
    dec_logits = jax.block_until_ready(dec_logits)

    ref_enc, ref_dec = reference_forward(x_inputs, params)
    assert enc_logits.shape == (B, NUM_LABELS)
    assert dec_logits.shape == (B, T, NUM_LABELS)
    # bf16 MXU operands (f32 accumulation) -> compare at a bf16-level tolerance.
    err_enc = float(jnp.max(jnp.abs(enc_logits - ref_enc)))
    err_dec = float(jnp.max(jnp.abs(dec_logits - ref_dec)))
    assert jnp.allclose(enc_logits, ref_enc, atol=5e-2, rtol=5e-2), err_enc
    assert jnp.allclose(dec_logits, ref_dec, atol=5e-2, rtol=5e-2), err_dec
    print("KERNEL_OK")
</pallas_src>

<mosaic_0001>
module attributes {stable_mosaic.version = 11 : i64} {
  func.func @_multi_fused_kernel(%arg0: memref<2x8x64xf32, #tpu.memory_space<vmem>>, %arg1: memref<896x512xbf16, #tpu.memory_space<vmem>>, %arg2: memref<8x512xf32, #tpu.memory_space<vmem>>, %arg3: memref<2x128xf32, #tpu.memory_space<vmem>>, %arg4: memref<16x128xf32, #tpu.memory_space<vmem>>) attributes {dimension_semantics = [], scalar_prefetch = 0 : i64, scratch_operands = 0 : i64, tpu.core_type = #tpu.core_type<tc>} {
    %c0 = arith.constant 0 : index
    %c0_0 = arith.constant 0 : index
    %0 = vector.load %arg1[%c0, %c0_0] : memref<896x512xbf16, #tpu.memory_space<vmem>>, vector<64x512xbf16>
    %c64 = arith.constant 64 : index
    %c0_1 = arith.constant 0 : index
    %1 = vector.load %arg1[%c64, %c0_1] : memref<896x512xbf16, #tpu.memory_space<vmem>>, vector<128x512xbf16>
    %c192 = arith.constant 192 : index
    %c0_2 = arith.constant 0 : index
    %2 = vector.load %arg1[%c192, %c0_2] : memref<896x512xbf16, #tpu.memory_space<vmem>>, vector<64x512xbf16>
    %c256 = arith.constant 256 : index
    %c0_3 = arith.constant 0 : index
    %3 = vector.load %arg1[%c256, %c0_3] : memref<896x512xbf16, #tpu.memory_space<vmem>>, vector<128x512xbf16>
    %c384 = arith.constant 384 : index
    %c0_4 = arith.constant 0 : index
    %4 = vector.load %arg1[%c384, %c0_4] : memref<896x512xbf16, #tpu.memory_space<vmem>>, vector<128x64xbf16>
    %c512 = arith.constant 512 : index
    %c0_5 = arith.constant 0 : index
    %5 = vector.load %arg1[%c512, %c0_5] : memref<896x512xbf16, #tpu.memory_space<vmem>>, vector<128x64xbf16>
    %c640 = arith.constant 640 : index
    %c0_6 = arith.constant 0 : index
    %6 = vector.load %arg1[%c640, %c0_6] : memref<896x512xbf16, #tpu.memory_space<vmem>>, vector<128x128xbf16>
    %c768 = arith.constant 768 : index
    %c0_7 = arith.constant 0 : index
    %7 = vector.load %arg1[%c768, %c0_7] : memref<896x512xbf16, #tpu.memory_space<vmem>>, vector<128x128xbf16>
    %c0_8 = arith.constant 0 : index
    %c0_9 = arith.constant 0 : index
    %8 = vector.load %arg2[%c0_8, %c0_9] : memref<8x512xf32, #tpu.memory_space<vmem>>, vector<1x512xf32>
    %c1 = arith.constant 1 : index
    %c0_10 = arith.constant 0 : index
    %9 = vector.load %arg2[%c1, %c0_10] : memref<8x512xf32, #tpu.memory_space<vmem>>, vector<1x512xf32>
    %c2 = arith.constant 2 : index
    %c0_11 = arith.constant 0 : index
    %10 = vector.load %arg2[%c2, %c0_11] : memref<8x512xf32, #tpu.memory_space<vmem>>, vector<1x64xf32>
    %c3 = arith.constant 3 : index
    %c0_12 = arith.constant 0 : index
    %11 = vector.load %arg2[%c3, %c0_12] : memref<8x512xf32, #tpu.memory_space<vmem>>, vector<1x128xf32>
    %c3_13 = arith.constant 3 : index
    %c128 = arith.constant 128 : index
    %12 = vector.load %arg2[%c3_13, %c128] : memref<8x512xf32, #tpu.memory_space<vmem>>, vector<1x128xf32>
    %c3_14 = arith.constant 3 : index
    %c256_15 = arith.constant 256 : index
    %13 = vector.load %arg2[%c3_14, %c256_15] : memref<8x512xf32, #tpu.memory_space<vmem>>, vector<1x128xf32>
    %c0_16 = arith.constant 0 : index
    %c0_17 = arith.constant 0 : index
    %c0_18 = arith.constant 0 : index
    %14 = vector.load %arg0[%c0_16, %c0_17, %c0_18] : memref<2x8x64xf32, #tpu.memory_space<vmem>>, vector<2x8x64xf32>
    %15 = vector.shape_cast %14 : vector<2x8x64xf32> to vector<16x64xf32>
    %16 = arith.truncf %15 : vector<16x64xf32> to vector<16x64xbf16>
    %cst = arith.constant dense<0.000000e+00> : vector<16x512xf32>
    %17 = tpu.matmul %16, %0, %cst {dimension_numbers = #tpu.dot_dimension_numbers<[1], [0], [0], [1], [0, 0, 1, 1], [], []>} : vector<16x64xbf16>, vector<64x512xbf16>, vector<16x512xf32> -> vector<16x512xf32>
    %18 = vector.broadcast %8 : vector<1x512xf32> to vector<16x512xf32>
    %19 = arith.addf %17, %18 : vector<16x512xf32>
    %20 = vector.shape_cast %19 : vector<16x512xf32> to vector<2x8x512xf32>
    %cst_19 = arith.constant 0.000000e+00 : f32
    %21 = vector.broadcast %cst_19 : f32 to vector<2x64xf32>
    %cst_20 = arith.constant 0.000000e+00 : f32
    %22 = vector.broadcast %cst_20 : f32 to vector<2x64xf32>
    %cst_21 = arith.constant 0.000000e+00 : f32
    %23 = vector.broadcast %cst_21 : f32 to vector<2x64xf32>
    %cst_22 = arith.constant 0.000000e+00 : f32
    %24 = vector.broadcast %cst_22 : f32 to vector<2x64xf32>
    %25 = tpu.concatenate %21, %23 in 1 : vector<2x64xf32>, vector<2x64xf32> -> vector<2x128xf32>
    %26 = arith.truncf %25 : vector<2x128xf32> to vector<2x128xbf16>
    %cst_23 = arith.constant dense<0.000000e+00> : vector<2x512xf32>
    %27 = tpu.matmul %26, %1, %cst_23 {dimension_numbers = #tpu.dot_dimension_numbers<[1], [0], [0], [1], [0, 0, 1, 1], [], []>} : vector<2x128xbf16>, vector<128x512xbf16>, vector<2x512xf32> -> vector<2x512xf32>
    %28 = vector.extract_strided_slice %20 {offsets = [0, 0, 0], sizes = [2, 1, 256], strides = [1, 1, 1]} : vector<2x8x512xf32> to vector<2x1x256xf32>
    %29 = vector.shape_cast %28 : vector<2x1x256xf32> to vector<2x256xf32>
    %30 = vector.extract_strided_slice %27 {offsets = [0, 0], sizes = [2, 256], strides = [1, 1]} : vector<2x512xf32> to vector<2x256xf32>
    %31 = arith.addf %29, %30 : vector<2x256xf32>
    %32 = vector.extract_strided_slice %31 {offsets = [0, 0], sizes = [2, 192], strides = [1, 1]} : vector<2x256xf32> to vector<2x192xf32>
    %33 = arith.negf %32 : vector<2x192xf32>
    %34 = math.exp %33 : vector<2x192xf32>
    %cst_24 = arith.constant 1.000000e+00 : f32
    %35 = vector.broadcast %cst_24 : f32 to vector<2x192xf32>
    %36 = arith.addf %35, %34 : vector<2x192xf32>
    %37 = arith.divf %35, %36 : vector<2x192xf32>
    %38 = vector.extract_strided_slice %31 {offsets = [0, 192], sizes = [2, 64], strides = [1, 1]} : vector<2x256xf32> to vector<2x64xf32>
    %39 = math.tanh %38 : vector<2x64xf32>
    %40 = vector.extract_strided_slice %37 {offsets = [0, 64], sizes = [2, 64], strides = [1, 1]} : vector<2x192xf32> to vector<2x64xf32>
    %41 = arith.mulf %40, %22 : vector<2x64xf32>
    %42 = vector.extract_strided_slice %37 {offsets = [0, 0], sizes = [2, 64], strides = [1, 1]} : vector<2x192xf32> to vector<2x64xf32>
    %43 = arith.mulf %42, %39 : vector<2x64xf32>
    %44 = arith.addf %41, %43 : vector<2x64xf32>
    %45 = vector.extract_strided_slice %37 {offsets = [0, 128], sizes = [2, 64], strides = [1, 1]} : vector<2x192xf32> to vector<2x64xf32>
    %46 = math.tanh %44 : vector<2x64xf32>
    %47 = arith.mulf %45, %46 : vector<2x64xf32>
    %48 = vector.extract_strided_slice %20 {offsets = [0, 7, 256], sizes = [2, 1, 256], strides = [1, 1, 1]} : vector<2x8x512xf32> to vector<2x1x256xf32>
    %49 = vector.shape_cast %48 : vector<2x1x256xf32> to vector<2x256xf32>
    %50 = vector.extract_strided_slice %27 {offsets = [0, 256], sizes = [2, 256], strides = [1, 1]} : vector<2x512xf32> to vector<2x256xf32>
    %51 = arith.addf %49, %50 : vector<2x256xf32>
    %52 = vector.extract_strided_slice %51 {offsets = [0, 0], sizes = [2, 192], strides = [1, 1]} : vector<2x256xf32> to vector<2x192xf32>
    %53 = arith.negf %52 : vector<2x192xf32>
    %54 = math.exp %53 : vector<2x192xf32>
    %cst_25 = arith.constant 1.000000e+00 : f32
    %55 = vector.broadcast %cst_25 : f32 to vector<2x192xf32>
    %56 = arith.addf %55, %54 : vector<2x192xf32>
    %57 = arith.divf %55, %56 : vector<2x192xf32>
    %58 = vector.extract_strided_slice %51 {offsets = [0, 192], sizes = [2, 64], strides = [1, 1]} : vector<2x256xf32> to vector<2x64xf32>
    %59 = math.tanh %58 : vector<2x64xf32>
    %60 = vector.extract_strided_slice %57 {offsets = [0, 64], sizes = [2, 64], strides = [1, 1]} : vector<2x192xf32> to vector<2x64xf32>
    %61 = arith.mulf %60, %24 : vector<2x64xf32>
    %62 = vector.extract_strided_slice %57 {offsets = [0, 0], sizes = [2, 64], strides = [1, 1]} : vector<2x192xf32> to vector<2x64xf32>
    %63 = arith.mulf %62, %59 : vector<2x64xf32>
    %64 = arith.addf %61, %63 : vector<2x64xf32>
    %65 = vector.extract_strided_slice %57 {offsets = [0, 128], sizes = [2, 64], strides = [1, 1]} : vector<2x192xf32> to vector<2x64xf32>
    %66 = math.tanh %64 : vector<2x64xf32>
    %67 = arith.mulf %65, %66 : vector<2x64xf32>
    %68 = tpu.concatenate %47, %67 in 1 : vector<2x64xf32>, vector<2x64xf32> -> vector<2x128xf32>
    %69 = arith.truncf %68 : vector<2x128xf32> to vector<2x128xbf16>
    %cst_26 = arith.constant dense<0.000000e+00> : vector<2x512xf32>
    %70 = tpu.matmul %69, %1, %cst_26 {dimension_numbers = #tpu.dot_dimension_numbers<[1], [0], [0], [1], [0, 0, 1, 1], [], []>} : vector<2x128xbf16>, vector<128x512xbf16>, vector<2x512xf32> -> vector<2x512xf32>
    %71 = vector.extract_strided_slice %20 {offsets = [0, 1, 0], sizes = [2, 1, 256], strides = [1, 1, 1]} : vector<2x8x512xf32> to vector<2x1x256xf32>
    %72 = vector.shape_cast %71 : vector<2x1x256xf32> to vector<2x256xf32>
    %73 = vector.extract_strided_slice %70 {offsets = [0, 0], sizes = [2, 256], strides = [1, 1]} : vector<2x512xf32> to vector<2x256xf32>
    %74 = arith.addf %72, %73 : vector<2x256xf32>
    %75 = vector.extract_strided_slice %74 {offsets = [0, 0], sizes = [2, 192], strides = [1, 1]} : vector<2x256xf32> to vector<2x192xf32>
    %76 = arith.negf %75 : vector<2x192xf32>
    %77 = math.exp %76 : vector<2x192xf32>
    %cst_27 = arith.constant 1.000000e+00 : f32
    %78 = vector.broadcast %cst_27 : f32 to vector<2x192xf32>
    %79 = arith.addf %78, %77 : vector<2x192xf32>
    %80 = arith.divf %78, %79 : vector<2x192xf32>
    %81 = vector.extract_strided_slice %74 {offsets = [0, 192], sizes = [2, 64], strides = [1, 1]} : vector<2x256xf32> to vector<2x64xf32>
    %82 = math.tanh %81 : vector<2x64xf32>
    %83 = vector.extract_strided_slice %80 {offsets = [0, 64], sizes = [2, 64], strides = [1, 1]} : vector<2x192xf32> to vector<2x64xf32>
    %84 = arith.mulf %83, %44 : vector<2x64xf32>
    %85 = vector.extract_strided_slice %80 {offsets = [0, 0], sizes = [2, 64], strides = [1, 1]} : vector<2x192xf32> to vector<2x64xf32>
    %86 = arith.mulf %85, %82 : vector<2x64xf32>
    %87 = arith.addf %84, %86 : vector<2x64xf32>
    %88 = vector.extract_strided_slice %80 {offsets = [0, 128], sizes = [2, 64], strides = [1, 1]} : vector<2x192xf32> to vector<2x64xf32>
    %89 = math.tanh %87 : vector<2x64xf32>
    %90 = arith.mulf %88, %89 : vector<2x64xf32>
    %91 = vector.extract_strided_slice %20 {offsets = [0, 6, 256], sizes = [2, 1, 256], strides = [1, 1, 1]} : vector<2x8x512xf32> to vector<2x1x256xf32>
    %92 = vector.shape_cast %91 : vector<2x1x256xf32> to vector<2x256xf32>
    %93 = vector.extract_strided_slice %70 {offsets = [0, 256], sizes = [2, 256], strides = [1, 1]} : vector<2x512xf32> to vector<2x256xf32>
    %94 = arith.addf %92, %93 : vector<2x256xf32>
    %95 = vector.extract_strided_slice %94 {offsets = [0, 0], sizes = [2, 192], strides = [1, 1]} : vector<2x256xf32> to vector<2x192xf32>
    %96 = arith.negf %95 : vector<2x192xf32>
    %97 = math.exp %96 : vector<2x192xf32>
    %cst_28 = arith.constant 1.000000e+00 : f32
    %98 = vector.broadcast %cst_28 : f32 to vector<2x192xf32>
    %99 = arith.addf %98, %97 : vector<2x192xf32>
    %100 = arith.divf %98, %99 : vector<2x192xf32>
    %101 = vector.extract_strided_slice %94 {offsets = [0, 192], sizes = [2, 64], strides = [1, 1]} : vector<2x256xf32> to vector<2x64xf32>
    %102 = math.tanh %101 : vector<2x64xf32>
    %103 = vector.extract_strided_slice %100 {offsets = [0, 64], sizes = [2, 64], strides = [1, 1]} : vector<2x192xf32> to vector<2x64xf32>
    %104 = arith.mulf %103, %64 : vector<2x64xf32>
    %105 = vector.extract_strided_slice %100 {offsets = [0, 0], sizes = [2, 64], strides = [1, 1]} : vector<2x192xf32> to vector<2x64xf32>
    %106 = arith.mulf %105, %102 : vector<2x64xf32>
    %107 = arith.addf %104, %106 : vector<2x64xf32>
    %108 = vector.extract_strided_slice %100 {offsets = [0, 128], sizes = [2, 64], strides = [1, 1]} : vector<2x192xf32> to vector<2x64xf32>
    %109 = math.tanh %107 : vector<2x64xf32>
    %110 = arith.mulf %108, %109 : vector<2x64xf32>
    %111 = tpu.concatenate %90, %110 in 1 : vector<2x64xf32>, vector<2x64xf32> -> vector<2x128xf32>
    %112 = arith.truncf %111 : vector<2x128xf32> to vector<2x128xbf16>
    %cst_29 = arith.constant dense<0.000000e+00> : vector<2x512xf32>
    %113 = tpu.matmul %112, %1, %cst_29 {dimension_numbers = #tpu.dot_dimension_numbers<[1], [0], [0], [1], [0, 0, 1, 1], [], []>} : vector<2x128xbf16>, vector<128x512xbf16>, vector<2x512xf32> -> vector<2x512xf32>
    %114 = vector.extract_strided_slice %20 {offsets = [0, 2, 0], sizes = [2, 1, 256], strides = [1, 1, 1]} : vector<2x8x512xf32> to vector<2x1x256xf32>
    %115 = vector.shape_cast %114 : vector<2x1x256xf32> to vector<2x256xf32>
    %116 = vector.extract_strided_slice %113 {offsets = [0, 0], sizes = [2, 256], strides = [1, 1]} : vector<2x512xf32> to vector<2x256xf32>
    %117 = arith.addf %115, %116 : vector<2x256xf32>
    %118 = vector.extract_strided_slice %117 {offsets = [0, 0], sizes = [2, 192], strides = [1, 1]} : vector<2x256xf32> to vector<2x192xf32>
    %119 = arith.negf %118 : vector<2x192xf32>
    %120 = math.exp %119 : vector<2x192xf32>
    %cst_30 = arith.constant 1.000000e+00 : f32
    %121 = vector.broadcast %cst_30 : f32 to vector<2x192xf32>
    %122 = arith.addf %121, %120 : vector<2x192xf32>
    %123 = arith.divf %121, %122 : vector<2x192xf32>
    %124 = vector.extract_strided_slice %117 {offsets = [0, 192], sizes = [2, 64], strides = [1, 1]} : vector<2x256xf32> to vector<2x64xf32>
    %125 = math.tanh %124 : vector<2x64xf32>
    %126 = vector.extract_strided_slice %123 {offsets = [0, 64], sizes = [2, 64], strides = [1, 1]} : vector<2x192xf32> to vector<2x64xf32>
    %127 = arith.mulf %126, %87 : vector<2x64xf32>
    %128 = vector.extract_strided_slice %123 {offsets = [0, 0], sizes = [2, 64], strides = [1, 1]} : vector<2x192xf32> to vector<2x64xf32>
    %129 = arith.mulf %128, %125 : vector<2x64xf32>
    %130 = arith.addf %127, %129 : vector<2x64xf32>
    %131 = vector.extract_strided_slice %123 {offsets = [0, 128], sizes = [2, 64], strides = [1, 1]} : vector<2x192xf32> to vector<2x64xf32>
    %132 = math.tanh %130 : vector<2x64xf32>
    %133 = arith.mulf %131, %132 : vector<2x64xf32>
    %134 = vector.extract_strided_slice %20 {offsets = [0, 5, 256], sizes = [2, 1, 256], strides = [1, 1, 1]} : vector<2x8x512xf32> to vector<2x1x256xf32>
    %135 = vector.shape_cast %134 : vector<2x1x256xf32> to vector<2x256xf32>
    %136 = vector.extract_strided_slice %113 {offsets = [0, 256], sizes = [2, 256], strides = [1, 1]} : vector<2x512xf32> to vector<2x256xf32>
    %137 = arith.addf %135, %136 : vector<2x256xf32>
    %138 = vector.extract_strided_slice %137 {offsets = [0, 0], sizes = [2, 192], strides = [1, 1]} : vector<2x256xf32> to vector<2x192xf32>
    %139 = arith.negf %138 : vector<2x192xf32>
    %140 = math.exp %139 : vector<2x192xf32>
    %cst_31 = arith.constant 1.000000e+00 : f32
    %141 = vector.broadcast %cst_31 : f32 to vector<2x192xf32>
    %142 = arith.addf %141, %140 : vector<2x192xf32>
    %143 = arith.divf %141, %142 : vector<2x192xf32>
    %144 = vector.extract_strided_slice %137 {offsets = [0, 192], sizes = [2, 64], strides = [1, 1]} : vector<2x256xf32> to vector<2x64xf32>
    %145 = math.tanh %144 : vector<2x64xf32>
    %146 = vector.extract_strided_slice %143 {offsets = [0, 64], sizes = [2, 64], strides = [1, 1]} : vector<2x192xf32> to vector<2x64xf32>
    %147 = arith.mulf %146, %107 : vector<2x64xf32>
    %148 = vector.extract_strided_slice %143 {offsets = [0, 0], sizes = [2, 64], strides = [1, 1]} : vector<2x192xf32> to vector<2x64xf32>
    %149 = arith.mulf %148, %145 : vector<2x64xf32>
    %150 = arith.addf %147, %149 : vector<2x64xf32>
    %151 = vector.extract_strided_slice %143 {offsets = [0, 128], sizes = [2, 64], strides = [1, 1]} : vector<2x192xf32> to vector<2x64xf32>
    %152 = math.tanh %150 : vector<2x64xf32>
    %153 = arith.mulf %151, %152 : vector<2x64xf32>
    %154 = tpu.concatenate %133, %153 in 1 : vector<2x64xf32>, vector<2x64xf32> -> vector<2x128xf32>
    %155 = arith.truncf %154 : vector<2x128xf32> to vector<2x128xbf16>
    %cst_32 = arith.constant dense<0.000000e+00> : vector<2x512xf32>
    %156 = tpu.matmul %155, %1, %cst_32 {dimension_numbers = #tpu.dot_dimension_numbers<[1], [0], [0], [1], [0, 0, 1, 1], [], []>} : vector<2x128xbf16>, vector<128x512xbf16>, vector<2x512xf32> -> vector<2x512xf32>
    %157 = vector.extract_strided_slice %20 {offsets = [0, 3, 0], sizes = [2, 1, 256], strides = [1, 1, 1]} : vector<2x8x512xf32> to vector<2x1x256xf32>
    %158 = vector.shape_cast %157 : vector<2x1x256xf32> to vector<2x256xf32>
    %159 = vector.extract_strided_slice %156 {offsets = [0, 0], sizes = [2, 256], strides = [1, 1]} : vector<2x512xf32> to vector<2x256xf32>
    %160 = arith.addf %158, %159 : vector<2x256xf32>
    %161 = vector.extract_strided_slice %160 {offsets = [0, 0], sizes = [2, 192], strides = [1, 1]} : vector<2x256xf32> to vector<2x192xf32>
    %162 = arith.negf %161 : vector<2x192xf32>
    %163 = math.exp %162 : vector<2x192xf32>
    %cst_33 = arith.constant 1.000000e+00 : f32
    %164 = vector.broadcast %cst_33 : f32 to vector<2x192xf32>
    %165 = arith.addf %164, %163 : vector<2x192xf32>
    %166 = arith.divf %164, %165 : vector<2x192xf32>
    %167 = vector.extract_strided_slice %160 {offsets = [0, 192], sizes = [2, 64], strides = [1, 1]} : vector<2x256xf32> to vector<2x64xf32>
    %168 = math.tanh %167 : vector<2x64xf32>
    %169 = vector.extract_strided_slice %166 {offsets = [0, 64], sizes = [2, 64], strides = [1, 1]} : vector<2x192xf32> to vector<2x64xf32>
    %170 = arith.mulf %169, %130 : vector<2x64xf32>
    %171 = vector.extract_strided_slice %166 {offsets = [0, 0], sizes = [2, 64], strides = [1, 1]} : vector<2x192xf32> to vector<2x64xf32>
    %172 = arith.mulf %171, %168 : vector<2x64xf32>
    %173 = arith.addf %170, %172 : vector<2x64xf32>
    %174 = vector.extract_strided_slice %166 {offsets = [0, 128], sizes = [2, 64], strides = [1, 1]} : vector<2x192xf32> to vector<2x64xf32>
    %175 = math.tanh %173 : vector<2x64xf32>
    %176 = arith.mulf %174, %175 : vector<2x64xf32>
    %177 = vector.extract_strided_slice %20 {offsets = [0, 4, 256], sizes = [2, 1, 256], strides = [1, 1, 1]} : vector<2x8x512xf32> to vector<2x1x256xf32>
    %178 = vector.shape_cast %177 : vector<2x1x256xf32> to vector<2x256xf32>
    %179 = vector.extract_strided_slice %156 {offsets = [0, 256], sizes = [2, 256], strides = [1, 1]} : vector<2x512xf32> to vector<2x256xf32>
    %180 = arith.addf %178, %179 : vector<2x256xf32>
    %181 = vector.extract_strided_slice %180 {offsets = [0, 0], sizes = [2, 192], strides = [1, 1]} : vector<2x256xf32> to vector<2x192xf32>
    %182 = arith.negf %181 : vector<2x192xf32>
    %183 = math.exp %182 : vector<2x192xf32>
    %cst_34 = arith.constant 1.000000e+00 : f32
    %184 = vector.broadcast %cst_34 : f32 to vector<2x192xf32>
    %185 = arith.addf %184, %183 : vector<2x192xf32>
    %186 = arith.divf %184, %185 : vector<2x192xf32>
    %187 = vector.extract_strided_slice %180 {offsets = [0, 192], sizes = [2, 64], strides = [1, 1]} : vector<2x256xf32> to vector<2x64xf32>
    %188 = math.tanh %187 : vector<2x64xf32>
    %189 = vector.extract_strided_slice %186 {offsets = [0, 64], sizes = [2, 64], strides = [1, 1]} : vector<2x192xf32> to vector<2x64xf32>
    %190 = arith.mulf %189, %150 : vector<2x64xf32>
    %191 = vector.extract_strided_slice %186 {offsets = [0, 0], sizes = [2, 64], strides = [1, 1]} : vector<2x192xf32> to vector<2x64xf32>
    %192 = arith.mulf %191, %188 : vector<2x64xf32>
    %193 = arith.addf %190, %192 : vector<2x64xf32>
    %194 = vector.extract_strided_slice %186 {offsets = [0, 128], sizes = [2, 64], strides = [1, 1]} : vector<2x192xf32> to vector<2x64xf32>
    %195 = math.tanh %193 : vector<2x64xf32>
    %196 = arith.mulf %194, %195 : vector<2x64xf32>
    %197 = tpu.concatenate %176, %196 in 1 : vector<2x64xf32>, vector<2x64xf32> -> vector<2x128xf32>
    %198 = arith.truncf %197 : vector<2x128xf32> to vector<2x128xbf16>
    %cst_35 = arith.constant dense<0.000000e+00> : vector<2x512xf32>
    %199 = tpu.matmul %198, %1, %cst_35 {dimension_numbers = #tpu.dot_dimension_numbers<[1], [0], [0], [1], [0, 0, 1, 1], [], []>} : vector<2x128xbf16>, vector<128x512xbf16>, vector<2x512xf32> -> vector<2x512xf32>
    %200 = vector.extract_strided_slice %20 {offsets = [0, 4, 0], sizes = [2, 1, 256], strides = [1, 1, 1]} : vector<2x8x512xf32> to vector<2x1x256xf32>
    %201 = vector.shape_cast %200 : vector<2x1x256xf32> to vector<2x256xf32>
    %202 = vector.extract_strided_slice %199 {offsets = [0, 0], sizes = [2, 256], strides = [1, 1]} : vector<2x512xf32> to vector<2x256xf32>
    %203 = arith.addf %201, %202 : vector<2x256xf32>
    %204 = vector.extract_strided_slice %203 {offsets = [0, 0], sizes = [2, 192], strides = [1, 1]} : vector<2x256xf32> to vector<2x192xf32>
    %205 = arith.negf %204 : vector<2x192xf32>
    %206 = math.exp %205 : vector<2x192xf32>
    %cst_36 = arith.constant 1.000000e+00 : f32
    %207 = vector.broadcast %cst_36 : f32 to vector<2x192xf32>
    %208 = arith.addf %207, %206 : vector<2x192xf32>
    %209 = arith.divf %207, %208 : vector<2x192xf32>
    %210 = vector.extract_strided_slice %203 {offsets = [0, 192], sizes = [2, 64], strides = [1, 1]} : vector<2x256xf32> to vector<2x64xf32>
    %211 = math.tanh %210 : vector<2x64xf32>
    %212 = vector.extract_strided_slice %209 {offsets = [0, 64], sizes = [2, 64], strides = [1, 1]} : vector<2x192xf32> to vector<2x64xf32>
    %213 = arith.mulf %212, %173 : vector<2x64xf32>
    %214 = vector.extract_strided_slice %209 {offsets = [0, 0], sizes = [2, 64], strides = [1, 1]} : vector<2x192xf32> to vector<2x64xf32>
    %215 = arith.mulf %214, %211 : vector<2x64xf32>
    %216 = arith.addf %213, %215 : vector<2x64xf32>
    %217 = vector.extract_strided_slice %209 {offsets = [0, 128], sizes = [2, 64], strides = [1, 1]} : vector<2x192xf32> to vector<2x64xf32>
    %218 = math.tanh %216 : vector<2x64xf32>
    %219 = arith.mulf %217, %218 : vector<2x64xf32>
    %220 = vector.extract_strided_slice %20 {offsets = [0, 3, 256], sizes = [2, 1, 256], strides = [1, 1, 1]} : vector<2x8x512xf32> to vector<2x1x256xf32>
    %221 = vector.shape_cast %220 : vector<2x1x256xf32> to vector<2x256xf32>
    %222 = vector.extract_strided_slice %199 {offsets = [0, 256], sizes = [2, 256], strides = [1, 1]} : vector<2x512xf32> to vector<2x256xf32>
    %223 = arith.addf %221, %222 : vector<2x256xf32>
    %224 = vector.extract_strided_slice %223 {offsets = [0, 0], sizes = [2, 192], strides = [1, 1]} : vector<2x256xf32> to vector<2x192xf32>
    %225 = arith.negf %224 : vector<2x192xf32>
    %226 = math.exp %225 : vector<2x192xf32>
    %cst_37 = arith.constant 1.000000e+00 : f32
    %227 = vector.broadcast %cst_37 : f32 to vector<2x192xf32>
    %228 = arith.addf %227, %226 : vector<2x192xf32>
    %229 = arith.divf %227, %228 : vector<2x192xf32>
    %230 = vector.extract_strided_slice %223 {offsets = [0, 192], sizes = [2, 64], strides = [1, 1]} : vector<2x256xf32> to vector<2x64xf32>
    %231 = math.tanh %230 : vector<2x64xf32>
    %232 = vector.extract_strided_slice %229 {offsets = [0, 64], sizes = [2, 64], strides = [1, 1]} : vector<2x192xf32> to vector<2x64xf32>
    %233 = arith.mulf %232, %193 : vector<2x64xf32>
    %234 = vector.extract_strided_slice %229 {offsets = [0, 0], sizes = [2, 64], strides = [1, 1]} : vector<2x192xf32> to vector<2x64xf32>
    %235 = arith.mulf %234, %231 : vector<2x64xf32>
    %236 = arith.addf %233, %235 : vector<2x64xf32>
    %237 = vector.extract_strided_slice %229 {offsets = [0, 128], sizes = [2, 64], strides = [1, 1]} : vector<2x192xf32> to vector<2x64xf32>
    %238 = math.tanh %236 : vector<2x64xf32>
    %239 = arith.mulf %237, %238 : vector<2x64xf32>
    %240 = tpu.concatenate %219, %239 in 1 : vector<2x64xf32>, vector<2x64xf32> -> vector<2x128xf32>
    %241 = arith.truncf %240 : vector<2x128xf32> to vector<2x128xbf16>
    %cst_38 = arith.constant dense<0.000000e+00> : vector<2x512xf32>
    %242 = tpu.matmul %241, %1, %cst_38 {dimension_numbers = #tpu.dot_dimension_numbers<[1], [0], [0], [1], [0, 0, 1, 1], [], []>} : vector<2x128xbf16>, vector<128x512xbf16>, vector<2x512xf32> -> vector<2x512xf32>
    %243 = vector.extract_strided_slice %20 {offsets = [0, 5, 0], sizes = [2, 1, 256], strides = [1, 1, 1]} : vector<2x8x512xf32> to vector<2x1x256xf32>
    %244 = vector.shape_cast %243 : vector<2x1x256xf32> to vector<2x256xf32>
    %245 = vector.extract_strided_slice %242 {offsets = [0, 0], sizes = [2, 256], strides = [1, 1]} : vector<2x512xf32> to vector<2x256xf32>
    %246 = arith.addf %244, %245 : vector<2x256xf32>
    %247 = vector.extract_strided_slice %246 {offsets = [0, 0], sizes = [2, 192], strides = [1, 1]} : vector<2x256xf32> to vector<2x192xf32>
    %248 = arith.negf %247 : vector<2x192xf32>
    %249 = math.exp %248 : vector<2x192xf32>
    %cst_39 = arith.constant 1.000000e+00 : f32
    %250 = vector.broadcast %cst_39 : f32 to vector<2x192xf32>
    %251 = arith.addf %250, %249 : vector<2x192xf32>
    %252 = arith.divf %250, %251 : vector<2x192xf32>
    %253 = vector.extract_strided_slice %246 {offsets = [0, 192], sizes = [2, 64], strides = [1, 1]} : vector<2x256xf32> to vector<2x64xf32>
    %254 = math.tanh %253 : vector<2x64xf32>
    %255 = vector.extract_strided_slice %252 {offsets = [0, 64], sizes = [2, 64], strides = [1, 1]} : vector<2x192xf32> to vector<2x64xf32>
    %256 = arith.mulf %255, %216 : vector<2x64xf32>
    %257 = vector.extract_strided_slice %252 {offsets = [0, 0], sizes = [2, 64], strides = [1, 1]} : vector<2x192xf32> to vector<2x64xf32>
    %258 = arith.mulf %257, %254 : vector<2x64xf32>
    %259 = arith.addf %256, %258 : vector<2x64xf32>
    %260 = vector.extract_strided_slice %252 {offsets = [0, 128], sizes = [2, 64], strides = [1, 1]} : vector<2x192xf32> to vector<2x64xf32>
    %261 = math.tanh %259 : vector<2x64xf32>
    %262 = arith.mulf %260, %261 : vector<2x64xf32>
    %263 = vector.extract_strided_slice %20 {offsets = [0, 2, 256], sizes = [2, 1, 256], strides = [1, 1, 1]} : vector<2x8x512xf32> to vector<2x1x256xf32>
    %264 = vector.shape_cast %263 : vector<2x1x256xf32> to vector<2x256xf32>
    %265 = vector.extract_strided_slice %242 {offsets = [0, 256], sizes = [2, 256], strides = [1, 1]} : vector<2x512xf32> to vector<2x256xf32>
    %266 = arith.addf %264, %265 : vector<2x256xf32>
    %267 = vector.extract_strided_slice %266 {offsets = [0, 0], sizes = [2, 192], strides = [1, 1]} : vector<2x256xf32> to vector<2x192xf32>
    %268 = arith.negf %267 : vector<2x192xf32>
    %269 = math.exp %268 : vector<2x192xf32>
    %cst_40 = arith.constant 1.000000e+00 : f32
    %270 = vector.broadcast %cst_40 : f32 to vector<2x192xf32>
    %271 = arith.addf %270, %269 : vector<2x192xf32>
    %272 = arith.divf %270, %271 : vector<2x192xf32>
    %273 = vector.extract_strided_slice %266 {offsets = [0, 192], sizes = [2, 64], strides = [1, 1]} : vector<2x256xf32> to vector<2x64xf32>
    %274 = math.tanh %273 : vector<2x64xf32>
    %275 = vector.extract_strided_slice %272 {offsets = [0, 64], sizes = [2, 64], strides = [1, 1]} : vector<2x192xf32> to vector<2x64xf32>
    %276 = arith.mulf %275, %236 : vector<2x64xf32>
    %277 = vector.extract_strided_slice %272 {offsets = [0, 0], sizes = [2, 64], strides = [1, 1]} : vector<2x192xf32> to vector<2x64xf32>
    %278 = arith.mulf %277, %274 : vector<2x64xf32>
    %279 = arith.addf %276, %278 : vector<2x64xf32>
    %280 = vector.extract_strided_slice %272 {offsets = [0, 128], sizes = [2, 64], strides = [1, 1]} : vector<2x192xf32> to vector<2x64xf32>
    %281 = math.tanh %279 : vector<2x64xf32>
    %282 = arith.mulf %280, %281 : vector<2x64xf32>
    %283 = tpu.concatenate %262, %282 in 1 : vector<2x64xf32>, vector<2x64xf32> -> vector<2x128xf32>
    %284 = arith.truncf %283 : vector<2x128xf32> to vector<2x128xbf16>
    %cst_41 = arith.constant dense<0.000000e+00> : vector<2x512xf32>
    %285 = tpu.matmul %284, %1, %cst_41 {dimension_numbers = #tpu.dot_dimension_numbers<[1], [0], [0], [1], [0, 0, 1, 1], [], []>} : vector<2x128xbf16>, vector<128x512xbf16>, vector<2x512xf32> -> vector<2x512xf32>
    %286 = vector.extract_strided_slice %20 {offsets = [0, 6, 0], sizes = [2, 1, 256], strides = [1, 1, 1]} : vector<2x8x512xf32> to vector<2x1x256xf32>
    %287 = vector.shape_cast %286 : vector<2x1x256xf32> to vector<2x256xf32>
    %288 = vector.extract_strided_slice %285 {offsets = [0, 0], sizes = [2, 256], strides = [1, 1]} : vector<2x512xf32> to vector<2x256xf32>
    %289 = arith.addf %287, %288 : vector<2x256xf32>
    %290 = vector.extract_strided_slice %289 {offsets = [0, 0], sizes = [2, 192], strides = [1, 1]} : vector<2x256xf32> to vector<2x192xf32>
    %291 = arith.negf %290 : vector<2x192xf32>
    %292 = math.exp %291 : vector<2x192xf32>
    %cst_42 = arith.constant 1.000000e+00 : f32
    %293 = vector.broadcast %cst_42 : f32 to vector<2x192xf32>
    %294 = arith.addf %293, %292 : vector<2x192xf32>
    %295 = arith.divf %293, %294 : vector<2x192xf32>
    %296 = vector.extract_strided_slice %289 {offsets = [0, 192], sizes = [2, 64], strides = [1, 1]} : vector<2x256xf32> to vector<2x64xf32>
    %297 = math.tanh %296 : vector<2x64xf32>
    %298 = vector.extract_strided_slice %295 {offsets = [0, 64], sizes = [2, 64], strides = [1, 1]} : vector<2x192xf32> to vector<2x64xf32>
    %299 = arith.mulf %298, %259 : vector<2x64xf32>
    %300 = vector.extract_strided_slice %295 {offsets = [0, 0], sizes = [2, 64], strides = [1, 1]} : vector<2x192xf32> to vector<2x64xf32>
    %301 = arith.mulf %300, %297 : vector<2x64xf32>
    %302 = arith.addf %299, %301 : vector<2x64xf32>
    %303 = vector.extract_strided_slice %295 {offsets = [0, 128], sizes = [2, 64], strides = [1, 1]} : vector<2x192xf32> to vector<2x64xf32>
    %304 = math.tanh %302 : vector<2x64xf32>
    %305 = arith.mulf %303, %304 : vector<2x64xf32>
    %306 = vector.extract_strided_slice %20 {offsets = [0, 1, 256], sizes = [2, 1, 256], strides = [1, 1, 1]} : vector<2x8x512xf32> to vector<2x1x256xf32>
    %307 = vector.shape_cast %306 : vector<2x1x256xf32> to vector<2x256xf32>
    %308 = vector.extract_strided_slice %285 {offsets = [0, 256], sizes = [2, 256], strides = [1, 1]} : vector<2x512xf32> to vector<2x256xf32>
    %309 = arith.addf %307, %308 : vector<2x256xf32>
    %310 = vector.extract_strided_slice %309 {offsets = [0, 0], sizes = [2, 192], strides = [1, 1]} : vector<2x256xf32> to vector<2x192xf32>
    %311 = arith.negf %310 : vector<2x192xf32>
    %312 = math.exp %311 : vector<2x192xf32>
    %cst_43 = arith.constant 1.000000e+00 : f32
    %313 = vector.broadcast %cst_43 : f32 to vector<2x192xf32>
    %314 = arith.addf %313, %312 : vector<2x192xf32>
    %315 = arith.divf %313, %314 : vector<2x192xf32>
    %316 = vector.extract_strided_slice %309 {offsets = [0, 192], sizes = [2, 64], strides = [1, 1]} : vector<2x256xf32> to vector<2x64xf32>
    %317 = math.tanh %316 : vector<2x64xf32>
    %318 = vector.extract_strided_slice %315 {offsets = [0, 64], sizes = [2, 64], strides = [1, 1]} : vector<2x192xf32> to vector<2x64xf32>
    %319 = arith.mulf %318, %279 : vector<2x64xf32>
    %320 = vector.extract_strided_slice %315 {offsets = [0, 0], sizes = [2, 64], strides = [1, 1]} : vector<2x192xf32> to vector<2x64xf32>
    %321 = arith.mulf %320, %317 : vector<2x64xf32>
    %322 = arith.addf %319, %321 : vector<2x64xf32>
    %323 = vector.extract_strided_slice %315 {offsets = [0, 128], sizes = [2, 64], strides = [1, 1]} : vector<2x192xf32> to vector<2x64xf32>
    %324 = math.tanh %322 : vector<2x64xf32>
    %325 = arith.mulf %323, %324 : vector<2x64xf32>
    %326 = tpu.concatenate %305, %325 in 1 : vector<2x64xf32>, vector<2x64xf32> -> vector<2x128xf32>
    %327 = arith.truncf %326 : vector<2x128xf32> to vector<2x128xbf16>
    %cst_44 = arith.constant dense<0.000000e+00> : vector<2x512xf32>
    %328 = tpu.matmul %327, %1, %cst_44 {dimension_numbers = #tpu.dot_dimension_numbers<[1], [0], [0], [1], [0, 0, 1, 1], [], []>} : vector<2x128xbf16>, vector<128x512xbf16>, vector<2x512xf32> -> vector<2x512xf32>
    %329 = vector.extract_strided_slice %20 {offsets = [0, 7, 0], sizes = [2, 1, 256], strides = [1, 1, 1]} : vector<2x8x512xf32> to vector<2x1x256xf32>
    %330 = vector.shape_cast %329 : vector<2x1x256xf32> to vector<2x256xf32>
    %331 = vector.extract_strided_slice %328 {offsets = [0, 0], sizes = [2, 256], strides = [1, 1]} : vector<2x512xf32> to vector<2x256xf32>
    %332 = arith.addf %330, %331 : vector<2x256xf32>
    %333 = vector.extract_strided_slice %332 {offsets = [0, 0], sizes = [2, 192], strides = [1, 1]} : vector<2x256xf32> to vector<2x192xf32>
    %334 = arith.negf %333 : vector<2x192xf32>
    %335 = math.exp %334 : vector<2x192xf32>
    %cst_45 = arith.constant 1.000000e+00 : f32
    %336 = vector.broadcast %cst_45 : f32 to vector<2x192xf32>
    %337 = arith.addf %336, %335 : vector<2x192xf32>
    %338 = arith.divf %336, %337 : vector<2x192xf32>
    %339 = vector.extract_strided_slice %332 {offsets = [0, 192], sizes = [2, 64], strides = [1, 1]} : vector<2x256xf32> to vector<2x64xf32>
    %340 = math.tanh %339 : vector<2x64xf32>
    %341 = vector.extract_strided_slice %338 {offsets = [0, 64], sizes = [2, 64], strides = [1, 1]} : vector<2x192xf32> to vector<2x64xf32>
    %342 = arith.mulf %341, %302 : vector<2x64xf32>
    %343 = vector.extract_strided_slice %338 {offsets = [0, 0], sizes = [2, 64], strides = [1, 1]} : vector<2x192xf32> to vector<2x64xf32>
    %344 = arith.mulf %343, %340 : vector<2x64xf32>
    %345 = arith.addf %342, %344 : vector<2x64xf32>
    %346 = vector.extract_strided_slice %338 {offsets = [0, 128], sizes = [2, 64], strides = [1, 1]} : vector<2x192xf32> to vector<2x64xf32>
    %347 = math.tanh %345 : vector<2x64xf32>
    %348 = arith.mulf %346, %347 : vector<2x64xf32>
    %349 = vector.extract_strided_slice %20 {offsets = [0, 0, 256], sizes = [2, 1, 256], strides = [1, 1, 1]} : vector<2x8x512xf32> to vector<2x1x256xf32>
    %350 = vector.shape_cast %349 : vector<2x1x256xf32> to vector<2x256xf32>
    %351 = vector.extract_strided_slice %328 {offsets = [0, 256], sizes = [2, 256], strides = [1, 1]} : vector<2x512xf32> to vector<2x256xf32>
    %352 = arith.addf %350, %351 : vector<2x256xf32>
    %353 = vector.extract_strided_slice %352 {offsets = [0, 0], sizes = [2, 192], strides = [1, 1]} : vector<2x256xf32> to vector<2x192xf32>
    %354 = arith.negf %353 : vector<2x192xf32>
    %355 = math.exp %354 : vector<2x192xf32>
    %cst_46 = arith.constant 1.000000e+00 : f32
    %356 = vector.broadcast %cst_46 : f32 to vector<2x192xf32>
    %357 = arith.addf %356, %355 : vector<2x192xf32>
    %358 = arith.divf %356, %357 : vector<2x192xf32>
    %359 = vector.extract_strided_slice %352 {offsets = [0, 192], sizes = [2, 64], strides = [1, 1]} : vector<2x256xf32> to vector<2x64xf32>
    %360 = math.tanh %359 : vector<2x64xf32>
    %361 = vector.extract_strided_slice %358 {offsets = [0, 64], sizes = [2, 64], strides = [1, 1]} : vector<2x192xf32> to vector<2x64xf32>
    %362 = arith.mulf %361, %322 : vector<2x64xf32>
    %363 = vector.extract_strided_slice %358 {offsets = [0, 0], sizes = [2, 64], strides = [1, 1]} : vector<2x192xf32> to vector<2x64xf32>
    %364 = arith.mulf %363, %360 : vector<2x64xf32>
    %365 = arith.addf %362, %364 : vector<2x64xf32>
    %366 = vector.extract_strided_slice %358 {offsets = [0, 128], sizes = [2, 64], strides = [1, 1]} : vector<2x192xf32> to vector<2x64xf32>
    %367 = math.tanh %365 : vector<2x64xf32>
    %368 = arith.mulf %366, %367 : vector<2x64xf32>
    %369 = vector.shape_cast %47 : vector<2x64xf32> to vector<2x1x64xf32>
    %370 = vector.shape_cast %90 : vector<2x64xf32> to vector<2x1x64xf32>
    %371 = vector.shape_cast %133 : vector<2x64xf32> to vector<2x1x64xf32>
    %372 = vector.shape_cast %176 : vector<2x64xf32> to vector<2x1x64xf32>
    %373 = vector.shape_cast %219 : vector<2x64xf32> to vector<2x1x64xf32>
    %374 = vector.shape_cast %262 : vector<2x64xf32> to vector<2x1x64xf32>
    %375 = vector.shape_cast %305 : vector<2x64xf32> to vector<2x1x64xf32>
    %376 = vector.shape_cast %348 : vector<2x64xf32> to vector<2x1x64xf32>
    %377 = tpu.concatenate %369, %370, %371, %372, %373, %374, %375, %376 in 1 : vector<2x1x64xf32>, vector<2x1x64xf32>, vector<2x1x64xf32>, vector<2x1x64xf32>, vector<2x1x64xf32>, vector<2x1x64xf32>, vector<2x1x64xf32>, vector<2x1x64xf32> -> vector<2x8x64xf32>
    %378 = vector.shape_cast %368 : vector<2x64xf32> to vector<2x1x64xf32>
    %379 = vector.shape_cast %325 : vector<2x64xf32> to vector<2x1x64xf32>
    %380 = vector.shape_cast %282 : vector<2x64xf32> to vector<2x1x64xf32>
    %381 = vector.shape_cast %239 : vector<2x64xf32> to vector<2x1x64xf32>
    %382 = vector.shape_cast %196 : vector<2x64xf32> to vector<2x1x64xf32>
    %383 = vector.shape_cast %153 : vector<2x64xf32> to vector<2x1x64xf32>
    %384 = vector.shape_cast %110 : vector<2x64xf32> to vector<2x1x64xf32>
    %385 = vector.shape_cast %67 : vector<2x64xf32> to vector<2x1x64xf32>
    %386 = tpu.concatenate %378, %379, %380, %381, %382, %383, %384, %385 in 1 : vector<2x1x64xf32>, vector<2x1x64xf32>, vector<2x1x64xf32>, vector<2x1x64xf32>, vector<2x1x64xf32>, vector<2x1x64xf32>, vector<2x1x64xf32>, vector<2x1x64xf32> -> vector<2x8x64xf32>
    %387 = tpu.concatenate %377, %386 in 2 : vector<2x8x64xf32>, vector<2x8x64xf32> -> vector<2x8x128xf32>
    %388 = vector.extract_strided_slice %387 {offsets = [0, 7, 0], sizes = [2, 1, 128], strides = [1, 1, 1]} : vector<2x8x128xf32> to vector<2x1x128xf32>
    %389 = vector.shape_cast %388 : vector<2x1x128xf32> to vector<2x128xf32>
    %390 = arith.truncf %389 : vector<2x128xf32> to vector<2x128xbf16>
    %cst_47 = arith.constant dense<0.000000e+00> : vector<2x128xf32>
    %391 = tpu.matmul %390, %6, %cst_47 {dimension_numbers = #tpu.dot_dimension_numbers<[1], [0], [0], [1], [0, 0, 1, 1], [], []>} : vector<2x128xbf16>, vector<128x128xbf16>, vector<2x128xf32> -> vector<2x128xf32>
    %392 = vector.broadcast %12 : vector<1x128xf32> to vector<2x128xf32>
    %393 = arith.addf %391, %392 : vector<2x128xf32>
    %c0_48 = arith.constant 0 : index
    %c0_49 = arith.constant 0 : index
    %394 = vector.load %arg3[%c0_48, %c0_49] : memref<2x128xf32, #tpu.memory_space<vmem>>, vector<2x128xf32>
    tpu.vector_store %arg3[%c0_48, %c0_49], %393 {strides = array<i32>} : memref<2x128xf32, #tpu.memory_space<vmem>>, vector<2x128xf32>,
    %395 = vector.shape_cast %11 : vector<1x128xf32> to vector<1x1x128xf32>
    %396 = vector.broadcast %395 : vector<1x1x128xf32> to vector<2x8x128xf32>
    %397 = arith.mulf %387, %396 : vector<2x8x128xf32>
    %cst_50 = arith.constant dense<0.000000e+00> : vector<2x8xf32>
    %398 = vector.multi_reduction <add>, %397, %cst_50 [2] : vector<2x8x128xf32> to vector<2x8xf32>
    %cst_51 = arith.constant dense<0xFF800000> : vector<2xf32>
    %399 = vector.multi_reduction <maximumf>, %398, %cst_51 [1] : vector<2x8xf32> to vector<2xf32>
    %400 = vector.shape_cast %399 : vector<2xf32> to vector<2x1xf32>
    %401 = vector.broadcast %400 : vector<2x1xf32> to vector<2x8xf32>
    %402 = arith.subf %398, %401 : vector<2x8xf32>
    %403 = math.exp %402 : vector<2x8xf32>
    %cst_52 = arith.constant dense<0.000000e+00> : vector<2xf32>
    %404 = vector.multi_reduction <add>, %403, %cst_52 [1] : vector<2x8xf32> to vector<2xf32>
    %405 = vector.shape_cast %404 : vector<2xf32> to vector<2x1xf32>
    %406 = tpu.reciprocal %405 {approx = true} : vector<2x1xf32> -> vector<2x1xf32>
    %407 = vector.broadcast %406 : vector<2x1xf32> to vector<2x8xf32>
    %408 = arith.mulf %403, %407 : vector<2x8xf32>
    %409 = vector.shape_cast %408 : vector<2x8xf32> to vector<2x8x1xf32>
    %410 = vector.broadcast %409 : vector<2x8x1xf32> to vector<2x8x128xf32>
    %411 = arith.mulf %410, %387 : vector<2x8x128xf32>
    %cst_53 = arith.constant dense<0.000000e+00> : vector<2x128xf32>
    %412 = vector.multi_reduction <add>, %411, %cst_53 [1] : vector<2x8x128xf32> to vector<2x128xf32>
    %413 = vector.shape_cast %387 : vector<2x8x128xf32> to vector<16x128xf32>
    %414 = arith.truncf %413 : vector<16x128xf32> to vector<16x128xbf16>
    %cst_54 = arith.constant dense<0.000000e+00> : vector<16x64xf32>
    %415 = tpu.matmul %414, %4, %cst_54 {dimension_numbers = #tpu.dot_dimension_numbers<[1], [0], [0], [1], [0, 0, 1, 1], [], []>} : vector<16x128xbf16>, vector<128x64xbf16>, vector<16x64xf32> -> vector<16x64xf32>
    %416 = vector.shape_cast %415 : vector<16x64xf32> to vector<2x8x64xf32>
    %417 = arith.truncf %412 : vector<2x128xf32> to vector<2x128xbf16>
    %cst_55 = arith.constant dense<0.000000e+00> : vector<2x64xf32>
    %418 = tpu.matmul %417, %5, %cst_55 {dimension_numbers = #tpu.dot_dimension_numbers<[1], [0], [0], [1], [0, 0, 1, 1], [], []>} : vector<2x128xbf16>, vector<128x64xbf16>, vector<2x64xf32> -> vector<2x64xf32>
    %419 = vector.broadcast %10 : vector<1x64xf32> to vector<2x64xf32>
    %420 = arith.addf %418, %419 : vector<2x64xf32>
    %421 = vector.shape_cast %420 : vector<2x64xf32> to vector<2x1x64xf32>
    %422 = vector.broadcast %421 : vector<2x1x64xf32> to vector<2x8x64xf32>
    %423 = arith.addf %416, %422 : vector<2x8x64xf32>
    %cst_56 = arith.constant 0.000000e+00 : f32
    %424 = vector.broadcast %cst_56 : f32 to vector<2x8x64xf32>
    %425 = arith.maximumf %423, %424 : vector<2x8x64xf32>
    %426 = vector.shape_cast %425 : vector<2x8x64xf32> to vector<16x64xf32>
    %427 = arith.truncf %426 : vector<16x64xf32> to vector<16x64xbf16>
    %cst_57 = arith.constant dense<0.000000e+00> : vector<16x512xf32>
    %428 = tpu.matmul %427, %2, %cst_57 {dimension_numbers = #tpu.dot_dimension_numbers<[1], [0], [0], [1], [0, 0, 1, 1], [], []>} : vector<16x64xbf16>, vector<64x512xbf16>, vector<16x512xf32> -> vector<16x512xf32>
    %429 = vector.broadcast %9 : vector<1x512xf32> to vector<16x512xf32>
    %430 = arith.addf %428, %429 : vector<16x512xf32>
    %431 = vector.shape_cast %430 : vector<16x512xf32> to vector<2x8x512xf32>
    %432 = tpu.concatenate %348, %368 in 1 : vector<2x64xf32>, vector<2x64xf32> -> vector<2x128xf32>
    %433 = arith.truncf %432 : vector<2x128xf32> to vector<2x128xbf16>
    %cst_58 = arith.constant dense<0.000000e+00> : vector<2x512xf32>
    %434 = tpu.matmul %433, %3, %cst_58 {dimension_numbers = #tpu.dot_dimension_numbers<[1], [0], [0], [1], [0, 0, 1, 1], [], []>} : vector<2x128xbf16>, vector<128x512xbf16>, vector<2x512xf32> -> vector<2x512xf32>
    %435 = vector.extract_strided_slice %431 {offsets = [0, 0, 0], sizes = [2, 1, 512], strides = [1, 1, 1]} : vector<2x8x512xf32> to vector<2x1x512xf32>
    %436 = vector.shape_cast %435 : vector<2x1x512xf32> to vector<2x512xf32>
    %437 = arith.addf %436, %434 : vector<2x512xf32>
    %438 = vector.extract_strided_slice %437 {offsets = [0, 0], sizes = [2, 256], strides = [1, 1]} : vector<2x512xf32> to vector<2x256xf32>
    %439 = vector.extract_strided_slice %438 {offsets = [0, 0], sizes = [2, 192], strides = [1, 1]} : vector<2x256xf32> to vector<2x192xf32>
    %440 = arith.negf %439 : vector<2x192xf32>
    %441 = math.exp %440 : vector<2x192xf32>
    %cst_59 = arith.constant 1.000000e+00 : f32
    %442 = vector.broadcast %cst_59 : f32 to vector<2x192xf32>
    %443 = arith.addf %442, %441 : vector<2x192xf32>
    %444 = arith.divf %442, %443 : vector<2x192xf32>
    %445 = vector.extract_strided_slice %438 {offsets = [0, 192], sizes = [2, 64], strides = [1, 1]} : vector<2x256xf32> to vector<2x64xf32>
    %446 = math.tanh %445 : vector<2x64xf32>
    %447 = vector.extract_strided_slice %444 {offsets = [0, 64], sizes = [2, 64], strides = [1, 1]} : vector<2x192xf32> to vector<2x64xf32>
    %448 = arith.mulf %447, %345 : vector<2x64xf32>
    %449 = vector.extract_strided_slice %444 {offsets = [0, 0], sizes = [2, 64], strides = [1, 1]} : vector<2x192xf32> to vector<2x64xf32>
    %450 = arith.mulf %449, %446 : vector<2x64xf32>
    %451 = arith.addf %448, %450 : vector<2x64xf32>
    %452 = vector.extract_strided_slice %444 {offsets = [0, 128], sizes = [2, 64], strides = [1, 1]} : vector<2x192xf32> to vector<2x64xf32>
    %453 = math.tanh %451 : vector<2x64xf32>
    %454 = arith.mulf %452, %453 : vector<2x64xf32>
    %455 = vector.extract_strided_slice %437 {offsets = [0, 256], sizes = [2, 256], strides = [1, 1]} : vector<2x512xf32> to vector<2x256xf32>
    %456 = vector.extract_strided_slice %455 {offsets = [0, 0], sizes = [2, 192], strides = [1, 1]} : vector<2x256xf32> to vector<2x192xf32>
    %457 = arith.negf %456 : vector<2x192xf32>
    %458 = math.exp %457 : vector<2x192xf32>
    %cst_60 = arith.constant 1.000000e+00 : f32
    %459 = vector.broadcast %cst_60 : f32 to vector<2x192xf32>
    %460 = arith.addf %459, %458 : vector<2x192xf32>
    %461 = arith.divf %459, %460 : vector<2x192xf32>
    %462 = vector.extract_strided_slice %455 {offsets = [0, 192], sizes = [2, 64], strides = [1, 1]} : vector<2x256xf32> to vector<2x64xf32>
    %463 = math.tanh %462 : vector<2x64xf32>
    %464 = vector.extract_strided_slice %461 {offsets = [0, 64], sizes = [2, 64], strides = [1, 1]} : vector<2x192xf32> to vector<2x64xf32>
    %465 = arith.mulf %464, %365 : vector<2x64xf32>
    %466 = vector.extract_strided_slice %461 {offsets = [0, 0], sizes = [2, 64], strides = [1, 1]} : vector<2x192xf32> to vector<2x64xf32>
    %467 = arith.mulf %466, %463 : vector<2x64xf32>
    %468 = arith.addf %465, %467 : vector<2x64xf32>
    %469 = vector.extract_strided_slice %461 {offsets = [0, 128], sizes = [2, 64], strides = [1, 1]} : vector<2x192xf32> to vector<2x64xf32>
    %470 = math.tanh %468 : vector<2x64xf32>
    %471 = arith.mulf %469, %470 : vector<2x64xf32>
    %472 = tpu.concatenate %454, %471 in 1 : vector<2x64xf32>, vector<2x64xf32> -> vector<2x128xf32>
    %473 = tpu.concatenate %454, %471 in 1 : vector<2x64xf32>, vector<2x64xf32> -> vector<2x128xf32>
    %474 = arith.truncf %473 : vector<2x128xf32> to vector<2x128xbf16>
    %cst_61 = arith.constant dense<0.000000e+00> : vector<2x512xf32>
    %475 = tpu.matmul %474, %3, %cst_61 {dimension_numbers = #tpu.dot_dimension_numbers<[1], [0], [0], [1], [0, 0, 1, 1], [], []>} : vector<2x128xbf16>, vector<128x512xbf16>, vector<2x512xf32> -> vector<2x512xf32>
    %476 = vector.extract_strided_slice %431 {offsets = [0, 1, 0], sizes = [2, 1, 512], strides = [1, 1, 1]} : vector<2x8x512xf32> to vector<2x1x512xf32>
    %477 = vector.shape_cast %476 : vector<2x1x512xf32> to vector<2x512xf32>
    %478 = arith.addf %477, %475 : vector<2x512xf32>
    %479 = vector.extract_strided_slice %478 {offsets = [0, 0], sizes = [2, 256], strides = [1, 1]} : vector<2x512xf32> to vector<2x256xf32>
    %480 = vector.extract_strided_slice %479 {offsets = [0, 0], sizes = [2, 192], strides = [1, 1]} : vector<2x256xf32> to vector<2x192xf32>
    %481 = arith.negf %480 : vector<2x192xf32>
    %482 = math.exp %481 : vector<2x192xf32>
    %cst_62 = arith.constant 1.000000e+00 : f32
    %483 = vector.broadcast %cst_62 : f32 to vector<2x192xf32>
    %484 = arith.addf %483, %482 : vector<2x192xf32>
    %485 = arith.divf %483, %484 : vector<2x192xf32>
    %486 = vector.extract_strided_slice %479 {offsets = [0, 192], sizes = [2, 64], strides = [1, 1]} : vector<2x256xf32> to vector<2x64xf32>
    %487 = math.tanh %486 : vector<2x64xf32>
    %488 = vector.extract_strided_slice %485 {offsets = [0, 64], sizes = [2, 64], strides = [1, 1]} : vector<2x192xf32> to vector<2x64xf32>
    %489 = arith.mulf %488, %451 : vector<2x64xf32>
    %490 = vector.extract_strided_slice %485 {offsets = [0, 0], sizes = [2, 64], strides = [1, 1]} : vector<2x192xf32> to vector<2x64xf32>
    %491 = arith.mulf %490, %487 : vector<2x64xf32>
    %492 = arith.addf %489, %491 : vector<2x64xf32>
    %493 = vector.extract_strided_slice %485 {offsets = [0, 128], sizes = [2, 64], strides = [1, 1]} : vector<2x192xf32> to vector<2x64xf32>
    %494 = math.tanh %492 : vector<2x64xf32>
    %495 = arith.mulf %493, %494 : vector<2x64xf32>
    %496 = vector.extract_strided_slice %478 {offsets = [0, 256], sizes = [2, 256], strides = [1, 1]} : vector<2x512xf32> to vector<2x256xf32>
    %497 = vector.extract_strided_slice %496 {offsets = [0, 0], sizes = [2, 192], strides = [1, 1]} : vector<2x256xf32> to vector<2x192xf32>
    %498 = arith.negf %497 : vector<2x192xf32>
    %499 = math.exp %498 : vector<2x192xf32>
    %cst_63 = arith.constant 1.000000e+00 : f32
    %500 = vector.broadcast %cst_63 : f32 to vector<2x192xf32>
    %501 = arith.addf %500, %499 : vector<2x192xf32>
    %502 = arith.divf %500, %501 : vector<2x192xf32>
    %503 = vector.extract_strided_slice %496 {offsets = [0, 192], sizes = [2, 64], strides = [1, 1]} : vector<2x256xf32> to vector<2x64xf32>
    %504 = math.tanh %503 : vector<2x64xf32>
    %505 = vector.extract_strided_slice %502 {offsets = [0, 64], sizes = [2, 64], strides = [1, 1]} : vector<2x192xf32> to vector<2x64xf32>
    %506 = arith.mulf %505, %468 : vector<2x64xf32>
    %507 = vector.extract_strided_slice %502 {offsets = [0, 0], sizes = [2, 64], strides = [1, 1]} : vector<2x192xf32> to vector<2x64xf32>
    %508 = arith.mulf %507, %504 : vector<2x64xf32>
    %509 = arith.addf %506, %508 : vector<2x64xf32>
    %510 = vector.extract_strided_slice %502 {offsets = [0, 128], sizes = [2, 64], strides = [1, 1]} : vector<2x192xf32> to vector<2x64xf32>
    %511 = math.tanh %509 : vector<2x64xf32>
    %512 = arith.mulf %510, %511 : vector<2x64xf32>
    %513 = tpu.concatenate %495, %512 in 1 : vector<2x64xf32>, vector<2x64xf32> -> vector<2x128xf32>
    %514 = tpu.concatenate %495, %512 in 1 : vector<2x64xf32>, vector<2x64xf32> -> vector<2x128xf32>
    %515 = arith.truncf %514 : vector<2x128xf32> to vector<2x128xbf16>
    %cst_64 = arith.constant dense<0.000000e+00> : vector<2x512xf32>
    %516 = tpu.matmul %515, %3, %cst_64 {dimension_numbers = #tpu.dot_dimension_numbers<[1], [0], [0], [1], [0, 0, 1, 1], [], []>} : vector<2x128xbf16>, vector<128x512xbf16>, vector<2x512xf32> -> vector<2x512xf32>
    %517 = vector.extract_strided_slice %431 {offsets = [0, 2, 0], sizes = [2, 1, 512], strides = [1, 1, 1]} : vector<2x8x512xf32> to vector<2x1x512xf32>
    %518 = vector.shape_cast %517 : vector<2x1x512xf32> to vector<2x512xf32>
    %519 = arith.addf %518, %516 : vector<2x512xf32>
    %520 = vector.extract_strided_slice %519 {offsets = [0, 0], sizes = [2, 256], strides = [1, 1]} : vector<2x512xf32> to vector<2x256xf32>
    %521 = vector.extract_strided_slice %520 {offsets = [0, 0], sizes = [2, 192], strides = [1, 1]} : vector<2x256xf32> to vector<2x192xf32>
    %522 = arith.negf %521 : vector<2x192xf32>
    %523 = math.exp %522 : vector<2x192xf32>
    %cst_65 = arith.constant 1.000000e+00 : f32
    %524 = vector.broadcast %cst_65 : f32 to vector<2x192xf32>
    %525 = arith.addf %524, %523 : vector<2x192xf32>
    %526 = arith.divf %524, %525 : vector<2x192xf32>
    %527 = vector.extract_strided_slice %520 {offsets = [0, 192], sizes = [2, 64], strides = [1, 1]} : vector<2x256xf32> to vector<2x64xf32>
    %528 = math.tanh %527 : vector<2x64xf32>
    %529 = vector.extract_strided_slice %526 {offsets = [0, 64], sizes = [2, 64], strides = [1, 1]} : vector<2x192xf32> to vector<2x64xf32>
    %530 = arith.mulf %529, %492 : vector<2x64xf32>
    %531 = vector.extract_strided_slice %526 {offsets = [0, 0], sizes = [2, 64], strides = [1, 1]} : vector<2x192xf32> to vector<2x64xf32>
    %532 = arith.mulf %531, %528 : vector<2x64xf32>
    %533 = arith.addf %530, %532 : vector<2x64xf32>
    %534 = vector.extract_strided_slice %526 {offsets = [0, 128], sizes = [2, 64], strides = [1, 1]} : vector<2x192xf32> to vector<2x64xf32>
    %535 = math.tanh %533 : vector<2x64xf32>
    %536 = arith.mulf %534, %535 : vector<2x64xf32>
    %537 = vector.extract_strided_slice %519 {offsets = [0, 256], sizes = [2, 256], strides = [1, 1]} : vector<2x512xf32> to vector<2x256xf32>
    %538 = vector.extract_strided_slice %537 {offsets = [0, 0], sizes = [2, 192], strides = [1, 1]} : vector<2x256xf32> to vector<2x192xf32>
    %539 = arith.negf %538 : vector<2x192xf32>
    %540 = math.exp %539 : vector<2x192xf32>
    %cst_66 = arith.constant 1.000000e+00 : f32
    %541 = vector.broadcast %cst_66 : f32 to vector<2x192xf32>
    %542 = arith.addf %541, %540 : vector<2x192xf32>
    %543 = arith.divf %541, %542 : vector<2x192xf32>
    %544 = vector.extract_strided_slice %537 {offsets = [0, 192], sizes = [2, 64], strides = [1, 1]} : vector<2x256xf32> to vector<2x64xf32>
    %545 = math.tanh %544 : vector<2x64xf32>
    %546 = vector.extract_strided_slice %543 {offsets = [0, 64], sizes = [2, 64], strides = [1, 1]} : vector<2x192xf32> to vector<2x64xf32>
    %547 = arith.mulf %546, %509 : vector<2x64xf32>
    %548 = vector.extract_strided_slice %543 {offsets = [0, 0], sizes = [2, 64], strides = [1, 1]} : vector<2x192xf32> to vector<2x64xf32>
    %549 = arith.mulf %548, %545 : vector<2x64xf32>
    %550 = arith.addf %547, %549 : vector<2x64xf32>
    %551 = vector.extract_strided_slice %543 {offsets = [0, 128], sizes = [2, 64], strides = [1, 1]} : vector<2x192xf32> to vector<2x64xf32>
    %552 = math.tanh %550 : vector<2x64xf32>
    %553 = arith.mulf %551, %552 : vector<2x64xf32>
    %554 = tpu.concatenate %536, %553 in 1 : vector<2x64xf32>, vector<2x64xf32> -> vector<2x128xf32>
    %555 = tpu.concatenate %536, %553 in 1 : vector<2x64xf32>, vector<2x64xf32> -> vector<2x128xf32>
    %556 = arith.truncf %555 : vector<2x128xf32> to vector<2x128xbf16>
    %cst_67 = arith.constant dense<0.000000e+00> : vector<2x512xf32>
    %557 = tpu.matmul %556, %3, %cst_67 {dimension_numbers = #tpu.dot_dimension_numbers<[1], [0], [0], [1], [0, 0, 1, 1], [], []>} : vector<2x128xbf16>, vector<128x512xbf16>, vector<2x512xf32> -> vector<2x512xf32>
    %558 = vector.extract_strided_slice %431 {offsets = [0, 3, 0], sizes = [2, 1, 512], strides = [1, 1, 1]} : vector<2x8x512xf32> to vector<2x1x512xf32>
    %559 = vector.shape_cast %558 : vector<2x1x512xf32> to vector<2x512xf32>
    %560 = arith.addf %559, %557 : vector<2x512xf32>
    %561 = vector.extract_strided_slice %560 {offsets = [0, 0], sizes = [2, 256], strides = [1, 1]} : vector<2x512xf32> to vector<2x256xf32>
    %562 = vector.extract_strided_slice %561 {offsets = [0, 0], sizes = [2, 192], strides = [1, 1]} : vector<2x256xf32> to vector<2x192xf32>
    %563 = arith.negf %562 : vector<2x192xf32>
    %564 = math.exp %563 : vector<2x192xf32>
    %cst_68 = arith.constant 1.000000e+00 : f32
    %565 = vector.broadcast %cst_68 : f32 to vector<2x192xf32>
    %566 = arith.addf %565, %564 : vector<2x192xf32>
    %567 = arith.divf %565, %566 : vector<2x192xf32>
    %568 = vector.extract_strided_slice %561 {offsets = [0, 192], sizes = [2, 64], strides = [1, 1]} : vector<2x256xf32> to vector<2x64xf32>
    %569 = math.tanh %568 : vector<2x64xf32>
    %570 = vector.extract_strided_slice %567 {offsets = [0, 64], sizes = [2, 64], strides = [1, 1]} : vector<2x192xf32> to vector<2x64xf32>
    %571 = arith.mulf %570, %533 : vector<2x64xf32>
    %572 = vector.extract_strided_slice %567 {offsets = [0, 0], sizes = [2, 64], strides = [1, 1]} : vector<2x192xf32> to vector<2x64xf32>
    %573 = arith.mulf %572, %569 : vector<2x64xf32>
    %574 = arith.addf %571, %573 : vector<2x64xf32>
    %575 = vector.extract_strided_slice %567 {offsets = [0, 128], sizes = [2, 64], strides = [1, 1]} : vector<2x192xf32> to vector<2x64xf32>
    %576 = math.tanh %574 : vector<2x64xf32>
    %577 = arith.mulf %575, %576 : vector<2x64xf32>
    %578 = vector.extract_strided_slice %560 {offsets = [0, 256], sizes = [2, 256], strides = [1, 1]} : vector<2x512xf32> to vector<2x256xf32>
    %579 = vector.extract_strided_slice %578 {offsets = [0, 0], sizes = [2, 192], strides = [1, 1]} : vector<2x256xf32> to vector<2x192xf32>
    %580 = arith.negf %579 : vector<2x192xf32>
    %581 = math.exp %580 : vector<2x192xf32>
    %cst_69 = arith.constant 1.000000e+00 : f32
    %582 = vector.broadcast %cst_69 : f32 to vector<2x192xf32>
    %583 = arith.addf %582, %581 : vector<2x192xf32>
    %584 = arith.divf %582, %583 : vector<2x192xf32>
    %585 = vector.extract_strided_slice %578 {offsets = [0, 192], sizes = [2, 64], strides = [1, 1]} : vector<2x256xf32> to vector<2x64xf32>
    %586 = math.tanh %585 : vector<2x64xf32>
    %587 = vector.extract_strided_slice %584 {offsets = [0, 64], sizes = [2, 64], strides = [1, 1]} : vector<2x192xf32> to vector<2x64xf32>
    %588 = arith.mulf %587, %550 : vector<2x64xf32>
    %589 = vector.extract_strided_slice %584 {offsets = [0, 0], sizes = [2, 64], strides = [1, 1]} : vector<2x192xf32> to vector<2x64xf32>
    %590 = arith.mulf %589, %586 : vector<2x64xf32>
    %591 = arith.addf %588, %590 : vector<2x64xf32>
    %592 = vector.extract_strided_slice %584 {offsets = [0, 128], sizes = [2, 64], strides = [1, 1]} : vector<2x192xf32> to vector<2x64xf32>
    %593 = math.tanh %591 : vector<2x64xf32>
    %594 = arith.mulf %592, %593 : vector<2x64xf32>
    %595 = tpu.concatenate %577, %594 in 1 : vector<2x64xf32>, vector<2x64xf32> -> vector<2x128xf32>
    %596 = tpu.concatenate %577, %594 in 1 : vector<2x64xf32>, vector<2x64xf32> -> vector<2x128xf32>
    %597 = arith.truncf %596 : vector<2x128xf32> to vector<2x128xbf16>
    %cst_70 = arith.constant dense<0.000000e+00> : vector<2x512xf32>
    %598 = tpu.matmul %597, %3, %cst_70 {dimension_numbers = #tpu.dot_dimension_numbers<[1], [0], [0], [1], [0, 0, 1, 1], [], []>} : vector<2x128xbf16>, vector<128x512xbf16>, vector<2x512xf32> -> vector<2x512xf32>
    %599 = vector.extract_strided_slice %431 {offsets = [0, 4, 0], sizes = [2, 1, 512], strides = [1, 1, 1]} : vector<2x8x512xf32> to vector<2x1x512xf32>
    %600 = vector.shape_cast %599 : vector<2x1x512xf32> to vector<2x512xf32>
    %601 = arith.addf %600, %598 : vector<2x512xf32>
    %602 = vector.extract_strided_slice %601 {offsets = [0, 0], sizes = [2, 256], strides = [1, 1]} : vector<2x512xf32> to vector<2x256xf32>
    %603 = vector.extract_strided_slice %602 {offsets = [0, 0], sizes = [2, 192], strides = [1, 1]} : vector<2x256xf32> to vector<2x192xf32>
    %604 = arith.negf %603 : vector<2x192xf32>
    %605 = math.exp %604 : vector<2x192xf32>
    %cst_71 = arith.constant 1.000000e+00 : f32
    %606 = vector.broadcast %cst_71 : f32 to vector<2x192xf32>
    %607 = arith.addf %606, %605 : vector<2x192xf32>
    %608 = arith.divf %606, %607 : vector<2x192xf32>
    %609 = vector.extract_strided_slice %602 {offsets = [0, 192], sizes = [2, 64], strides = [1, 1]} : vector<2x256xf32> to vector<2x64xf32>
    %610 = math.tanh %609 : vector<2x64xf32>
    %611 = vector.extract_strided_slice %608 {offsets = [0, 64], sizes = [2, 64], strides = [1, 1]} : vector<2x192xf32> to vector<2x64xf32>
    %612 = arith.mulf %611, %574 : vector<2x64xf32>
    %613 = vector.extract_strided_slice %608 {offsets = [0, 0], sizes = [2, 64], strides = [1, 1]} : vector<2x192xf32> to vector<2x64xf32>
    %614 = arith.mulf %613, %610 : vector<2x64xf32>
    %615 = arith.addf %612, %614 : vector<2x64xf32>
    %616 = vector.extract_strided_slice %608 {offsets = [0, 128], sizes = [2, 64], strides = [1, 1]} : vector<2x192xf32> to vector<2x64xf32>
    %617 = math.tanh %615 : vector<2x64xf32>
    %618 = arith.mulf %616, %617 : vector<2x64xf32>
    %619 = vector.extract_strided_slice %601 {offsets = [0, 256], sizes = [2, 256], strides = [1, 1]} : vector<2x512xf32> to vector<2x256xf32>
    %620 = vector.extract_strided_slice %619 {offsets = [0, 0], sizes = [2, 192], strides = [1, 1]} : vector<2x256xf32> to vector<2x192xf32>
    %621 = arith.negf %620 : vector<2x192xf32>
    %622 = math.exp %621 : vector<2x192xf32>
    %cst_72 = arith.constant 1.000000e+00 : f32
    %623 = vector.broadcast %cst_72 : f32 to vector<2x192xf32>
    %624 = arith.addf %623, %622 : vector<2x192xf32>
    %625 = arith.divf %623, %624 : vector<2x192xf32>
    %626 = vector.extract_strided_slice %619 {offsets = [0, 192], sizes = [2, 64], strides = [1, 1]} : vector<2x256xf32> to vector<2x64xf32>
    %627 = math.tanh %626 : vector<2x64xf32>
    %628 = vector.extract_strided_slice %625 {offsets = [0, 64], sizes = [2, 64], strides = [1, 1]} : vector<2x192xf32> to vector<2x64xf32>
    %629 = arith.mulf %628, %591 : vector<2x64xf32>
    %630 = vector.extract_strided_slice %625 {offsets = [0, 0], sizes = [2, 64], strides = [1, 1]} : vector<2x192xf32> to vector<2x64xf32>
    %631 = arith.mulf %630, %627 : vector<2x64xf32>
    %632 = arith.addf %629, %631 : vector<2x64xf32>
    %633 = vector.extract_strided_slice %625 {offsets = [0, 128], sizes = [2, 64], strides = [1, 1]} : vector<2x192xf32> to vector<2x64xf32>
    %634 = math.tanh %632 : vector<2x64xf32>
    %635 = arith.mulf %633, %634 : vector<2x64xf32>
    %636 = tpu.concatenate %618, %635 in 1 : vector<2x64xf32>, vector<2x64xf32> -> vector<2x128xf32>
    %637 = tpu.concatenate %618, %635 in 1 : vector<2x64xf32>, vector<2x64xf32> -> vector<2x128xf32>
    %638 = arith.truncf %637 : vector<2x128xf32> to vector<2x128xbf16>
    %cst_73 = arith.constant dense<0.000000e+00> : vector<2x512xf32>
    %639 = tpu.matmul %638, %3, %cst_73 {dimension_numbers = #tpu.dot_dimension_numbers<[1], [0], [0], [1], [0, 0, 1, 1], [], []>} : vector<2x128xbf16>, vector<128x512xbf16>, vector<2x512xf32> -> vector<2x512xf32>
    %640 = vector.extract_strided_slice %431 {offsets = [0, 5, 0], sizes = [2, 1, 512], strides = [1, 1, 1]} : vector<2x8x512xf32> to vector<2x1x512xf32>
    %641 = vector.shape_cast %640 : vector<2x1x512xf32> to vector<2x512xf32>
    %642 = arith.addf %641, %639 : vector<2x512xf32>
    %643 = vector.extract_strided_slice %642 {offsets = [0, 0], sizes = [2, 256], strides = [1, 1]} : vector<2x512xf32> to vector<2x256xf32>
    %644 = vector.extract_strided_slice %643 {offsets = [0, 0], sizes = [2, 192], strides = [1, 1]} : vector<2x256xf32> to vector<2x192xf32>
    %645 = arith.negf %644 : vector<2x192xf32>
    %646 = math.exp %645 : vector<2x192xf32>
    %cst_74 = arith.constant 1.000000e+00 : f32
    %647 = vector.broadcast %cst_74 : f32 to vector<2x192xf32>
    %648 = arith.addf %647, %646 : vector<2x192xf32>
    %649 = arith.divf %647, %648 : vector<2x192xf32>
    %650 = vector.extract_strided_slice %643 {offsets = [0, 192], sizes = [2, 64], strides = [1, 1]} : vector<2x256xf32> to vector<2x64xf32>
    %651 = math.tanh %650 : vector<2x64xf32>
    %652 = vector.extract_strided_slice %649 {offsets = [0, 64], sizes = [2, 64], strides = [1, 1]} : vector<2x192xf32> to vector<2x64xf32>
    %653 = arith.mulf %652, %615 : vector<2x64xf32>
    %654 = vector.extract_strided_slice %649 {offsets = [0, 0], sizes = [2, 64], strides = [1, 1]} : vector<2x192xf32> to vector<2x64xf32>
    %655 = arith.mulf %654, %651 : vector<2x64xf32>
    %656 = arith.addf %653, %655 : vector<2x64xf32>
    %657 = vector.extract_strided_slice %649 {offsets = [0, 128], sizes = [2, 64], strides = [1, 1]} : vector<2x192xf32> to vector<2x64xf32>
    %658 = math.tanh %656 : vector<2x64xf32>
    %659 = arith.mulf %657, %658 : vector<2x64xf32>
    %660 = vector.extract_strided_slice %642 {offsets = [0, 256], sizes = [2, 256], strides = [1, 1]} : vector<2x512xf32> to vector<2x256xf32>
    %661 = vector.extract_strided_slice %660 {offsets = [0, 0], sizes = [2, 192], strides = [1, 1]} : vector<2x256xf32> to vector<2x192xf32>
    %662 = arith.negf %661 : vector<2x192xf32>
    %663 = math.exp %662 : vector<2x192xf32>
    %cst_75 = arith.constant 1.000000e+00 : f32
    %664 = vector.broadcast %cst_75 : f32 to vector<2x192xf32>
    %665 = arith.addf %664, %663 : vector<2x192xf32>
    %666 = arith.divf %664, %665 : vector<2x192xf32>
    %667 = vector.extract_strided_slice %660 {offsets = [0, 192], sizes = [2, 64], strides = [1, 1]} : vector<2x256xf32> to vector<2x64xf32>
    %668 = math.tanh %667 : vector<2x64xf32>
    %669 = vector.extract_strided_slice %666 {offsets = [0, 64], sizes = [2, 64], strides = [1, 1]} : vector<2x192xf32> to vector<2x64xf32>
    %670 = arith.mulf %669, %632 : vector<2x64xf32>
    %671 = vector.extract_strided_slice %666 {offsets = [0, 0], sizes = [2, 64], strides = [1, 1]} : vector<2x192xf32> to vector<2x64xf32>
    %672 = arith.mulf %671, %668 : vector<2x64xf32>
    %673 = arith.addf %670, %672 : vector<2x64xf32>
    %674 = vector.extract_strided_slice %666 {offsets = [0, 128], sizes = [2, 64], strides = [1, 1]} : vector<2x192xf32> to vector<2x64xf32>
    %675 = math.tanh %673 : vector<2x64xf32>
    %676 = arith.mulf %674, %675 : vector<2x64xf32>
    %677 = tpu.concatenate %659, %676 in 1 : vector<2x64xf32>, vector<2x64xf32> -> vector<2x128xf32>
    %678 = tpu.concatenate %659, %676 in 1 : vector<2x64xf32>, vector<2x64xf32> -> vector<2x128xf32>
    %679 = arith.truncf %678 : vector<2x128xf32> to vector<2x128xbf16>
    %cst_76 = arith.constant dense<0.000000e+00> : vector<2x512xf32>
    %680 = tpu.matmul %679, %3, %cst_76 {dimension_numbers = #tpu.dot_dimension_numbers<[1], [0], [0], [1], [0, 0, 1, 1], [], []>} : vector<2x128xbf16>, vector<128x512xbf16>, vector<2x512xf32> -> vector<2x512xf32>
    %681 = vector.extract_strided_slice %431 {offsets = [0, 6, 0], sizes = [2, 1, 512], strides = [1, 1, 1]} : vector<2x8x512xf32> to vector<2x1x512xf32>
    %682 = vector.shape_cast %681 : vector<2x1x512xf32> to vector<2x512xf32>
    %683 = arith.addf %682, %680 : vector<2x512xf32>
    %684 = vector.extract_strided_slice %683 {offsets = [0, 0], sizes = [2, 256], strides = [1, 1]} : vector<2x512xf32> to vector<2x256xf32>
    %685 = vector.extract_strided_slice %684 {offsets = [0, 0], sizes = [2, 192], strides = [1, 1]} : vector<2x256xf32> to vector<2x192xf32>
    %686 = arith.negf %685 : vector<2x192xf32>
    %687 = math.exp %686 : vector<2x192xf32>
    %cst_77 = arith.constant 1.000000e+00 : f32
    %688 = vector.broadcast %cst_77 : f32 to vector<2x192xf32>
    %689 = arith.addf %688, %687 : vector<2x192xf32>
    %690 = arith.divf %688, %689 : vector<2x192xf32>
    %691 = vector.extract_strided_slice %684 {offsets = [0, 192], sizes = [2, 64], strides = [1, 1]} : vector<2x256xf32> to vector<2x64xf32>
    %692 = math.tanh %691 : vector<2x64xf32>
    %693 = vector.extract_strided_slice %690 {offsets = [0, 64], sizes = [2, 64], strides = [1, 1]} : vector<2x192xf32> to vector<2x64xf32>
    %694 = arith.mulf %693, %656 : vector<2x64xf32>
    %695 = vector.extract_strided_slice %690 {offsets = [0, 0], sizes = [2, 64], strides = [1, 1]} : vector<2x192xf32> to vector<2x64xf32>
    %696 = arith.mulf %695, %692 : vector<2x64xf32>
    %697 = arith.addf %694, %696 : vector<2x64xf32>
    %698 = vector.extract_strided_slice %690 {offsets = [0, 128], sizes = [2, 64], strides = [1, 1]} : vector<2x192xf32> to vector<2x64xf32>
    %699 = math.tanh %697 : vector<2x64xf32>
    %700 = arith.mulf %698, %699 : vector<2x64xf32>
    %701 = vector.extract_strided_slice %683 {offsets = [0, 256], sizes = [2, 256], strides = [1, 1]} : vector<2x512xf32> to vector<2x256xf32>
    %702 = vector.extract_strided_slice %701 {offsets = [0, 0], sizes = [2, 192], strides = [1, 1]} : vector<2x256xf32> to vector<2x192xf32>
    %703 = arith.negf %702 : vector<2x192xf32>
    %704 = math.exp %703 : vector<2x192xf32>
    %cst_78 = arith.constant 1.000000e+00 : f32
    %705 = vector.broadcast %cst_78 : f32 to vector<2x192xf32>
    %706 = arith.addf %705, %704 : vector<2x192xf32>
    %707 = arith.divf %705, %706 : vector<2x192xf32>
    %708 = vector.extract_strided_slice %701 {offsets = [0, 192], sizes = [2, 64], strides = [1, 1]} : vector<2x256xf32> to vector<2x64xf32>
    %709 = math.tanh %708 : vector<2x64xf32>
    %710 = vector.extract_strided_slice %707 {offsets = [0, 64], sizes = [2, 64], strides = [1, 1]} : vector<2x192xf32> to vector<2x64xf32>
    %711 = arith.mulf %710, %673 : vector<2x64xf32>
    %712 = vector.extract_strided_slice %707 {offsets = [0, 0], sizes = [2, 64], strides = [1, 1]} : vector<2x192xf32> to vector<2x64xf32>
    %713 = arith.mulf %712, %709 : vector<2x64xf32>
    %714 = arith.addf %711, %713 : vector<2x64xf32>
    %715 = vector.extract_strided_slice %707 {offsets = [0, 128], sizes = [2, 64], strides = [1, 1]} : vector<2x192xf32> to vector<2x64xf32>
    %716 = math.tanh %714 : vector<2x64xf32>
    %717 = arith.mulf %715, %716 : vector<2x64xf32>
    %718 = tpu.concatenate %700, %717 in 1 : vector<2x64xf32>, vector<2x64xf32> -> vector<2x128xf32>
    %719 = tpu.concatenate %700, %717 in 1 : vector<2x64xf32>, vector<2x64xf32> -> vector<2x128xf32>
    %720 = arith.truncf %719 : vector<2x128xf32> to vector<2x128xbf16>
    %cst_79 = arith.constant dense<0.000000e+00> : vector<2x512xf32>
    %721 = tpu.matmul %720, %3, %cst_79 {dimension_numbers = #tpu.dot_dimension_numbers<[1], [0], [0], [1], [0, 0, 1, 1], [], []>} : vector<2x128xbf16>, vector<128x512xbf16>, vector<2x512xf32> -> vector<2x512xf32>
    %722 = vector.extract_strided_slice %431 {offsets = [0, 7, 0], sizes = [2, 1, 512], strides = [1, 1, 1]} : vector<2x8x512xf32> to vector<2x1x512xf32>
    %723 = vector.shape_cast %722 : vector<2x1x512xf32> to vector<2x512xf32>
    %724 = arith.addf %723, %721 : vector<2x512xf32>
    %725 = vector.extract_strided_slice %724 {offsets = [0, 0], sizes = [2, 256], strides = [1, 1]} : vector<2x512xf32> to vector<2x256xf32>
    %726 = vector.extract_strided_slice %725 {offsets = [0, 0], sizes = [2, 192], strides = [1, 1]} : vector<2x256xf32> to vector<2x192xf32>
    %727 = arith.negf %726 : vector<2x192xf32>
    %728 = math.exp %727 : vector<2x192xf32>
    %cst_80 = arith.constant 1.000000e+00 : f32
    %729 = vector.broadcast %cst_80 : f32 to vector<2x192xf32>
    %730 = arith.addf %729, %728 : vector<2x192xf32>
    %731 = arith.divf %729, %730 : vector<2x192xf32>
    %732 = vector.extract_strided_slice %725 {offsets = [0, 192], sizes = [2, 64], strides = [1, 1]} : vector<2x256xf32> to vector<2x64xf32>
    %733 = math.tanh %732 : vector<2x64xf32>
    %734 = vector.extract_strided_slice %731 {offsets = [0, 64], sizes = [2, 64], strides = [1, 1]} : vector<2x192xf32> to vector<2x64xf32>
    %735 = arith.mulf %734, %697 : vector<2x64xf32>
    %736 = vector.extract_strided_slice %731 {offsets = [0, 0], sizes = [2, 64], strides = [1, 1]} : vector<2x192xf32> to vector<2x64xf32>
    %737 = arith.mulf %736, %733 : vector<2x64xf32>
    %738 = arith.addf %735, %737 : vector<2x64xf32>
    %739 = vector.extract_strided_slice %731 {offsets = [0, 128], sizes = [2, 64], strides = [1, 1]} : vector<2x192xf32> to vector<2x64xf32>
    %740 = math.tanh %738 : vector<2x64xf32>
    %741 = arith.mulf %739, %740 : vector<2x64xf32>
    %742 = vector.extract_strided_slice %724 {offsets = [0, 256], sizes = [2, 256], strides = [1, 1]} : vector<2x512xf32> to vector<2x256xf32>
    %743 = vector.extract_strided_slice %742 {offsets = [0, 0], sizes = [2, 192], strides = [1, 1]} : vector<2x256xf32> to vector<2x192xf32>
    %744 = arith.negf %743 : vector<2x192xf32>
    %745 = math.exp %744 : vector<2x192xf32>
    %cst_81 = arith.constant 1.000000e+00 : f32
    %746 = vector.broadcast %cst_81 : f32 to vector<2x192xf32>
    %747 = arith.addf %746, %745 : vector<2x192xf32>
    %748 = arith.divf %746, %747 : vector<2x192xf32>
    %749 = vector.extract_strided_slice %742 {offsets = [0, 192], sizes = [2, 64], strides = [1, 1]} : vector<2x256xf32> to vector<2x64xf32>
    %750 = math.tanh %749 : vector<2x64xf32>
    %751 = vector.extract_strided_slice %748 {offsets = [0, 64], sizes = [2, 64], strides = [1, 1]} : vector<2x192xf32> to vector<2x64xf32>
    %752 = arith.mulf %751, %714 : vector<2x64xf32>
    %753 = vector.extract_strided_slice %748 {offsets = [0, 0], sizes = [2, 64], strides = [1, 1]} : vector<2x192xf32> to vector<2x64xf32>
    %754 = arith.mulf %753, %750 : vector<2x64xf32>
    %755 = arith.addf %752, %754 : vector<2x64xf32>
    %756 = vector.extract_strided_slice %748 {offsets = [0, 128], sizes = [2, 64], strides = [1, 1]} : vector<2x192xf32> to vector<2x64xf32>
    %757 = math.tanh %755 : vector<2x64xf32>
    %758 = arith.mulf %756, %757 : vector<2x64xf32>
    %759 = tpu.concatenate %741, %758 in 1 : vector<2x64xf32>, vector<2x64xf32> -> vector<2x128xf32>
    %760 = vector.shape_cast %472 : vector<2x128xf32> to vector<2x1x128xf32>
    %761 = vector.shape_cast %513 : vector<2x128xf32> to vector<2x1x128xf32>
    %762 = vector.shape_cast %554 : vector<2x128xf32> to vector<2x1x128xf32>
    %763 = vector.shape_cast %595 : vector<2x128xf32> to vector<2x1x128xf32>
    %764 = vector.shape_cast %636 : vector<2x128xf32> to vector<2x1x128xf32>
    %765 = vector.shape_cast %677 : vector<2x128xf32> to vector<2x1x128xf32>
    %766 = vector.shape_cast %718 : vector<2x128xf32> to vector<2x1x128xf32>
    %767 = vector.shape_cast %759 : vector<2x128xf32> to vector<2x1x128xf32>
    %768 = tpu.concatenate %760, %761, %762, %763, %764, %765, %766, %767 in 1 : vector<2x1x128xf32>, vector<2x1x128xf32>, vector<2x1x128xf32>, vector<2x1x128xf32>, vector<2x1x128xf32>, vector<2x1x128xf32>, vector<2x1x128xf32>, vector<2x1x128xf32> -> vector<2x8x128xf32>
    %769 = vector.shape_cast %768 : vector<2x8x128xf32> to vector<16x128xf32>
    %770 = arith.truncf %769 : vector<16x128xf32> to vector<16x128xbf16>
    %cst_82 = arith.constant dense<0.000000e+00> : vector<16x128xf32>
    %771 = tpu.matmul %770, %7, %cst_82 {dimension_numbers = #tpu.dot_dimension_numbers<[1], [0], [0], [1], [0, 0, 1, 1], [], []>} : vector<16x128xbf16>, vector<128x128xbf16>, vector<16x128xf32> -> vector<16x128xf32>
    %772 = vector.broadcast %13 : vector<1x128xf32> to vector<16x128xf32>
    %773 = arith.addf %771, %772 : vector<16x128xf32>
    %c0_83 = arith.constant 0 : index
    %c0_84 = arith.constant 0 : index
    %774 = vector.load %arg4[%c0_83, %c0_84] : memref<16x128xf32, #tpu.memory_space<vmem>>, vector<16x128xf32>
    tpu.vector_store %arg4[%c0_83, %c0_84], %773 {strides = array<i32>} : memref<16x128xf32, #tpu.memory_space<vmem>>, vector<16x128xf32>,
    return
  }
}

</mosaic_0001>

<llo_original>
// kernel: multi_forward_impl.1
$region0: #{multi_forward_impl.1}
  #allocation0 [shape = 'u32[]', space=smem, size = 0x4, offset = 0x4, fixed_abs, tag = 'smem constant byte address 0x4 - core index']
  #allocation1 [shape = 'u32[144,128]{1,0:T(1,128)}', space=vmem, size = 0x12000, scoped, tag = 'internal scratch']
  %s0 = inlined_call_operand.vmem [shape: f32[2,8,64], index: 0, kind: input, shape index: {}]
  %s1 = inlined_call_operand.hbm [shape: bf16[896,512], index: 1, kind: input, shape index: {}]
  %s2 = inlined_call_operand.vmem [shape: f32[8,512], index: 2, kind: input, shape index: {}]
  %s3 = inlined_call_operand.hbm [shape: f32[2,128], index: 3, kind: output, shape index: {0}]
  %s4 = inlined_call_operand.vmem [shape: f32[16,128], index: 4, kind: output, shape index: {1}]
  %5 = xla_tuple %s3, %s4
  %s6 = sld [smem:[#allocation0]]
  $region34: #{multi_forward_impl.1} parent=0
    _
  %s8 = ssub.s32 1, %s6
  %s9 = scalar_select 0, %s8, %s6
  $region1: #{multi_forward_impl.1} parent=0
    #allocation2 [shape = 'u8[917504]{0}', space=vmem, size = 0xe0000, scoped, tag = 'input window, operand 1, single buffered']
    #allocation3 [shape = 's32[1]{0}', space=sflag, size = 0x4, scoped, tag = 'scoped memory for multi_forward_impl.1']
    #allocation4 [shape = 's32[1]{0}', space=sflag, size = 0x4, scoped, tag = 'scoped memory for multi_forward_impl.1']
    #allocation5 [shape = 'u8[1024]{0}', space=vmem, size = 0x400, scoped, tag = 'output window, operand 0, single buffered']
    %10 = vsyncpa [#allocation3], 0
    %11 = vsyncpa [#allocation4], 0
    // Predicated region
    $region2: #{multi_forward_impl.1} parent=1 // pred_check
      _
    $region3: #{multi_forward_impl.1} parent=1 // pred_check_branch
      %13 = sbr.rel (0) target = $region5
    $region4: #{multi_forward_impl.1} parent=1 // pred_region
      _
    $region5: #{multi_forward_impl.1} parent=1 // pred_fallthru
      _
    // Predicated region
    $region6: #{multi_forward_impl.1} parent=1 // pred_check
      _
    $region7: #{multi_forward_impl.1} parent=1 // pred_check_branch
      %15 = sbr.rel (0) target = $region9
    $region8: #{multi_forward_impl.1} parent=1 // pred_region
      %s17 = ssub.s32 28672, 28672
      %18 = vsyncadd [#allocation3], %s17
      %s19 = sshll.u32 [#allocation2], 4
      %s20 = int_to_ptr.vmem [resolvable:$true] %s19
      %25 = dma.hbm_to_vmem [thread:$0]  %s1, 28672, %s20, [#allocation3], 256, 256, 16
    $region9: #{multi_forward_impl.1} parent=1 // pred_fallthru
      _
    // Predicated region
    $region10: #{multi_forward_impl.1} parent=1 // pred_check
      _
    $region11: #{multi_forward_impl.1} parent=1 // pred_check_branch
      %27 = sbr.rel (0) target = $region13
    $region12: #{multi_forward_impl.1} parent=1 // pred_region
      _
    $region13: #{multi_forward_impl.1} parent=1 // pred_fallthru
      _
    // Predicated region
    $region14: #{multi_forward_impl.1} parent=1 // pred_check
      _
    $region15: #{multi_forward_impl.1} parent=1 // pred_check_branch
      %29 = sbr.rel (0) target = $region17
    $region16: #{multi_forward_impl.1} parent=1 // pred_region
      %30 = dma.done [#allocation3], 28672
    $region17: #{multi_forward_impl.1} parent=1 // pred_fallthru
      _
    %v32 = vld [vmem:[#allocation2] sm:$0xff]
    %v33 = vld [vmem:[#allocation2 + $0x8] sm:$0xff]
    %v34 = vld [vmem:[#allocation2 + $0x10] sm:$0xff]
    %v35 = vld [vmem:[#allocation2 + $0x18] sm:$0xff]
    %v36 = vld [vmem:[#allocation2 + $0x20] sm:$0xff]
    %v37 = vld [vmem:[#allocation2 + $0x28] sm:$0xff]
    %v38 = vld [vmem:[#allocation2 + $0x30] sm:$0xff]
    %v39 = vld [vmem:[#allocation2 + $0x38] sm:$0xff]
    %v40 = vld [vmem:[#allocation2 + $0x40] sm:$0xff]
    %v41 = vld [vmem:[#allocation2 + $0x48] sm:$0xff]
    %v42 = vld [vmem:[#allocation2 + $0x50] sm:$0xff]
    %v43 = vld [vmem:[#allocation2 + $0x58] sm:$0xff]
    %v44 = vld [vmem:[#allocation2 + $0x60] sm:$0xff]
    %v45 = vld [vmem:[#allocation2 + $0x68] sm:$0xff]
    %v46 = vld [vmem:[#allocation2 + $0x70] sm:$0xff]
    %v47 = vld [vmem:[#allocation2 + $0x78] sm:$0xff]
    %v48 = vld [vmem:[#allocation2 + $0x80] sm:$0xff]
    %v49 = vld [vmem:[#allocation2 + $0x88] sm:$0xff]
    %v50 = vld [vmem:[#allocation2 + $0x90] sm:$0xff]
    %v51 = vld [vmem:[#allocation2 + $0x98] sm:$0xff]
    %v52 = vld [vmem:[#allocation2 + $0xa0] sm:$0xff]
    %v53 = vld [vmem:[#allocation2 + $0xa8] sm:$0xff]
    %v54 = vld [vmem:[#allocation2 + $0xb0] sm:$0xff]
    %v55 = vld [vmem:[#allocation2 + $0xb8] sm:$0xff]
    %v56 = vld [vmem:[#allocation2 + $0xc0] sm:$0xff]
    %v57 = vld [vmem:[#allocation2 + $0xc8] sm:$0xff]
    %v58 = vld [vmem:[#allocation2 + $0xd0] sm:$0xff]
    %v59 = vld [vmem:[#allocation2 + $0xd8] sm:$0xff]
    %v60 = vld [vmem:[#allocation2 + $0xe0] sm:$0xff]
    %v61 = vld [vmem:[#allocation2 + $0xe8] sm:$0xff]
    %v62 = vld [vmem:[#allocation2 + $0xf0] sm:$0xff]
    %v63 = vld [vmem:[#allocation2 + $0xf8] sm:$0xff]
    %v64 = vld [vmem:[#allocation2 + $0x100] sm:$0xff]
    %v65 = vld [vmem:[#allocation2 + $0x108] sm:$0xff]
    %v66 = vld [vmem:[#allocation2 + $0x110] sm:$0xff]
    %v67 = vld [vmem:[#allocation2 + $0x118] sm:$0xff]
    %v68 = vld [vmem:[#allocation2 + $0x120] sm:$0xff]
    %v69 = vld [vmem:[#allocation2 + $0x128] sm:$0xff]
    %v70 = vld [vmem:[#allocation2 + $0x130] sm:$0xff]
    %v71 = vld [vmem:[#allocation2 + $0x138] sm:$0xff]
    %v72 = vld [vmem:[#allocation2 + $0x140] sm:$0xff]
    %v73 = vld [vmem:[#allocation2 + $0x148] sm:$0xff]
    %v74 = vld [vmem:[#allocation2 + $0x150] sm:$0xff]
    %v75 = vld [vmem:[#allocation2 + $0x158] sm:$0xff]
    %v76 = vld [vmem:[#allocation2 + $0x160] sm:$0xff]
    %v77 = vld [vmem:[#allocation2 + $0x168] sm:$0xff]
    %v78 = vld [vmem:[#allocation2 + $0x170] sm:$0xff]
    %v79 = vld [vmem:[#allocation2 + $0x178] sm:$0xff]
    %v80 = vld [vmem:[#allocation2 + $0x180] sm:$0xff]
    %v81 = vld [vmem:[#allocation2 + $0x188] sm:$0xff]
    %v82 = vld [vmem:[#allocation2 + $0x190] sm:$0xff]
    %v83 = vld [vmem:[#allocation2 + $0x198] sm:$0xff]
    %v84 = vld [vmem:[#allocation2 + $0x1a0] sm:$0xff]
    %v85 = vld [vmem:[#allocation2 + $0x1a8] sm:$0xff]
    %v86 = vld [vmem:[#allocation2 + $0x1b0] sm:$0xff]
    %v87 = vld [vmem:[#allocation2 + $0x1b8] sm:$0xff]
    %v88 = vld [vmem:[#allocation2 + $0x1c0] sm:$0xff]
    %v89 = vld [vmem:[#allocation2 + $0x1c8] sm:$0xff]
    %v90 = vld [vmem:[#allocation2 + $0x1d0] sm:$0xff]
    %v91 = vld [vmem:[#allocation2 + $0x1d8] sm:$0xff]
    %v92 = vld [vmem:[#allocation2 + $0x1e0] sm:$0xff]
    %v93 = vld [vmem:[#allocation2 + $0x1e8] sm:$0xff]
    %v94 = vld [vmem:[#allocation2 + $0x1f0] sm:$0xff]
    %v95 = vld [vmem:[#allocation2 + $0x1f8] sm:$0xff]
    %v96 = vld [vmem:[#allocation2 + $0x200] sm:$0xff]
    %v97 = vld [vmem:[#allocation2 + $0x208] sm:$0xff]
    %v98 = vld [vmem:[#allocation2 + $0x210] sm:$0xff]
    %v99 = vld [vmem:[#allocation2 + $0x218] sm:$0xff]
    %v100 = vld [vmem:[#allocation2 + $0x220] sm:$0xff]
    %v101 = vld [vmem:[#allocation2 + $0x228] sm:$0xff]
    %v102 = vld [vmem:[#allocation2 + $0x230] sm:$0xff]
    %v103 = vld [vmem:[#allocation2 + $0x238] sm:$0xff]
    %v104 = vld [vmem:[#allocation2 + $0x240] sm:$0xff]
    %v105 = vld [vmem:[#allocation2 + $0x248] sm:$0xff]
    %v106 = vld [vmem:[#allocation2 + $0x250] sm:$0xff]
    %v107 = vld [vmem:[#allocation2 + $0x258] sm:$0xff]
    %v108 = vld [vmem:[#allocation2 + $0x260] sm:$0xff]
    %v109 = vld [vmem:[#allocation2 + $0x268] sm:$0xff]
    %v110 = vld [vmem:[#allocation2 + $0x270] sm:$0xff]
    %v111 = vld [vmem:[#allocation2 + $0x278] sm:$0xff]
    %v112 = vld [vmem:[#allocation2 + $0x280] sm:$0xff]
    %v113 = vld [vmem:[#allocation2 + $0x288] sm:$0xff]
    %v114 = vld [vmem:[#allocation2 + $0x290] sm:$0xff]
    %v115 = vld [vmem:[#allocation2 + $0x298] sm:$0xff]
    %v116 = vld [vmem:[#allocation2 + $0x2a0] sm:$0xff]
    %v117 = vld [vmem:[#allocation2 + $0x2a8] sm:$0xff]
    %v118 = vld [vmem:[#allocation2 + $0x2b0] sm:$0xff]
    %v119 = vld [vmem:[#allocation2 + $0x2b8] sm:$0xff]
    %v120 = vld [vmem:[#allocation2 + $0x2c0] sm:$0xff]
    %v121 = vld [vmem:[#allocation2 + $0x2c8] sm:$0xff]
    %v122 = vld [vmem:[#allocation2 + $0x2d0] sm:$0xff]
    %v123 = vld [vmem:[#allocation2 + $0x2d8] sm:$0xff]
    %v124 = vld [vmem:[#allocation2 + $0x2e0] sm:$0xff]
    %v125 = vld [vmem:[#allocation2 + $0x2e8] sm:$0xff]
    %v126 = vld [vmem:[#allocation2 + $0x2f0] sm:$0xff]
    %v127 = vld [vmem:[#allocation2 + $0x2f8] sm:$0xff]
    %v128 = vld [vmem:[#allocation2 + $0x300] sm:$0xf]
    %v129 = vld [vmem:[#allocation2 + $0x310] sm:$0xf]
    %v130 = vld [vmem:[#allocation2 + $0x320] sm:$0xf]
    %v131 = vld [vmem:[#allocation2 + $0x330] sm:$0xf]
    %v132 = vld [vmem:[#allocation2 + $0x340] sm:$0xf]
    %v133 = vld [vmem:[#allocation2 + $0x350] sm:$0xf]
    %v134 = vld [vmem:[#allocation2 + $0x360] sm:$0xf]
    %v135 = vld [vmem:[#allocation2 + $0x370] sm:$0xf]
    %v136 = vld [vmem:[#allocation2 + $0x380] sm:$0xf]
    %v137 = vld [vmem:[#allocation2 + $0x390] sm:$0xf]
    %v138 = vld [vmem:[#allocation2 + $0x3a0] sm:$0xf]
    %v139 = vld [vmem:[#allocation2 + $0x3b0] sm:$0xf]
    %v140 = vld [vmem:[#allocation2 + $0x3c0] sm:$0xf]
    %v141 = vld [vmem:[#allocation2 + $0x3d0] sm:$0xf]
    %v142 = vld [vmem:[#allocation2 + $0x3e0] sm:$0xf]
    %v143 = vld [vmem:[#allocation2 + $0x3f0] sm:$0xf]
    %v144 = vld [vmem:[#allocation2 + $0x400] sm:$0xf]
    %v145 = vld [vmem:[#allocation2 + $0x410] sm:$0xf]
    %v146 = vld [vmem:[#allocation2 + $0x420] sm:$0xf]
    %v147 = vld [vmem:[#allocation2 + $0x430] sm:$0xf]
    %v148 = vld [vmem:[#allocation2 + $0x440] sm:$0xf]
    %v149 = vld [vmem:[#allocation2 + $0x450] sm:$0xf]
    %v150 = vld [vmem:[#allocation2 + $0x460] sm:$0xf]
    %v151 = vld [vmem:[#allocation2 + $0x470] sm:$0xf]
    %v152 = vld [vmem:[#allocation2 + $0x480] sm:$0xf]
    %v153 = vld [vmem:[#allocation2 + $0x490] sm:$0xf]
    %v154 = vld [vmem:[#allocation2 + $0x4a0] sm:$0xf]
    %v155 = vld [vmem:[#allocation2 + $0x4b0] sm:$0xf]
    %v156 = vld [vmem:[#allocation2 + $0x4c0] sm:$0xf]
    %v157 = vld [vmem:[#allocation2 + $0x4d0] sm:$0xf]
    %v158 = vld [vmem:[#allocation2 + $0x4e0] sm:$0xf]
    %v159 = vld [vmem:[#allocation2 + $0x4f0] sm:$0xf]
    %v160 = vld [vmem:[#allocation2 + $0x500] sm:$0xf]
    %v161 = vld [vmem:[#allocation2 + $0x510] sm:$0xf]
    %v162 = vld [vmem:[#allocation2 + $0x520] sm:$0xf]
    %v163 = vld [vmem:[#allocation2 + $0x530] sm:$0xf]
    %v164 = vld [vmem:[#allocation2 + $0x540] sm:$0xf]
    %v165 = vld [vmem:[#allocation2 + $0x550] sm:$0xf]
    %v166 = vld [vmem:[#allocation2 + $0x560] sm:$0xf]
    %v167 = vld [vmem:[#allocation2 + $0x570] sm:$0xf]
    %v168 = vld [vmem:[#allocation2 + $0x580] sm:$0xf]
    %v169 = vld [vmem:[#allocation2 + $0x590] sm:$0xf]
    %v170 = vld [vmem:[#allocation2 + $0x5a0] sm:$0xf]
    %v171 = vld [vmem:[#allocation2 + $0x5b0] sm:$0xf]
    %v172 = vld [vmem:[#allocation2 + $0x5c0] sm:$0xf]
    %v173 = vld [vmem:[#allocation2 + $0x5d0] sm:$0xf]
    %v174 = vld [vmem:[#allocation2 + $0x5e0] sm:$0xf]
    %v175 = vld [vmem:[#allocation2 + $0x5f0] sm:$0xf]
    %v176 = vld [vmem:[#allocation2 + $0x600] sm:$0xf]
    %v177 = vld [vmem:[#allocation2 + $0x610] sm:$0xf]
    %v178 = vld [vmem:[#allocation2 + $0x620] sm:$0xf]
    %v179 = vld [vmem:[#allocation2 + $0x630] sm:$0xf]
    %v180 = vld [vmem:[#allocation2 + $0x640] sm:$0xf]
    %v181 = vld [vmem:[#allocation2 + $0x650] sm:$0xf]
    %v182 = vld [vmem:[#allocation2 + $0x660] sm:$0xf]
    %v183 = vld [vmem:[#allocation2 + $0x670] sm:$0xf]
    %v184 = vld [vmem:[#allocation2 + $0x680] sm:$0xf]
    %v185 = vld [vmem:[#allocation2 + $0x690] sm:$0xf]
    %v186 = vld [vmem:[#allocation2 + $0x6a0] sm:$0xf]
    %v187 = vld [vmem:[#allocation2 + $0x6b0] sm:$0xf]
    %v188 = vld [vmem:[#allocation2 + $0x6c0] sm:$0xf]
    %v189 = vld [vmem:[#allocation2 + $0x6d0] sm:$0xf]
    %v190 = vld [vmem:[#allocation2 + $0x6e0] sm:$0xf]
    %v191 = vld [vmem:[#allocation2 + $0x6f0] sm:$0xf]
    %v192 = vld [vmem:[%s2] ss:$8 sm:$0xf]
    %s193 = scalar_lea.vmem %s2, 1
    %v194 = vld [vmem:[%s193] ss:$8 sm:$0xf]
    %v195 = vld [vmem:[%s2 + $0x2] ss:$0 sm:$0xff]
    %v196 = vld [vmem:[%s2 + $0x3] ss:$0 sm:$0xff]
    %v197 = vld [vmem:[%s2 + $0xb] ss:$0 sm:$0xff]
    %v198 = vld [vmem:[%s2 + $0x13] ss:$0 sm:$0xff]
    %v199 = vld [vmem:[%s0] sm:$0xff]
    %v200 = vld [vmem:[%s0 + $0x8] sm:$0xff]
    %v201 = vpack.c.bf16 %v200, %v199
    %v203 = vlaneseq
    %v204 = vshrl.u32 %v203, 7
    %v205 = vsub.s32 0, %v204
    %v206 = vrot.slane %v192, %v205
    %v207 = vlaneseq
    %v208 = vshrl.u32 %v207, 7
    %v209 = vsub.s32 1, %v208
    %v210 = vrot.slane %v192, %v209
    %v211 = vlaneseq
    %v212 = vshrl.u32 %v211, 7
    %v213 = vsub.s32 2, %v212
    %v214 = vrot.slane %v192, %v213
    %v215 = vlaneseq
    %v216 = vshrl.u32 %v215, 7
    %v217 = vsub.s32 3, %v216
    %v218 = vrot.slane %v192, %v217
    %v239 = vunpack.c.l.b16 %v32
    %v240 = vunpack.c.h.b16 %v32
    %v241 = vunpack.c.l.b16 %v33
    %v242 = vunpack.c.h.b16 %v33
    %v243 = vunpack.c.l.b16 %v34
    %v244 = vunpack.c.h.b16 %v34
    %v245 = vunpack.c.l.b16 %v35
    %v246 = vunpack.c.h.b16 %v35
    %v247 = vunpack.c.l.b16 %v36
    %v248 = vunpack.c.h.b16 %v36
    %v249 = vunpack.c.l.b16 %v37
    %v250 = vunpack.c.h.b16 %v37
    %v251 = vunpack.c.l.b16 %v38
    %v252 = vunpack.c.h.b16 %v38
    %v253 = vunpack.c.l.b16 %v39
    %v254 = vunpack.c.h.b16 %v39
    %v255 = vunpack.c.l.b16 %v40
    %v256 = vunpack.c.h.b16 %v40
    %v257 = vunpack.c.l.b16 %v41
    %v258 = vunpack.c.h.b16 %v41
    %v259 = vunpack.c.l.b16 %v42
    %v260 = vunpack.c.h.b16 %v42
    %v261 = vunpack.c.l.b16 %v43
    %v262 = vunpack.c.h.b16 %v43
    %v263 = vunpack.c.l.b16 %v44
    %v264 = vunpack.c.h.b16 %v44
    %v265 = vunpack.c.l.b16 %v45
    %v266 = vunpack.c.h.b16 %v45
    %v267 = vunpack.c.l.b16 %v46
    %v268 = vunpack.c.h.b16 %v46
    %v269 = vunpack.c.l.b16 %v47
    %v270 = vunpack.c.h.b16 %v47
    %v271 = vpack.c.b16 %v243, %v239
    %v272 = vpack.c.b16 %v244, %v240
    %v273 = vpack.c.b16 %v245, %v241
    %v274 = vpack.c.b16 %v246, %v242
    %v275 = vpack.c.b16 %v251, %v247
    %v276 = vpack.c.b16 %v252, %v248
    %v277 = vpack.c.b16 %v253, %v249
    %v278 = vpack.c.b16 %v254, %v250
    %v279 = vpack.c.b16 %v259, %v255
    %v280 = vpack.c.b16 %v260, %v256
    %v281 = vpack.c.b16 %v261, %v257
    %v282 = vpack.c.b16 %v262, %v258
    %v283 = vpack.c.b16 %v267, %v263
    %v284 = vpack.c.b16 %v268, %v264
    %v285 = vpack.c.b16 %v269, %v265
    %v286 = vpack.c.b16 %v270, %v266
    %vm303 = vcmask 523264
    %v305 = vsel %vm303, %v201, 0
    %307 = vmatprep.subr.bf16.mxu0 %v272
    %308 = vmatpush1.bf16.msra.mxu0 %v271
    %309 = vmatprep.subr.bf16.mxu0 %v276
    %310 = vmatpush1.bf16.msra.mxu0 %v275
    %311 = vmatprep.subr.bf16.mxu0 %v280
    %312 = vmatpush1.bf16.msra.mxu0 %v279
    %313 = vmatprep.subr.bf16.mxu0 %v284
    %314 = vmatpush1.bf16.msra.mxu0 %v283
    %315 = vmatprep.subr.bf16.mxu0 0
    %316 = vmatpush1.bf16.msra.mxu0 0
    %317 = vmatprep.subr.bf16.mxu0 0
    %318 = vmatpush1.bf16.msra.mxu0 0
    %319 = vmatprep.subr.bf16.mxu0 0
    %320 = vmatpush1.bf16.msra.mxu0 0
    %321 = vmatprep.subr.bf16.mxu0 0
    %322 = vmatpush1.bf16.msra.mxu0 0
    %323 = vmatprep.subr.bf16.mxu0 0
    %324 = vmatpush1.bf16.msra.mxu0 0
    %325 = vmatprep.subr.bf16.mxu0 0
    %326 = vmatpush1.bf16.msra.mxu0 0
    %327 = vmatprep.subr.bf16.mxu0 0
    %328 = vmatpush1.bf16.msra.mxu0 0
    %329 = vmatprep.subr.bf16.mxu0 0
    %330 = vmatpush1.bf16.msra.mxu0 0
    %331 = vmatprep.subr.bf16.mxu0 0
    %332 = vmatpush1.bf16.msra.mxu0 0
    %333 = vmatprep.subr.bf16.mxu0 0
    %334 = vmatpush1.bf16.msra.mxu0 0
    %335 = vmatprep.subr.bf16.mxu0 0
    %336 = vmatpush1.bf16.msra.mxu0 0
    %337 = vmatprep.subr.bf16.mxu0 0
    %338 = vmatpush1.bf16.msra.mxu0 0
    %339 = vmatprep.mubr.bf16.mxu0 0
    %340 = vmatmul.mubr.bf16.gmra.mrb[0].mxu0 %v305
    %v341 = vpop.f32.mrb[0].mxu0
    %v342 = vadd.f32 %v206, %v341
    %v343 = vpop.f32.mrb[0].mxu0
    %v344 = vadd.f32 %v210, %v343
    %v345 = vpop.f32.mrb[0].mxu0
    %v346 = vadd.f32 %v206, %v345
    %v347 = vpop.f32.mrb[0].mxu0
    %v348 = vadd.f32 %v210, %v347
    %349 = vdwg.mxu0
    %350 = vmatprep.subr.bf16.mxu0 %v274
    %351 = vmatpush1.bf16.msra.mxu0 %v273
    %352 = vmatprep.subr.bf16.mxu0 %v278
    %353 = vmatpush1.bf16.msra.mxu0 %v277
    %354 = vmatprep.subr.bf16.mxu0 %v282
    %355 = vmatpush1.bf16.msra.mxu0 %v281
    %356 = vmatprep.subr.bf16.mxu0 %v286
    %357 = vmatpush1.bf16.msra.mxu0 %v285
    %358 = vmatprep.subr.bf16.mxu0 0
    %359 = vmatpush1.bf16.msra.mxu0 0
    %360 = vmatprep.subr.bf16.mxu0 0
    %361 = vmatpush1.bf16.msra.mxu0 0
    %362 = vmatprep.subr.bf16.mxu0 0
    %363 = vmatpush1.bf16.msra.mxu0 0
    %364 = vmatprep.subr.bf16.mxu0 0
    %365 = vmatpush1.bf16.msra.mxu0 0
    %366 = vmatprep.subr.bf16.mxu0 0
    %367 = vmatpush1.bf16.msra.mxu0 0
    %368 = vmatprep.subr.bf16.mxu0 0
    %369 = vmatpush1.bf16.msra.mxu0 0
    %370 = vmatprep.subr.bf16.mxu0 0
    %371 = vmatpush1.bf16.msra.mxu0 0
    %372 = vmatprep.subr.bf16.mxu0 0
    %373 = vmatpush1.bf16.msra.mxu0 0
    %374 = vmatprep.subr.bf16.mxu0 0
    %375 = vmatpush1.bf16.msra.mxu0 0
    %376 = vmatprep.subr.bf16.mxu0 0
    %377 = vmatpush1.bf16.msra.mxu0 0
    %378 = vmatprep.subr.bf16.mxu0 0
    %379 = vmatpush1.bf16.msra.mxu0 0
    %380 = vmatprep.subr.bf16.mxu0 0
    %381 = vmatpush1.bf16.msra.mxu0 0
    %382 = vmatprep.mubr.bf16.mxu0 0
    %383 = vmatmul.mubr.bf16.gmra.mrb[0].mxu0 %v305
    %v384 = vpop.f32.mrb[0].mxu0
    %v385 = vadd.f32 %v214, %v384
    %v386 = vpop.f32.mrb[0].mxu0
    %v387 = vadd.f32 %v218, %v386
    %v388 = vpop.f32.mrb[0].mxu0
    %v389 = vadd.f32 %v214, %v388
    %v390 = vpop.f32.mrb[0].mxu0
    %v391 = vadd.f32 %v218, %v390
    %392 = vdwg.mxu0
    %v393 = vpack.c.bf16 0.0, 0.0
    %v426 = vunpack.c.l.b16 %v48
    %v427 = vunpack.c.h.b16 %v48
    %v428 = vunpack.c.l.b16 %v49
    %v429 = vunpack.c.h.b16 %v49
    %v430 = vunpack.c.l.b16 %v50
    %v431 = vunpack.c.h.b16 %v50
    %v432 = vunpack.c.l.b16 %v51
    %v433 = vunpack.c.h.b16 %v51
    %v434 = vunpack.c.l.b16 %v52
    %v435 = vunpack.c.h.b16 %v52
    %v436 = vunpack.c.l.b16 %v53
    %v437 = vunpack.c.h.b16 %v53
    %v438 = vunpack.c.l.b16 %v54
    %v439 = vunpack.c.h.b16 %v54
    %v440 = vunpack.c.l.b16 %v55
    %v441 = vunpack.c.h.b16 %v55
    %v442 = vunpack.c.l.b16 %v56
    %v443 = vunpack.c.h.b16 %v56
    %v444 = vunpack.c.l.b16 %v57
    %v445 = vunpack.c.h.b16 %v57
    %v446 = vunpack.c.l.b16 %v58
    %v447 = vunpack.c.h.b16 %v58
    %v448 = vunpack.c.l.b16 %v59
    %v449 = vunpack.c.h.b16 %v59
    %v450 = vunpack.c.l.b16 %v60
    %v451 = vunpack.c.h.b16 %v60
    %v452 = vunpack.c.l.b16 %v61
    %v453 = vunpack.c.h.b16 %v61
    %v454 = vunpack.c.l.b16 %v62
    %v455 = vunpack.c.h.b16 %v62
    %v456 = vunpack.c.l.b16 %v63
    %v457 = vunpack.c.h.b16 %v63
    %v458 = vunpack.c.l.b16 %v64
    %v459 = vunpack.c.h.b16 %v64
    %v460 = vunpack.c.l.b16 %v65
    %v461 = vunpack.c.h.b16 %v65
    %v462 = vunpack.c.l.b16 %v66
    %v463 = vunpack.c.h.b16 %v66
    %v464 = vunpack.c.l.b16 %v67
    %v465 = vunpack.c.h.b16 %v67
    %v466 = vunpack.c.l.b16 %v68
    %v467 = vunpack.c.h.b16 %v68
    %v468 = vunpack.c.l.b16 %v69
    %v469 = vunpack.c.h.b16 %v69
    %v470 = vunpack.c.l.b16 %v70
    %v471 = vunpack.c.h.b16 %v70
    %v472 = vunpack.c.l.b16 %v71
    %v473 = vunpack.c.h.b16 %v71
    %v474 = vunpack.c.l.b16 %v72
    %v475 = vunpack.c.h.b16 %v72
    %v476 = vunpack.c.l.b16 %v73
    %v477 = vunpack.c.h.b16 %v73
    %v478 = vunpack.c.l.b16 %v74
    %v479 = vunpack.c.h.b16 %v74
    %v480 = vunpack.c.l.b16 %v75
    %v481 = vunpack.c.h.b16 %v75
    %v482 = vunpack.c.l.b16 %v76
    %v483 = vunpack.c.h.b16 %v76
    %v484 = vunpack.c.l.b16 %v77
    %v485 = vunpack.c.h.b16 %v77
    %v486 = vunpack.c.l.b16 %v78
    %v487 = vunpack.c.h.b16 %v78
    %v488 = vunpack.c.l.b16 %v79
    %v489 = vunpack.c.h.b16 %v79
    %v490 = vpack.c.b16 %v430, %v426
    %v491 = vpack.c.b16 %v431, %v427
    %v492 = vpack.c.b16 %v432, %v428
    %v493 = vpack.c.b16 %v433, %v429
    %v494 = vpack.c.b16 %v438, %v434
    %v495 = vpack.c.b16 %v439, %v435
    %v496 = vpack.c.b16 %v440, %v436
    %v497 = vpack.c.b16 %v441, %v437
    %v498 = vpack.c.b16 %v446, %v442
    %v499 = vpack.c.b16 %v447, %v443
    %v500 = vpack.c.b16 %v448, %v444
    %v501 = vpack.c.b16 %v449, %v445
    %v502 = vpack.c.b16 %v454, %v450
    %v503 = vpack.c.b16 %v455, %v451
    %v504 = vpack.c.b16 %v456, %v452
    %v505 = vpack.c.b16 %v457, %v453
    %v506 = vpack.c.b16 %v462, %v458
    %v507 = vpack.c.b16 %v463, %v459
    %v508 = vpack.c.b16 %v464, %v460
    %v509 = vpack.c.b16 %v465, %v461
    %v510 = vpack.c.b16 %v470, %v466
    %v511 = vpack.c.b16 %v471, %v467
    %v512 = vpack.c.b16 %v472, %v468
    %v513 = vpack.c.b16 %v473, %v469
    %v514 = vpack.c.b16 %v478, %v474
    %v515 = vpack.c.b16 %v479, %v475
    %v516 = vpack.c.b16 %v480, %v476
    %v517 = vpack.c.b16 %v481, %v477
    %v518 = vpack.c.b16 %v486, %v482
    %v519 = vpack.c.b16 %v487, %v483
    %v520 = vpack.c.b16 %v488, %v484
    %v521 = vpack.c.b16 %v489, %v485
    %554 = vmatprep.subr.bf16.mxu0 %v491
    %555 = vmatpush1.bf16.msra.mxu0 %v490
    %556 = vmatprep.subr.bf16.mxu0 %v495
    %557 = vmatpush1.bf16.msra.mxu0 %v494
    %558 = vmatprep.subr.bf16.mxu0 %v499
    %559 = vmatpush1.bf16.msra.mxu0 %v498
    %560 = vmatprep.subr.bf16.mxu0 %v503
    %561 = vmatpush1.bf16.msra.mxu0 %v502
    %562 = vmatprep.subr.bf16.mxu0 %v507
    %563 = vmatpush1.bf16.msra.mxu0 %v506
    %564 = vmatprep.subr.bf16.mxu0 %v511
    %565 = vmatpush1.bf16.msra.mxu0 %v510
    %566 = vmatprep.subr.bf16.mxu0 %v515
    %567 = vmatpush1.bf16.msra.mxu0 %v514
    %568 = vmatprep.subr.bf16.mxu0 %v519
    %569 = vmatpush1.bf16.msra.mxu0 %v518
    %570 = vmatprep.subr.bf16.mxu0 0
    %571 = vmatpush1.bf16.msra.mxu0 0
    %572 = vmatprep.subr.bf16.mxu0 0
    %573 = vmatpush1.bf16.msra.mxu0 0
    %574 = vmatprep.subr.bf16.mxu0 0
    %575 = vmatpush1.bf16.msra.mxu0 0
    %576 = vmatprep.subr.bf16.mxu0 0
    %577 = vmatpush1.bf16.msra.mxu0 0
    %578 = vmatprep.subr.bf16.mxu0 0
    %579 = vmatpush1.bf16.msra.mxu0 0
    %580 = vmatprep.subr.bf16.mxu0 0
    %581 = vmatpush1.bf16.msra.mxu0 0
    %582 = vmatprep.subr.bf16.mxu0 0
    %583 = vmatpush1.bf16.msra.mxu0 0
    %584 = vmatprep.subr.bf16.mxu0 0
    %585 = vmatpush1.bf16.msra.mxu0 0
    %586 = vmatprep.mubr.bf16.mxu0 0
    %587 = vmatmul.mubr.bf16.gmra.mrb[0].mxu0 %v393
    %v588 = vpop.f32.mrb[0].mxu0
    %v589 = vadd.f32 0.0, %v588
    %v590 = vpop.f32.mrb[0].mxu0
    %v591 = vadd.f32 0.0, %v590
    %v592 = vpop.f32.mrb[0].mxu0
    %v593 = vpop.f32.mrb[0].mxu0
    %594 = vdwg.mxu0
    %595 = vmatprep.subr.bf16.mxu0 %v493
    %596 = vmatpush1.bf16.msra.mxu0 %v492
    %597 = vmatprep.subr.bf16.mxu0 %v497
    %598 = vmatpush1.bf16.msra.mxu0 %v496
    %599 = vmatprep.subr.bf16.mxu0 %v501
    %600 = vmatpush1.bf16.msra.mxu0 %v500
    %601 = vmatprep.subr.bf16.mxu0 %v505
    %602 = vmatpush1.bf16.msra.mxu0 %v504
    %603 = vmatprep.subr.bf16.mxu0 %v509
    %604 = vmatpush1.bf16.msra.mxu0 %v508
    %605 = vmatprep.subr.bf16.mxu0 %v513
    %606 = vmatpush1.bf16.msra.mxu0 %v512
    %607 = vmatprep.subr.bf16.mxu0 %v517
    %608 = vmatpush1.bf16.msra.mxu0 %v516
    %609 = vmatprep.subr.bf16.mxu0 %v521
    %610 = vmatpush1.bf16.msra.mxu0 %v520
    %611 = vmatprep.subr.bf16.mxu0 0
    %612 = vmatpush1.bf16.msra.mxu0 0
    %613 = vmatprep.subr.bf16.mxu0 0
    %614 = vmatpush1.bf16.msra.mxu0 0
    %615 = vmatprep.subr.bf16.mxu0 0
    %616 = vmatpush1.bf16.msra.mxu0 0
    %617 = vmatprep.subr.bf16.mxu0 0
    %618 = vmatpush1.bf16.msra.mxu0 0
    %619 = vmatprep.subr.bf16.mxu0 0
    %620 = vmatpush1.bf16.msra.mxu0 0
    %621 = vmatprep.subr.bf16.mxu0 0
    %622 = vmatpush1.bf16.msra.mxu0 0
    %623 = vmatprep.subr.bf16.mxu0 0
    %624 = vmatpush1.bf16.msra.mxu0 0
    %625 = vmatprep.subr.bf16.mxu0 0
    %626 = vmatpush1.bf16.msra.mxu0 0
    %627 = vmatprep.mubr.bf16.mxu0 0
    %628 = vmatmul.mubr.bf16.gmra.mrb[0].mxu0 %v393
    %v629 = vpop.f32.mrb[0].mxu0
    %v630 = vadd.f32 0.0, %v629
    %v631 = vpop.f32.mrb[0].mxu0
    %v632 = vadd.f32 0.0, %v631
    %v633 = vpop.f32.mrb[0].mxu0
    %v634 = vpop.f32.mrb[0].mxu0
    %635 = vdwg.mxu0
    %v638 = vrot.slane %v589, 1
    %v639 = vrot.slane %v591, 1
    %v644 = vadd.f32 %v342, %v589
    %v645 = vadd.f32 %v344, %v591
    %v646 = vadd.f32 %v346, %v638
    %v647 = vadd.f32 %v348, %v639
    %v648 = vxor.u32 %v644, 2147483648
    %v649 = vxor.u32 %v645, 2147483648
    %v650 = vxor.u32 %v646, 2147483648
    %v651 = vxor.u32 %v647, 2147483648
    %v652 = vmul.f32 %v648, 1.442695
    %v653 = vpow.pop %v652
    %v654 = vmul.f32 %v649, 1.442695
    %v655 = vpow.pop %v654
    %v656 = vmul.f32 %v650, 1.442695
    %v657 = vpow.pop %v656
    %v658 = vmul.f32 %v651, 1.442695
    %v659 = vpow.pop %v658
    %v660 = vadd.f32 %v653, 1.0
    %v661 = vadd.f32 %v655, 1.0
    %v662 = vadd.f32 %v657, 1.0
    %v663 = vadd.f32 %v659, 1.0
    %v664 = vrcp.pop %v660
    %v665 = vmul.f32 1.0, %v664
    %v666 = vrcp.pop %v661
    %v667 = vmul.f32 1.0, %v666
    %v668 = vrcp.pop %v662
    %v669 = vmul.f32 1.0, %v668
    %v670 = vrcp.pop %v663
    %v671 = vmul.f32 1.0, %v670
    %v672 = vtanh.pop %v645
    %v673 = vtanh.pop %v647
    %v674 = vmul.f32 %v665, 0.0
    %v675 = vmul.f32 %v669, 0.0
    %678 = vrot.lane.b32.xlu0 %v672, 64
    %v679 = vpop.permute.xlu0 %678
    %680 = vrot.lane.b32.xlu0 %v673, 64
    %v681 = vpop.permute.xlu0 %680
    %v684 = vmul.f32 %v665, %v679
    %v685 = vmul.f32 %v669, %v681
    %688 = vrot.lane.b32.xlu0 %v684, 64
    %v689 = vpop.permute.xlu0 %688
    %690 = vrot.lane.b32.xlu0 %v685, 64
    %v691 = vpop.permute.xlu0 %690
    %v694 = vadd.f32 %v674, %v689
    %v695 = vadd.f32 %v675, %v691
    %v696 = vtanh.pop %v694
    %v697 = vtanh.pop %v695
    %700 = vrot.lane.b32.xlu0 %v696, 64
    %v701 = vpop.permute.xlu0 %700
    %702 = vrot.lane.b32.xlu0 %v697, 64
    %v703 = vpop.permute.xlu0 %702
    %v706 = vmul.f32 %v667, %v701
    %v707 = vmul.f32 %v671, %v703
    %v710 = vrot.slane %v630, 1
    %v711 = vrot.slane %v632, 1
    %v712 = vrot.slane %v630, 2
    %v713 = vrot.slane %v632, 2
    %v718 = vadd.f32 %v385, %v710
    %v719 = vadd.f32 %v387, %v711
    %v720 = vadd.f32 %v389, %v712
    %v721 = vadd.f32 %v391, %v713
    %v722 = vxor.u32 %v718, 2147483648
    %v723 = vxor.u32 %v719, 2147483648
    %v724 = vxor.u32 %v720, 2147483648
    %v725 = vxor.u32 %v721, 2147483648
    %v726 = vmul.f32 %v722, 1.442695
    %v727 = vpow.pop %v726
    %v728 = vmul.f32 %v723, 1.442695
    %v729 = vpow.pop %v728
    %v730 = vmul.f32 %v724, 1.442695
    %v731 = vpow.pop %v730
    %v732 = vmul.f32 %v725, 1.442695
    %v733 = vpow.pop %v732
    %v734 = vadd.f32 %v727, 1.0
    %v735 = vadd.f32 %v729, 1.0
    %v736 = vadd.f32 %v731, 1.0
    %v737 = vadd.f32 %v733, 1.0
    %v738 = vrcp.pop %v734
    %v739 = vmul.f32 1.0, %v738
    %v740 = vrcp.pop %v735
    %v741 = vmul.f32 1.0, %v740
    %v742 = vrcp.pop %v736
    %v743 = vmul.f32 1.0, %v742
    %v744 = vrcp.pop %v737
    %v745 = vmul.f32 1.0, %v744
    %v746 = vtanh.pop %v719
    %v747 = vtanh.pop %v721
    %v748 = vmul.f32 %v739, 0.0
    %v749 = vmul.f32 %v743, 0.0
    %752 = vrot.lane.b32.xlu0 %v746, 64
    %v753 = vpop.permute.xlu0 %752
    %754 = vrot.lane.b32.xlu0 %v747, 64
    %v755 = vpop.permute.xlu0 %754
    %v758 = vmul.f32 %v739, %v753
    %v759 = vmul.f32 %v743, %v755
    %762 = vrot.lane.b32.xlu0 %v758, 64
    %v763 = vpop.permute.xlu0 %762
    %764 = vrot.lane.b32.xlu0 %v759, 64
    %v765 = vpop.permute.xlu0 %764
    %v768 = vadd.f32 %v748, %v763
    %v769 = vadd.f32 %v749, %v765
    %v770 = vtanh.pop %v768
    %v771 = vtanh.pop %v769
    %774 = vrot.lane.b32.xlu0 %v770, 64
    %v775 = vpop.permute.xlu0 %774
    %776 = vrot.lane.b32.xlu0 %v771, 64
    %v777 = vpop.permute.xlu0 %776
    %v780 = vmul.f32 %v741, %v775
    %v781 = vmul.f32 %v745, %v777
    %v784 = vrot.slane %v707, 7
    %vm785 = vcmask 1041409
    %v786 = vsel %vm785, %v784, %v706
    %v790 = vrot.slane %v780, 7
    %v791 = vrot.slane %v781, 6
    %v792 = vsel %vm785, %v791, %v790
    %793 = vrot.lane.b32.xlu0 %v792, 64
    %v794 = vpop.permute.xlu0 %793
    %v796 = vsel %vm303, %v786, %v794
    %v797 = vpack.c.bf16 %v796, %v796
    %798 = vmatprep.subr.bf16.mxu0 %v491
    %799 = vmatpush1.bf16.msra.mxu0 %v490
    %800 = vmatprep.subr.bf16.mxu0 %v495
    %801 = vmatpush1.bf16.msra.mxu0 %v494
    %802 = vmatprep.subr.bf16.mxu0 %v499
    %803 = vmatpush1.bf16.msra.mxu0 %v498
    %804 = vmatprep.subr.bf16.mxu0 %v503
    %805 = vmatpush1.bf16.msra.mxu0 %v502
    %806 = vmatprep.subr.bf16.mxu0 %v507
    %807 = vmatpush1.bf16.msra.mxu0 %v506
    %808 = vmatprep.subr.bf16.mxu0 %v511
    %809 = vmatpush1.bf16.msra.mxu0 %v510
    %810 = vmatprep.subr.bf16.mxu0 %v515
    %811 = vmatpush1.bf16.msra.mxu0 %v514
    %812 = vmatprep.subr.bf16.mxu0 %v519
    %813 = vmatpush1.bf16.msra.mxu0 %v518
    %814 = vmatprep.subr.bf16.mxu0 0
    %815 = vmatpush1.bf16.msra.mxu0 0
    %816 = vmatprep.subr.bf16.mxu0 0
    %817 = vmatpush1.bf16.msra.mxu0 0
    %818 = vmatprep.subr.bf16.mxu0 0
    %819 = vmatpush1.bf16.msra.mxu0 0
    %820 = vmatprep.subr.bf16.mxu0 0
    %821 = vmatpush1.bf16.msra.mxu0 0
    %822 = vmatprep.subr.bf16.mxu0 0
    %823 = vmatpush1.bf16.msra.mxu0 0
    %824 = vmatprep.subr.bf16.mxu0 0
    %825 = vmatpush1.bf16.msra.mxu0 0
    %826 = vmatprep.subr.bf16.mxu0 0
    %827 = vmatpush1.bf16.msra.mxu0 0
    %828 = vmatprep.subr.bf16.mxu0 0
    %829 = vmatpush1.bf16.msra.mxu0 0
    %830 = vmatprep.mubr.bf16.mxu0 0
    %831 = vmatmul.mubr.bf16.gmra.mrb[0].mxu0 %v797
    %v832 = vpop.f32.mrb[0].mxu0
    %v833 = vadd.f32 0.0, %v832
    %v834 = vpop.f32.mrb[0].mxu0
    %v835 = vadd.f32 0.0, %v834
    %v836 = vpop.f32.mrb[0].mxu0
    %v837 = vpop.f32.mrb[0].mxu0
    %838 = vdwg.mxu0
    %839 = vmatprep.subr.bf16.mxu0 %v493
    %840 = vmatpush1.bf16.msra.mxu0 %v492
    %841 = vmatprep.subr.bf16.mxu0 %v497
    %842 = vmatpush1.bf16.msra.mxu0 %v496
    %843 = vmatprep.subr.bf16.mxu0 %v501
    %844 = vmatpush1.bf16.msra.mxu0 %v500
    %845 = vmatprep.subr.bf16.mxu0 %v505
    %846 = vmatpush1.bf16.msra.mxu0 %v504
    %847 = vmatprep.subr.bf16.mxu0 %v509
    %848 = vmatpush1.bf16.msra.mxu0 %v508
    %849 = vmatprep.subr.bf16.mxu0 %v513
    %850 = vmatpush1.bf16.msra.mxu0 %v512
    %851 = vmatprep.subr.bf16.mxu0 %v517
    %852 = vmatpush1.bf16.msra.mxu0 %v516
    %853 = vmatprep.subr.bf16.mxu0 %v521
    %854 = vmatpush1.bf16.msra.mxu0 %v520
    %855 = vmatprep.subr.bf16.mxu0 0
    %856 = vmatpush1.bf16.msra.mxu0 0
    %857 = vmatprep.subr.bf16.mxu0 0
    %858 = vmatpush1.bf16.msra.mxu0 0
    %859 = vmatprep.subr.bf16.mxu0 0
    %860 = vmatpush1.bf16.msra.mxu0 0
    %861 = vmatprep.subr.bf16.mxu0 0
    %862 = vmatpush1.bf16.msra.mxu0 0
    %863 = vmatprep.subr.bf16.mxu0 0
    %864 = vmatpush1.bf16.msra.mxu0 0
    %865 = vmatprep.subr.bf16.mxu0 0
    %866 = vmatpush1.bf16.msra.mxu0 0
    %867 = vmatprep.subr.bf16.mxu0 0
    %868 = vmatpush1.bf16.msra.mxu0 0
    %869 = vmatprep.subr.bf16.mxu0 0
    %870 = vmatpush1.bf16.msra.mxu0 0
    %871 = vmatprep.mubr.bf16.mxu0 0
    %872 = vmatmul.mubr.bf16.gmra.mrb[0].mxu0 %v797
    %v873 = vpop.f32.mrb[0].mxu0
    %v874 = vadd.f32 0.0, %v873
    %v875 = vpop.f32.mrb[0].mxu0
    %v876 = vadd.f32 0.0, %v875
    %v877 = vpop.f32.mrb[0].mxu0
    %v878 = vpop.f32.mrb[0].mxu0
    %879 = vdwg.mxu0
    %v882 = vrot.slane %v833, 7
    %v883 = vrot.slane %v835, 7
    %v888 = vadd.f32 %v342, %v882
    %v889 = vadd.f32 %v344, %v883
    %v890 = vadd.f32 %v346, %v833
    %v891 = vadd.f32 %v348, %v835
    %v892 = vxor.u32 %v888, 2147483648
    %v893 = vxor.u32 %v889, 2147483648
    %v894 = vxor.u32 %v890, 2147483648
    %v895 = vxor.u32 %v891, 2147483648
    %v896 = vmul.f32 %v892, 1.442695
    %v897 = vpow.pop %v896
    %v898 = vmul.f32 %v893, 1.442695
    %v899 = vpow.pop %v898
    %v900 = vmul.f32 %v894, 1.442695
    %v901 = vpow.pop %v900
    %v902 = vmul.f32 %v895, 1.442695
    %v903 = vpow.pop %v902
    %v904 = vadd.f32 %v897, 1.0
    %v905 = vadd.f32 %v899, 1.0
    %v906 = vadd.f32 %v901, 1.0
    %v907 = vadd.f32 %v903, 1.0
    %v908 = vrcp.pop %v904
    %v909 = vmul.f32 1.0, %v908
    %v910 = vrcp.pop %v905
    %v911 = vmul.f32 1.0, %v910
    %v912 = vrcp.pop %v906
    %v913 = vmul.f32 1.0, %v912
    %v914 = vrcp.pop %v907
    %v915 = vmul.f32 1.0, %v914
    %v916 = vtanh.pop %v889
    %v917 = vtanh.pop %v891
    %v920 = vrot.slane %v694, 7
    %v921 = vrot.slane %v695, 7
    %v924 = vmul.f32 %v909, %v920
    %v925 = vmul.f32 %v913, %v921
    %928 = vrot.lane.b32.xlu0 %v916, 64
    %v929 = vpop.permute.xlu0 %928
    %930 = vrot.lane.b32.xlu0 %v917, 64
    %v931 = vpop.permute.xlu0 %930
    %v934 = vmul.f32 %v909, %v929
    %v935 = vmul.f32 %v913, %v931
    %938 = vrot.lane.b32.xlu0 %v934, 64
    %v939 = vpop.permute.xlu0 %938
    %940 = vrot.lane.b32.xlu0 %v935, 64
    %v941 = vpop.permute.xlu0 %940
    %v944 = vadd.f32 %v924, %v939
    %v945 = vadd.f32 %v925, %v941
    %v946 = vtanh.pop %v944
    %v947 = vtanh.pop %v945
    %950 = vrot.lane.b32.xlu0 %v946, 64
    %v951 = vpop.permute.xlu0 %950
    %952 = vrot.lane.b32.xlu0 %v947, 64
    %v953 = vpop.permute.xlu0 %952
    %v956 = vmul.f32 %v911, %v951
    %v957 = vmul.f32 %v915, %v953
    %v960 = vrot.slane %v874, 2
    %v961 = vrot.slane %v876, 2
    %v962 = vrot.slane %v874, 3
    %v963 = vrot.slane %v876, 3
    %v968 = vadd.f32 %v385, %v960
    %v969 = vadd.f32 %v387, %v961
    %v970 = vadd.f32 %v389, %v962
    %v971 = vadd.f32 %v391, %v963
    %v972 = vxor.u32 %v968, 2147483648
    %v973 = vxor.u32 %v969, 2147483648
    %v974 = vxor.u32 %v970, 2147483648
    %v975 = vxor.u32 %v971, 2147483648
    %v976 = vmul.f32 %v972, 1.442695
    %v977 = vpow.pop %v976
    %v978 = vmul.f32 %v973, 1.442695
    %v979 = vpow.pop %v978
    %v980 = vmul.f32 %v974, 1.442695
    %v981 = vpow.pop %v980
    %v982 = vmul.f32 %v975, 1.442695
    %v983 = vpow.pop %v982
    %v984 = vadd.f32 %v977, 1.0
    %v985 = vadd.f32 %v979, 1.0
    %v986 = vadd.f32 %v981, 1.0
    %v987 = vadd.f32 %v983, 1.0
    %v988 = vrcp.pop %v984
    %v989 = vmul.f32 1.0, %v988
    %v990 = vrcp.pop %v985
    %v991 = vmul.f32 1.0, %v990
    %v992 = vrcp.pop %v986
    %v993 = vmul.f32 1.0, %v992
    %v994 = vrcp.pop %v987
    %v995 = vmul.f32 1.0, %v994
    %v996 = vtanh.pop %v969
    %v997 = vtanh.pop %v971
    %v1000 = vrot.slane %v768, 1
    %v1001 = vrot.slane %v769, 1
    %v1004 = vmul.f32 %v989, %v1000
    %v1005 = vmul.f32 %v993, %v1001
    %1008 = vrot.lane.b32.xlu0 %v996, 64
    %v1009 = vpop.permute.xlu0 %1008
    %1010 = vrot.lane.b32.xlu0 %v997, 64
    %v1011 = vpop.permute.xlu0 %1010
    %v1014 = vmul.f32 %v989, %v1009
    %v1015 = vmul.f32 %v993, %v1011
    %1018 = vrot.lane.b32.xlu0 %v1014, 64
    %v1019 = vpop.permute.xlu0 %1018
    %1020 = vrot.lane.b32.xlu0 %v1015, 64
    %v1021 = vpop.permute.xlu0 %1020
    %v1024 = vadd.f32 %v1004, %v1019
    %v1025 = vadd.f32 %v1005, %v1021
    %v1026 = vtanh.pop %v1024
    %v1027 = vtanh.pop %v1025
    %1030 = vrot.lane.b32.xlu0 %v1026, 64
    %v1031 = vpop.permute.xlu0 %1030
    %1032 = vrot.lane.b32.xlu0 %v1027, 64
    %v1033 = vpop.permute.xlu0 %1032
    %v1036 = vmul.f32 %v991, %v1031
    %v1037 = vmul.f32 %v995, %v1033
    %v1040 = vrot.slane %v957, 7
    %vm1041 = vcmask 1042434
    %v1042 = vsel %vm1041, %v1040, %v956
    %v1046 = vrot.slane %v1036, 5
    %v1047 = vrot.slane %v1037, 4
    %v1048 = vsel %vm1041, %v1047, %v1046
    %1049 = vrot.lane.b32.xlu0 %v1048, 64
    %v1050 = vpop.permute.xlu0 %1049
    %v1052 = vsel %vm303, %v1042, %v1050
    %v1053 = vpack.c.bf16 %v1052, %v1052
    %v1055 = vshrl.u32 %v1053, 16
    %v1057 = vshll.u32 %v1053, 16
    %v1059 = vrot.slane %v1057, 1
    %v1060 = vor.u32 %v1055, %v1059
    %1062 = vmatprep.subr.bf16.mxu0 %v491
    %1063 = vmatpush1.bf16.msra.mxu0 %v490
    %1064 = vmatprep.subr.bf16.mxu0 %v495
    %1065 = vmatpush1.bf16.msra.mxu0 %v494
    %1066 = vmatprep.subr.bf16.mxu0 %v499
    %1067 = vmatpush1.bf16.msra.mxu0 %v498
    %1068 = vmatprep.subr.bf16.mxu0 %v503
    %1069 = vmatpush1.bf16.msra.mxu0 %v502
    %1070 = vmatprep.subr.bf16.mxu0 %v507
    %1071 = vmatpush1.bf16.msra.mxu0 %v506
    %1072 = vmatprep.subr.bf16.mxu0 %v511
    %1073 = vmatpush1.bf16.msra.mxu0 %v510
    %1074 = vmatprep.subr.bf16.mxu0 %v515
    %1075 = vmatpush1.bf16.msra.mxu0 %v514
    %1076 = vmatprep.subr.bf16.mxu0 %v519
    %1077 = vmatpush1.bf16.msra.mxu0 %v518
    %1078 = vmatprep.subr.bf16.mxu0 0
    %1079 = vmatpush1.bf16.msra.mxu0 0
    %1080 = vmatprep.subr.bf16.mxu0 0
    %1081 = vmatpush1.bf16.msra.mxu0 0
    %1082 = vmatprep.subr.bf16.mxu0 0
    %1083 = vmatpush1.bf16.msra.mxu0 0
    %1084 = vmatprep.subr.bf16.mxu0 0
    %1085 = vmatpush1.bf16.msra.mxu0 0
    %1086 = vmatprep.subr.bf16.mxu0 0
    %1087 = vmatpush1.bf16.msra.mxu0 0
    %1088 = vmatprep.subr.bf16.mxu0 0
    %1089 = vmatpush1.bf16.msra.mxu0 0
    %1090 = vmatprep.subr.bf16.mxu0 0
    %1091 = vmatpush1.bf16.msra.mxu0 0
    %1092 = vmatprep.subr.bf16.mxu0 0
    %1093 = vmatpush1.bf16.msra.mxu0 0
    %1094 = vmatprep.mubr.bf16.mxu0 0
    %1095 = vmatmul.mubr.bf16.gmra.mrb[0].mxu0 %v1060
    %v1096 = vpop.f32.mrb[0].mxu0
    %v1097 = vadd.f32 0.0, %v1096
    %v1098 = vpop.f32.mrb[0].mxu0
    %v1099 = vadd.f32 0.0, %v1098
    %v1100 = vpop.f32.mrb[0].mxu0
    %v1101 = vpop.f32.mrb[0].mxu0
    %1102 = vdwg.mxu0
    %1103 = vmatprep.subr.bf16.mxu0 %v493
    %1104 = vmatpush1.bf16.msra.mxu0 %v492
    %1105 = vmatprep.subr.bf16.mxu0 %v497
    %1106 = vmatpush1.bf16.msra.mxu0 %v496
    %1107 = vmatprep.subr.bf16.mxu0 %v501
    %1108 = vmatpush1.bf16.msra.mxu0 %v500
    %1109 = vmatprep.subr.bf16.mxu0 %v505
    %1110 = vmatpush1.bf16.msra.mxu0 %v504
    %1111 = vmatprep.subr.bf16.mxu0 %v509
    %1112 = vmatpush1.bf16.msra.mxu0 %v508
    %1113 = vmatprep.subr.bf16.mxu0 %v513
    %1114 = vmatpush1.bf16.msra.mxu0 %v512
    %1115 = vmatprep.subr.bf16.mxu0 %v517
    %1116 = vmatpush1.bf16.msra.mxu0 %v516
    %1117 = vmatprep.subr.bf16.mxu0 %v521
    %1118 = vmatpush1.bf16.msra.mxu0 %v520
    %1119 = vmatprep.subr.bf16.mxu0 0
    %1120 = vmatpush1.bf16.msra.mxu0 0
    %1121 = vmatprep.subr.bf16.mxu0 0
    %1122 = vmatpush1.bf16.msra.mxu0 0
    %1123 = vmatprep.subr.bf16.mxu0 0
    %1124 = vmatpush1.bf16.msra.mxu0 0
    %1125 = vmatprep.subr.bf16.mxu0 0
    %1126 = vmatpush1.bf16.msra.mxu0 0
    %1127 = vmatprep.subr.bf16.mxu0 0
    %1128 = vmatpush1.bf16.msra.mxu0 0
    %1129 = vmatprep.subr.bf16.mxu0 0
    %1130 = vmatpush1.bf16.msra.mxu0 0
    %1131 = vmatprep.subr.bf16.mxu0 0
    %1132 = vmatpush1.bf16.msra.mxu0 0
    %1133 = vmatprep.subr.bf16.mxu0 0
    %1134 = vmatpush1.bf16.msra.mxu0 0
    %1135 = vmatprep.mubr.bf16.mxu0 0
    %1136 = vmatmul.mubr.bf16.gmra.mrb[0].mxu0 %v1060
    %v1137 = vpop.f32.mrb[0].mxu0
    %v1138 = vadd.f32 0.0, %v1137
    %v1139 = vpop.f32.mrb[0].mxu0
    %v1140 = vadd.f32 0.0, %v1139
    %v1141 = vpop.f32.mrb[0].mxu0
    %v1142 = vpop.f32.mrb[0].mxu0
    %1143 = vdwg.mxu0
    %v1146 = vrot.slane %v1097, 6
    %v1147 = vrot.slane %v1099, 6
    %v1148 = vrot.slane %v1097, 7
    %v1149 = vrot.slane %v1099, 7
    %v1154 = vadd.f32 %v342, %v1146
    %v1155 = vadd.f32 %v344, %v1147
    %v1156 = vadd.f32 %v346, %v1148
    %v1157 = vadd.f32 %v348, %v1149
    %v1158 = vxor.u32 %v1154, 2147483648
    %v1159 = vxor.u32 %v1155, 2147483648
    %v1160 = vxor.u32 %v1156, 2147483648
    %v1161 = vxor.u32 %v1157, 2147483648
    %v1162 = vmul.f32 %v1158, 1.442695
    %v1163 = vpow.pop %v1162
    %v1164 = vmul.f32 %v1159, 1.442695
    %v1165 = vpow.pop %v1164
    %v1166 = vmul.f32 %v1160, 1.442695
    %v1167 = vpow.pop %v1166
    %v1168 = vmul.f32 %v1161, 1.442695
    %v1169 = vpow.pop %v1168
    %v1170 = vadd.f32 %v1163, 1.0
    %v1171 = vadd.f32 %v1165, 1.0
    %v1172 = vadd.f32 %v1167, 1.0
    %v1173 = vadd.f32 %v1169, 1.0
    %v1174 = vrcp.pop %v1170
    %v1175 = vmul.f32 1.0, %v1174
    %v1176 = vrcp.pop %v1171
    %v1177 = vmul.f32 1.0, %v1176
    %v1178 = vrcp.pop %v1172
    %v1179 = vmul.f32 1.0, %v1178
    %v1180 = vrcp.pop %v1173
    %v1181 = vmul.f32 1.0, %v1180
    %v1182 = vtanh.pop %v1155
    %v1183 = vtanh.pop %v1157
    %v1186 = vrot.slane %v944, 7
    %v1187 = vrot.slane %v945, 7
    %v1190 = vmul.f32 %v1175, %v1186
    %v1191 = vmul.f32 %v1179, %v1187
    %1194 = vrot.lane.b32.xlu0 %v1182, 64
    %v1195 = vpop.permute.xlu0 %1194
    %1196 = vrot.lane.b32.xlu0 %v1183, 64
    %v1197 = vpop.permute.xlu0 %1196
    %v1200 = vmul.f32 %v1175, %v1195
    %v1201 = vmul.f32 %v1179, %v1197
    %1204 = vrot.lane.b32.xlu0 %v1200, 64
    %v1205 = vpop.permute.xlu0 %1204
    %1206 = vrot.lane.b32.xlu0 %v1201, 64
    %v1207 = vpop.permute.xlu0 %1206
    %v1210 = vadd.f32 %v1190, %v1205
    %v1211 = vadd.f32 %v1191, %v1207
    %v1212 = vtanh.pop %v1210
    %v1213 = vtanh.pop %v1211
    %1216 = vrot.lane.b32.xlu0 %v1212, 64
    %v1217 = vpop.permute.xlu0 %1216
    %1218 = vrot.lane.b32.xlu0 %v1213, 64
    %v1219 = vpop.permute.xlu0 %1218
    %v1222 = vmul.f32 %v1177, %v1217
    %v1223 = vmul.f32 %v1181, %v1219
    %v1226 = vrot.slane %v1138, 3
    %v1227 = vrot.slane %v1140, 3
    %v1228 = vrot.slane %v1138, 4
    %v1229 = vrot.slane %v1140, 4
    %v1234 = vadd.f32 %v385, %v1226
    %v1235 = vadd.f32 %v387, %v1227
    %v1236 = vadd.f32 %v389, %v1228
    %v1237 = vadd.f32 %v391, %v1229
    %v1238 = vxor.u32 %v1234, 2147483648
    %v1239 = vxor.u32 %v1235, 2147483648
    %v1240 = vxor.u32 %v1236, 2147483648
    %v1241 = vxor.u32 %v1237, 2147483648
    %v1242 = vmul.f32 %v1238, 1.442695
    %v1243 = vpow.pop %v1242
    %v1244 = vmul.f32 %v1239, 1.442695
    %v1245 = vpow.pop %v1244
    %v1246 = vmul.f32 %v1240, 1.442695
    %v1247 = vpow.pop %v1246
    %v1248 = vmul.f32 %v1241, 1.442695
    %v1249 = vpow.pop %v1248
    %v1250 = vadd.f32 %v1243, 1.0
    %v1251 = vadd.f32 %v1245, 1.0
    %v1252 = vadd.f32 %v1247, 1.0
    %v1253 = vadd.f32 %v1249, 1.0
    %v1254 = vrcp.pop %v1250
    %v1255 = vmul.f32 1.0, %v1254
    %v1256 = vrcp.pop %v1251
    %v1257 = vmul.f32 1.0, %v1256
    %v1258 = vrcp.pop %v1252
    %v1259 = vmul.f32 1.0, %v1258
    %v1260 = vrcp.pop %v1253
    %v1261 = vmul.f32 1.0, %v1260
    %v1262 = vtanh.pop %v1235
    %v1263 = vtanh.pop %v1237
    %v1266 = vrot.slane %v1024, 1
    %v1267 = vrot.slane %v1025, 1
    %v1270 = vmul.f32 %v1255, %v1266
    %v1271 = vmul.f32 %v1259, %v1267
    %1274 = vrot.lane.b32.xlu0 %v1262, 64
    %v1275 = vpop.permute.xlu0 %1274
    %1276 = vrot.lane.b32.xlu0 %v1263, 64
    %v1277 = vpop.permute.xlu0 %1276
    %v1280 = vmul.f32 %v1255, %v1275
    %v1281 = vmul.f32 %v1259, %v1277
    %1284 = vrot.lane.b32.xlu0 %v1280, 64
    %v1285 = vpop.permute.xlu0 %1284
    %1286 = vrot.lane.b32.xlu0 %v1281, 64
    %v1287 = vpop.permute.xlu0 %1286
    %v1290 = vadd.f32 %v1270, %v1285
    %v1291 = vadd.f32 %v1271, %v1287
    %v1292 = vtanh.pop %v1290
    %v1293 = vtanh.pop %v1291
    %1296 = vrot.lane.b32.xlu0 %v1292, 64
    %v1297 = vpop.permute.xlu0 %1296
    %1298 = vrot.lane.b32.xlu0 %v1293, 64
    %v1299 = vpop.permute.xlu0 %1298
    %v1302 = vmul.f32 %v1257, %v1297
    %v1303 = vmul.f32 %v1261, %v1299
    %v1306 = vrot.slane %v1223, 7
    %vm1307 = vcmask 1043459
    %v1308 = vsel %vm1307, %v1306, %v1222
    %v1312 = vrot.slane %v1302, 3
    %v1313 = vrot.slane %v1303, 2
    %v1314 = vsel %vm1307, %v1313, %v1312
    %1315 = vrot.lane.b32.xlu0 %v1314, 64
    %v1316 = vpop.permute.xlu0 %1315
    %v1318 = vsel %vm303, %v1308, %v1316
    %v1319 = vpack.c.bf16 %v1318, %v1318
    %v1321 = vrot.slane %v1319, 1
    %1323 = vmatprep.subr.bf16.mxu0 %v491
    %1324 = vmatpush1.bf16.msra.mxu0 %v490
    %1325 = vmatprep.subr.bf16.mxu0 %v495
    %1326 = vmatpush1.bf16.msra.mxu0 %v494
    %1327 = vmatprep.subr.bf16.mxu0 %v499
    %1328 = vmatpush1.bf16.msra.mxu0 %v498
    %1329 = vmatprep.subr.bf16.mxu0 %v503
    %1330 = vmatpush1.bf16.msra.mxu0 %v502
    %1331 = vmatprep.subr.bf16.mxu0 %v507
    %1332 = vmatpush1.bf16.msra.mxu0 %v506
    %1333 = vmatprep.subr.bf16.mxu0 %v511
    %1334 = vmatpush1.bf16.msra.mxu0 %v510
    %1335 = vmatprep.subr.bf16.mxu0 %v515
    %1336 = vmatpush1.bf16.msra.mxu0 %v514
    %1337 = vmatprep.subr.bf16.mxu0 %v519
    %1338 = vmatpush1.bf16.msra.mxu0 %v518
    %1339 = vmatprep.subr.bf16.mxu0 0
    %1340 = vmatpush1.bf16.msra.mxu0 0
    %1341 = vmatprep.subr.bf16.mxu0 0
    %1342 = vmatpush1.bf16.msra.mxu0 0
    %1343 = vmatprep.subr.bf16.mxu0 0
    %1344 = vmatpush1.bf16.msra.mxu0 0
    %1345 = vmatprep.subr.bf16.mxu0 0
    %1346 = vmatpush1.bf16.msra.mxu0 0
    %1347 = vmatprep.subr.bf16.mxu0 0
    %1348 = vmatpush1.bf16.msra.mxu0 0
    %1349 = vmatprep.subr.bf16.mxu0 0
    %1350 = vmatpush1.bf16.msra.mxu0 0
    %1351 = vmatprep.subr.bf16.mxu0 0
    %1352 = vmatpush1.bf16.msra.mxu0 0
    %1353 = vmatprep.subr.bf16.mxu0 0
    %1354 = vmatpush1.bf16.msra.mxu0 0
    %1355 = vmatprep.mubr.bf16.mxu0 0
    %1356 = vmatmul.mubr.bf16.gmra.mrb[0].mxu0 %v1321
    %v1357 = vpop.f32.mrb[0].mxu0
    %v1358 = vadd.f32 0.0, %v1357
    %v1359 = vpop.f32.mrb[0].mxu0
    %v1360 = vadd.f32 0.0, %v1359
    %v1361 = vpop.f32.mrb[0].mxu0
    %v1362 = vpop.f32.mrb[0].mxu0
    %1363 = vdwg.mxu0
    %1364 = vmatprep.subr.bf16.mxu0 %v493
    %1365 = vmatpush1.bf16.msra.mxu0 %v492
    %1366 = vmatprep.subr.bf16.mxu0 %v497
    %1367 = vmatpush1.bf16.msra.mxu0 %v496
    %1368 = vmatprep.subr.bf16.mxu0 %v501
    %1369 = vmatpush1.bf16.msra.mxu0 %v500
    %1370 = vmatprep.subr.bf16.mxu0 %v505
    %1371 = vmatpush1.bf16.msra.mxu0 %v504
    %1372 = vmatprep.subr.bf16.mxu0 %v509
    %1373 = vmatpush1.bf16.msra.mxu0 %v508
    %1374 = vmatprep.subr.bf16.mxu0 %v513
    %1375 = vmatpush1.bf16.msra.mxu0 %v512
    %1376 = vmatprep.subr.bf16.mxu0 %v517
    %1377 = vmatpush1.bf16.msra.mxu0 %v516
    %1378 = vmatprep.subr.bf16.mxu0 %v521
    %1379 = vmatpush1.bf16.msra.mxu0 %v520
    %1380 = vmatprep.subr.bf16.mxu0 0
    %1381 = vmatpush1.bf16.msra.mxu0 0
    %1382 = vmatprep.subr.bf16.mxu0 0
    %1383 = vmatpush1.bf16.msra.mxu0 0
    %1384 = vmatprep.subr.bf16.mxu0 0
    %1385 = vmatpush1.bf16.msra.mxu0 0
    %1386 = vmatprep.subr.bf16.mxu0 0
    %1387 = vmatpush1.bf16.msra.mxu0 0
    %1388 = vmatprep.subr.bf16.mxu0 0
    %1389 = vmatpush1.bf16.msra.mxu0 0
    %1390 = vmatprep.subr.bf16.mxu0 0
    %1391 = vmatpush1.bf16.msra.mxu0 0
    %1392 = vmatprep.subr.bf16.mxu0 0
    %1393 = vmatpush1.bf16.msra.mxu0 0
    %1394 = vmatprep.subr.bf16.mxu0 0
    %1395 = vmatpush1.bf16.msra.mxu0 0
    %1396 = vmatprep.mubr.bf16.mxu0 0
    %1397 = vmatmul.mubr.bf16.gmra.mrb[0].mxu0 %v1321
    %v1398 = vpop.f32.mrb[0].mxu0
    %v1399 = vadd.f32 0.0, %v1398
    %v1400 = vpop.f32.mrb[0].mxu0
    %v1401 = vadd.f32 0.0, %v1400
    %v1402 = vpop.f32.mrb[0].mxu0
    %v1403 = vpop.f32.mrb[0].mxu0
    %1404 = vdwg.mxu0
    %v1407 = vrot.slane %v1358, 5
    %v1408 = vrot.slane %v1360, 5
    %v1409 = vrot.slane %v1358, 6
    %v1410 = vrot.slane %v1360, 6
    %v1415 = vadd.f32 %v342, %v1407
    %v1416 = vadd.f32 %v344, %v1408
    %v1417 = vadd.f32 %v346, %v1409
    %v1418 = vadd.f32 %v348, %v1410
    %v1419 = vxor.u32 %v1415, 2147483648
    %v1420 = vxor.u32 %v1416, 2147483648
    %v1421 = vxor.u32 %v1417, 2147483648
    %v1422 = vxor.u32 %v1418, 2147483648
    %v1423 = vmul.f32 %v1419, 1.442695
    %v1424 = vpow.pop %v1423
    %v1425 = vmul.f32 %v1420, 1.442695
    %v1426 = vpow.pop %v1425
    %v1427 = vmul.f32 %v1421, 1.442695
    %v1428 = vpow.pop %v1427
    %v1429 = vmul.f32 %v1422, 1.442695
    %v1430 = vpow.pop %v1429
    %v1431 = vadd.f32 %v1424, 1.0
    %v1432 = vadd.f32 %v1426, 1.0
    %v1433 = vadd.f32 %v1428, 1.0
    %v1434 = vadd.f32 %v1430, 1.0
    %v1435 = vrcp.pop %v1431
    %v1436 = vmul.f32 1.0, %v1435
    %v1437 = vrcp.pop %v1432
    %v1438 = vmul.f32 1.0, %v1437
    %v1439 = vrcp.pop %v1433
    %v1440 = vmul.f32 1.0, %v1439
    %v1441 = vrcp.pop %v1434
    %v1442 = vmul.f32 1.0, %v1441
    %v1443 = vtanh.pop %v1416
    %v1444 = vtanh.pop %v1418
    %v1447 = vrot.slane %v1210, 7
    %v1448 = vrot.slane %v1211, 7
    %v1451 = vmul.f32 %v1436, %v1447
    %v1452 = vmul.f32 %v1440, %v1448
    %1455 = vrot.lane.b32.xlu0 %v1443, 64
    %v1456 = vpop.permute.xlu0 %1455
    %1457 = vrot.lane.b32.xlu0 %v1444, 64
    %v1458 = vpop.permute.xlu0 %1457
    %v1461 = vmul.f32 %v1436, %v1456
    %v1462 = vmul.f32 %v1440, %v1458
    %1465 = vrot.lane.b32.xlu0 %v1461, 64
    %v1466 = vpop.permute.xlu0 %1465
    %1467 = vrot.lane.b32.xlu0 %v1462, 64
    %v1468 = vpop.permute.xlu0 %1467
    %v1471 = vadd.f32 %v1451, %v1466
    %v1472 = vadd.f32 %v1452, %v1468
    %v1473 = vtanh.pop %v1471
    %v1474 = vtanh.pop %v1472
    %1477 = vrot.lane.b32.xlu0 %v1473, 64
    %v1478 = vpop.permute.xlu0 %1477
    %1479 = vrot.lane.b32.xlu0 %v1474, 64
    %v1480 = vpop.permute.xlu0 %1479
    %v1483 = vmul.f32 %v1438, %v1478
    %v1484 = vmul.f32 %v1442, %v1480
    %v1487 = vrot.slane %v1399, 4
    %v1488 = vrot.slane %v1401, 4
    %v1489 = vrot.slane %v1399, 5
    %v1490 = vrot.slane %v1401, 5
    %v1495 = vadd.f32 %v385, %v1487
    %v1496 = vadd.f32 %v387, %v1488
    %v1497 = vadd.f32 %v389, %v1489
    %v1498 = vadd.f32 %v391, %v1490
    %v1499 = vxor.u32 %v1495, 2147483648
    %v1500 = vxor.u32 %v1496, 2147483648
    %v1501 = vxor.u32 %v1497, 2147483648
    %v1502 = vxor.u32 %v1498, 2147483648
    %v1503 = vmul.f32 %v1499, 1.442695
    %v1504 = vpow.pop %v1503
    %v1505 = vmul.f32 %v1500, 1.442695
    %v1506 = vpow.pop %v1505
    %v1507 = vmul.f32 %v1501, 1.442695
    %v1508 = vpow.pop %v1507
    %v1509 = vmul.f32 %v1502, 1.442695
    %v1510 = vpow.pop %v1509
    %v1511 = vadd.f32 %v1504, 1.0
    %v1512 = vadd.f32 %v1506, 1.0
    %v1513 = vadd.f32 %v1508, 1.0
    %v1514 = vadd.f32 %v1510, 1.0
    %v1515 = vrcp.pop %v1511
    %v1516 = vmul.f32 1.0, %v1515
    %v1517 = vrcp.pop %v1512
    %v1518 = vmul.f32 1.0, %v1517
    %v1519 = vrcp.pop %v1513
    %v1520 = vmul.f32 1.0, %v1519
    %v1521 = vrcp.pop %v1514
    %v1522 = vmul.f32 1.0, %v1521
    %v1523 = vtanh.pop %v1496
    %v1524 = vtanh.pop %v1498
    %v1527 = vrot.slane %v1290, 1
    %v1528 = vrot.slane %v1291, 1
    %v1531 = vmul.f32 %v1516, %v1527
    %v1532 = vmul.f32 %v1520, %v1528
    %1535 = vrot.lane.b32.xlu0 %v1523, 64
    %v1536 = vpop.permute.xlu0 %1535
    %1537 = vrot.lane.b32.xlu0 %v1524, 64
    %v1538 = vpop.permute.xlu0 %1537
    %v1541 = vmul.f32 %v1516, %v1536
    %v1542 = vmul.f32 %v1520, %v1538
    %1545 = vrot.lane.b32.xlu0 %v1541, 64
    %v1546 = vpop.permute.xlu0 %1545
    %1547 = vrot.lane.b32.xlu0 %v1542, 64
    %v1548 = vpop.permute.xlu0 %1547
    %v1551 = vadd.f32 %v1531, %v1546
    %v1552 = vadd.f32 %v1532, %v1548
    %v1553 = vtanh.pop %v1551
    %v1554 = vtanh.pop %v1552
    %1557 = vrot.lane.b32.xlu0 %v1553, 64
    %v1558 = vpop.permute.xlu0 %1557
    %1559 = vrot.lane.b32.xlu0 %v1554, 64
    %v1560 = vpop.permute.xlu0 %1559
    %v1563 = vmul.f32 %v1518, %v1558
    %v1564 = vmul.f32 %v1522, %v1560
    %v1567 = vrot.slane %v1484, 7
    %vm1568 = vcmask 1044484
    %v1569 = vsel %vm1568, %v1567, %v1483
    %v1573 = vrot.slane %v1563, 1
    %v1574 = vsel %vm1568, %v1564, %v1573
    %1575 = vrot.lane.b32.xlu0 %v1574, 64
    %v1576 = vpop.permute.xlu0 %1575
    %v1578 = vsel %vm303, %v1569, %v1576
    %v1579 = vpack.c.bf16 %v1578, %v1578
    %v1581 = vshrl.u32 %v1579, 16
    %v1583 = vrot.slane %v1581, 1
    %v1584 = vshll.u32 %v1579, 16
    %v1586 = vrot.slane %v1584, 2
    %v1587 = vor.u32 %v1583, %v1586
    %1589 = vmatprep.subr.bf16.mxu0 %v491
    %1590 = vmatpush1.bf16.msra.mxu0 %v490
    %1591 = vmatprep.subr.bf16.mxu0 %v495
    %1592 = vmatpush1.bf16.msra.mxu0 %v494
    %1593 = vmatprep.subr.bf16.mxu0 %v499
    %1594 = vmatpush1.bf16.msra.mxu0 %v498
    %1595 = vmatprep.subr.bf16.mxu0 %v503
    %1596 = vmatpush1.bf16.msra.mxu0 %v502
    %1597 = vmatprep.subr.bf16.mxu0 %v507
    %1598 = vmatpush1.bf16.msra.mxu0 %v506
    %1599 = vmatprep.subr.bf16.mxu0 %v511
    %1600 = vmatpush1.bf16.msra.mxu0 %v510
    %1601 = vmatprep.subr.bf16.mxu0 %v515
    %1602 = vmatpush1.bf16.msra.mxu0 %v514
    %1603 = vmatprep.subr.bf16.mxu0 %v519
    %1604 = vmatpush1.bf16.msra.mxu0 %v518
    %1605 = vmatprep.subr.bf16.mxu0 0
    %1606 = vmatpush1.bf16.msra.mxu0 0
    %1607 = vmatprep.subr.bf16.mxu0 0
    %1608 = vmatpush1.bf16.msra.mxu0 0
    %1609 = vmatprep.subr.bf16.mxu0 0
    %1610 = vmatpush1.bf16.msra.mxu0 0
    %1611 = vmatprep.subr.bf16.mxu0 0
    %1612 = vmatpush1.bf16.msra.mxu0 0
    %1613 = vmatprep.subr.bf16.mxu0 0
    %1614 = vmatpush1.bf16.msra.mxu0 0
    %1615 = vmatprep.subr.bf16.mxu0 0
    %1616 = vmatpush1.bf16.msra.mxu0 0
    %1617 = vmatprep.subr.bf16.mxu0 0
    %1618 = vmatpush1.bf16.msra.mxu0 0
    %1619 = vmatprep.subr.bf16.mxu0 0
    %1620 = vmatpush1.bf16.msra.mxu0 0
    %1621 = vmatprep.mubr.bf16.mxu0 0
    %1622 = vmatmul.mubr.bf16.gmra.mrb[0].mxu0 %v1587
    %v1623 = vpop.f32.mrb[0].mxu0
    %v1624 = vadd.f32 0.0, %v1623
    %v1625 = vpop.f32.mrb[0].mxu0
    %v1626 = vadd.f32 0.0, %v1625
    %v1627 = vpop.f32.mrb[0].mxu0
    %v1628 = vpop.f32.mrb[0].mxu0
    %1629 = vdwg.mxu0
    %1630 = vmatprep.subr.bf16.mxu0 %v493
    %1631 = vmatpush1.bf16.msra.mxu0 %v492
    %1632 = vmatprep.subr.bf16.mxu0 %v497
    %1633 = vmatpush1.bf16.msra.mxu0 %v496
    %1634 = vmatprep.subr.bf16.mxu0 %v501
    %1635 = vmatpush1.bf16.msra.mxu0 %v500
    %1636 = vmatprep.subr.bf16.mxu0 %v505
    %1637 = vmatpush1.bf16.msra.mxu0 %v504
    %1638 = vmatprep.subr.bf16.mxu0 %v509
    %1639 = vmatpush1.bf16.msra.mxu0 %v508
    %1640 = vmatprep.subr.bf16.mxu0 %v513
    %1641 = vmatpush1.bf16.msra.mxu0 %v512
    %1642 = vmatprep.subr.bf16.mxu0 %v517
    %1643 = vmatpush1.bf16.msra.mxu0 %v516
    %1644 = vmatprep.subr.bf16.mxu0 %v521
    %1645 = vmatpush1.bf16.msra.mxu0 %v520
    %1646 = vmatprep.subr.bf16.mxu0 0
    %1647 = vmatpush1.bf16.msra.mxu0 0
    %1648 = vmatprep.subr.bf16.mxu0 0
    %1649 = vmatpush1.bf16.msra.mxu0 0
    %1650 = vmatprep.subr.bf16.mxu0 0
    %1651 = vmatpush1.bf16.msra.mxu0 0
    %1652 = vmatprep.subr.bf16.mxu0 0
    %1653 = vmatpush1.bf16.msra.mxu0 0
    %1654 = vmatprep.subr.bf16.mxu0 0
    %1655 = vmatpush1.bf16.msra.mxu0 0
    %1656 = vmatprep.subr.bf16.mxu0 0
    %1657 = vmatpush1.bf16.msra.mxu0 0
    %1658 = vmatprep.subr.bf16.mxu0 0
    %1659 = vmatpush1.bf16.msra.mxu0 0
    %1660 = vmatprep.subr.bf16.mxu0 0
    %1661 = vmatpush1.bf16.msra.mxu0 0
    %1662 = vmatprep.mubr.bf16.mxu0 0
    %1663 = vmatmul.mubr.bf16.gmra.mrb[0].mxu0 %v1587
    %v1664 = vpop.f32.mrb[0].mxu0
    %v1665 = vadd.f32 0.0, %v1664
    %v1666 = vpop.f32.mrb[0].mxu0
    %v1667 = vadd.f32 0.0, %v1666
    %v1668 = vpop.f32.mrb[0].mxu0
    %v1669 = vpop.f32.mrb[0].mxu0
    %1670 = vdwg.mxu0
    %v1673 = vrot.slane %v1624, 4
    %v1674 = vrot.slane %v1626, 4
    %v1675 = vrot.slane %v1624, 5
    %v1676 = vrot.slane %v1626, 5
    %v1681 = vadd.f32 %v342, %v1673
    %v1682 = vadd.f32 %v344, %v1674
    %v1683 = vadd.f32 %v346, %v1675
    %v1684 = vadd.f32 %v348, %v1676
    %v1685 = vxor.u32 %v1681, 2147483648
    %v1686 = vxor.u32 %v1682, 2147483648
    %v1687 = vxor.u32 %v1683, 2147483648
    %v1688 = vxor.u32 %v1684, 2147483648
    %v1689 = vmul.f32 %v1685, 1.442695
    %v1690 = vpow.pop %v1689
    %v1691 = vmul.f32 %v1686, 1.442695
    %v1692 = vpow.pop %v1691
    %v1693 = vmul.f32 %v1687, 1.442695
    %v1694 = vpow.pop %v1693
    %v1695 = vmul.f32 %v1688, 1.442695
    %v1696 = vpow.pop %v1695
    %v1697 = vadd.f32 %v1690, 1.0
    %v1698 = vadd.f32 %v1692, 1.0
    %v1699 = vadd.f32 %v1694, 1.0
    %v1700 = vadd.f32 %v1696, 1.0
    %v1701 = vrcp.pop %v1697
    %v1702 = vmul.f32 1.0, %v1701
    %v1703 = vrcp.pop %v1698
    %v1704 = vmul.f32 1.0, %v1703
    %v1705 = vrcp.pop %v1699
    %v1706 = vmul.f32 1.0, %v1705
    %v1707 = vrcp.pop %v1700
    %v1708 = vmul.f32 1.0, %v1707
    %v1709 = vtanh.pop %v1682
    %v1710 = vtanh.pop %v1684
    %v1713 = vrot.slane %v1471, 7
    %v1714 = vrot.slane %v1472, 7
    %v1717 = vmul.f32 %v1702, %v1713
    %v1718 = vmul.f32 %v1706, %v1714
    %1721 = vrot.lane.b32.xlu0 %v1709, 64
    %v1722 = vpop.permute.xlu0 %1721
    %1723 = vrot.lane.b32.xlu0 %v1710, 64
    %v1724 = vpop.permute.xlu0 %1723
    %v1727 = vmul.f32 %v1702, %v1722
    %v1728 = vmul.f32 %v1706, %v1724
    %1731 = vrot.lane.b32.xlu0 %v1727, 64
    %v1732 = vpop.permute.xlu0 %1731
    %1733 = vrot.lane.b32.xlu0 %v1728, 64
    %v1734 = vpop.permute.xlu0 %1733
    %v1737 = vadd.f32 %v1717, %v1732
    %v1738 = vadd.f32 %v1718, %v1734
    %v1739 = vtanh.pop %v1737
    %v1740 = vtanh.pop %v1738
    %1743 = vrot.lane.b32.xlu0 %v1739, 64
    %v1744 = vpop.permute.xlu0 %1743
    %1745 = vrot.lane.b32.xlu0 %v1740, 64
    %v1746 = vpop.permute.xlu0 %1745
    %v1749 = vmul.f32 %v1704, %v1744
    %v1750 = vmul.f32 %v1708, %v1746
    %v1753 = vrot.slane %v1665, 5
    %v1754 = vrot.slane %v1667, 5
    %v1755 = vrot.slane %v1665, 6
    %v1756 = vrot.slane %v1667, 6
    %v1761 = vadd.f32 %v385, %v1753
    %v1762 = vadd.f32 %v387, %v1754
    %v1763 = vadd.f32 %v389, %v1755
    %v1764 = vadd.f32 %v391, %v1756
    %v1765 = vxor.u32 %v1761, 2147483648
    %v1766 = vxor.u32 %v1762, 2147483648
    %v1767 = vxor.u32 %v1763, 2147483648
    %v1768 = vxor.u32 %v1764, 2147483648
    %v1769 = vmul.f32 %v1765, 1.442695
    %v1770 = vpow.pop %v1769
    %v1771 = vmul.f32 %v1766, 1.442695
    %v1772 = vpow.pop %v1771
    %v1773 = vmul.f32 %v1767, 1.442695
    %v1774 = vpow.pop %v1773
    %v1775 = vmul.f32 %v1768, 1.442695
    %v1776 = vpow.pop %v1775
    %v1777 = vadd.f32 %v1770, 1.0
    %v1778 = vadd.f32 %v1772, 1.0
    %v1779 = vadd.f32 %v1774, 1.0
    %v1780 = vadd.f32 %v1776, 1.0
    %v1781 = vrcp.pop %v1777
    %v1782 = vmul.f32 1.0, %v1781
    %v1783 = vrcp.pop %v1778
    %v1784 = vmul.f32 1.0, %v1783
    %v1785 = vrcp.pop %v1779
    %v1786 = vmul.f32 1.0, %v1785
    %v1787 = vrcp.pop %v1780
    %v1788 = vmul.f32 1.0, %v1787
    %v1789 = vtanh.pop %v1762
    %v1790 = vtanh.pop %v1764
    %v1793 = vrot.slane %v1551, 1
    %v1794 = vrot.slane %v1552, 1
    %v1797 = vmul.f32 %v1782, %v1793
    %v1798 = vmul.f32 %v1786, %v1794
    %1801 = vrot.lane.b32.xlu0 %v1789, 64
    %v1802 = vpop.permute.xlu0 %1801
    %1803 = vrot.lane.b32.xlu0 %v1790, 64
    %v1804 = vpop.permute.xlu0 %1803
    %v1807 = vmul.f32 %v1782, %v1802
    %v1808 = vmul.f32 %v1786, %v1804
    %1811 = vrot.lane.b32.xlu0 %v1807, 64
    %v1812 = vpop.permute.xlu0 %1811
    %1813 = vrot.lane.b32.xlu0 %v1808, 64
    %v1814 = vpop.permute.xlu0 %1813
    %v1817 = vadd.f32 %v1797, %v1812
    %v1818 = vadd.f32 %v1798, %v1814
    %v1819 = vtanh.pop %v1817
    %v1820 = vtanh.pop %v1818
    %1823 = vrot.lane.b32.xlu0 %v1819, 64
    %v1824 = vpop.permute.xlu0 %1823
    %1825 = vrot.lane.b32.xlu0 %v1820, 64
    %v1826 = vpop.permute.xlu0 %1825
    %v1829 = vmul.f32 %v1784, %v1824
    %v1830 = vmul.f32 %v1788, %v1826
    %v1833 = vrot.slane %v1750, 7
    %vm1834 = vcmask 1045509
    %v1835 = vsel %vm1834, %v1833, %v1749
    %v1839 = vrot.slane %v1829, 7
    %v1840 = vrot.slane %v1830, 6
    %v1841 = vsel %vm1834, %v1840, %v1839
    %1842 = vrot.lane.b32.xlu0 %v1841, 64
    %v1843 = vpop.permute.xlu0 %1842
    %v1845 = vsel %vm303, %v1835, %v1843
    %v1846 = vpack.c.bf16 %v1845, %v1845
    %v1848 = vrot.slane %v1846, 2
    %1850 = vmatprep.subr.bf16.mxu0 %v491
    %1851 = vmatpush1.bf16.msra.mxu0 %v490
    %1852 = vmatprep.subr.bf16.mxu0 %v495
    %1853 = vmatpush1.bf16.msra.mxu0 %v494
    %1854 = vmatprep.subr.bf16.mxu0 %v499
    %1855 = vmatpush1.bf16.msra.mxu0 %v498
    %1856 = vmatprep.subr.bf16.mxu0 %v503
    %1857 = vmatpush1.bf16.msra.mxu0 %v502
    %1858 = vmatprep.subr.bf16.mxu0 %v507
    %1859 = vmatpush1.bf16.msra.mxu0 %v506
    %1860 = vmatprep.subr.bf16.mxu0 %v511
    %1861 = vmatpush1.bf16.msra.mxu0 %v510
    %1862 = vmatprep.subr.bf16.mxu0 %v515
    %1863 = vmatpush1.bf16.msra.mxu0 %v514
    %1864 = vmatprep.subr.bf16.mxu0 %v519
    %1865 = vmatpush1.bf16.msra.mxu0 %v518
    %1866 = vmatprep.subr.bf16.mxu0 0
    %1867 = vmatpush1.bf16.msra.mxu0 0
    %1868 = vmatprep.subr.bf16.mxu0 0
    %1869 = vmatpush1.bf16.msra.mxu0 0
    %1870 = vmatprep.subr.bf16.mxu0 0
    %1871 = vmatpush1.bf16.msra.mxu0 0
    %1872 = vmatprep.subr.bf16.mxu0 0
    %1873 = vmatpush1.bf16.msra.mxu0 0
    %1874 = vmatprep.subr.bf16.mxu0 0
    %1875 = vmatpush1.bf16.msra.mxu0 0
    %1876 = vmatprep.subr.bf16.mxu0 0
    %1877 = vmatpush1.bf16.msra.mxu0 0
    %1878 = vmatprep.subr.bf16.mxu0 0
    %1879 = vmatpush1.bf16.msra.mxu0 0
    %1880 = vmatprep.subr.bf16.mxu0 0
    %1881 = vmatpush1.bf16.msra.mxu0 0
    %1882 = vmatprep.mubr.bf16.mxu0 0
    %1883 = vmatmul.mubr.bf16.gmra.mrb[0].mxu0 %v1848
    %v1884 = vpop.f32.mrb[0].mxu0
    %v1885 = vadd.f32 0.0, %v1884
    %v1886 = vpop.f32.mrb[0].mxu0
    %v1887 = vadd.f32 0.0, %v1886
    %v1888 = vpop.f32.mrb[0].mxu0
    %v1889 = vpop.f32.mrb[0].mxu0
    %1890 = vdwg.mxu0
    %1891 = vmatprep.subr.bf16.mxu0 %v493
    %1892 = vmatpush1.bf16.msra.mxu0 %v492
    %1893 = vmatprep.subr.bf16.mxu0 %v497
    %1894 = vmatpush1.bf16.msra.mxu0 %v496
    %1895 = vmatprep.subr.bf16.mxu0 %v501
    %1896 = vmatpush1.bf16.msra.mxu0 %v500
    %1897 = vmatprep.subr.bf16.mxu0 %v505
    %1898 = vmatpush1.bf16.msra.mxu0 %v504
    %1899 = vmatprep.subr.bf16.mxu0 %v509
    %1900 = vmatpush1.bf16.msra.mxu0 %v508
    %1901 = vmatprep.subr.bf16.mxu0 %v513
    %1902 = vmatpush1.bf16.msra.mxu0 %v512
    %1903 = vmatprep.subr.bf16.mxu0 %v517
    %1904 = vmatpush1.bf16.msra.mxu0 %v516
    %1905 = vmatprep.subr.bf16.mxu0 %v521
    %1906 = vmatpush1.bf16.msra.mxu0 %v520
    %1907 = vmatprep.subr.bf16.mxu0 0
    %1908 = vmatpush1.bf16.msra.mxu0 0
    %1909 = vmatprep.subr.bf16.mxu0 0
    %1910 = vmatpush1.bf16.msra.mxu0 0
    %1911 = vmatprep.subr.bf16.mxu0 0
    %1912 = vmatpush1.bf16.msra.mxu0 0
    %1913 = vmatprep.subr.bf16.mxu0 0
    %1914 = vmatpush1.bf16.msra.mxu0 0
    %1915 = vmatprep.subr.bf16.mxu0 0
    %1916 = vmatpush1.bf16.msra.mxu0 0
    %1917 = vmatprep.subr.bf16.mxu0 0
    %1918 = vmatpush1.bf16.msra.mxu0 0
    %1919 = vmatprep.subr.bf16.mxu0 0
    %1920 = vmatpush1.bf16.msra.mxu0 0
    %1921 = vmatprep.subr.bf16.mxu0 0
    %1922 = vmatpush1.bf16.msra.mxu0 0
    %1923 = vmatprep.mubr.bf16.mxu0 0
    %1924 = vmatmul.mubr.bf16.gmra.mrb[0].mxu0 %v1848
    %v1925 = vpop.f32.mrb[0].mxu0
    %v1926 = vadd.f32 0.0, %v1925
    %v1927 = vpop.f32.mrb[0].mxu0
    %v1928 = vadd.f32 0.0, %v1927
    %v1929 = vpop.f32.mrb[0].mxu0
    %v1930 = vpop.f32.mrb[0].mxu0
    %1931 = vdwg.mxu0
    %v1934 = vrot.slane %v1885, 3
    %v1935 = vrot.slane %v1887, 3
    %v1936 = vrot.slane %v1885, 4
    %v1937 = vrot.slane %v1887, 4
    %v1942 = vadd.f32 %v342, %v1934
    %v1943 = vadd.f32 %v344, %v1935
    %v1944 = vadd.f32 %v346, %v1936
    %v1945 = vadd.f32 %v348, %v1937
    %v1946 = vxor.u32 %v1942, 2147483648
    %v1947 = vxor.u32 %v1943, 2147483648
    %v1948 = vxor.u32 %v1944, 2147483648
    %v1949 = vxor.u32 %v1945, 2147483648
    %v1950 = vmul.f32 %v1946, 1.442695
    %v1951 = vpow.pop %v1950
    %v1952 = vmul.f32 %v1947, 1.442695
    %v1953 = vpow.pop %v1952
    %v1954 = vmul.f32 %v1948, 1.442695
    %v1955 = vpow.pop %v1954
    %v1956 = vmul.f32 %v1949, 1.442695
    %v1957 = vpow.pop %v1956
    %v1958 = vadd.f32 %v1951, 1.0
    %v1959 = vadd.f32 %v1953, 1.0
    %v1960 = vadd.f32 %v1955, 1.0
    %v1961 = vadd.f32 %v1957, 1.0
    %v1962 = vrcp.pop %v1958
    %v1963 = vmul.f32 1.0, %v1962
    %v1964 = vrcp.pop %v1959
    %v1965 = vmul.f32 1.0, %v1964
    %v1966 = vrcp.pop %v1960
    %v1967 = vmul.f32 1.0, %v1966
    %v1968 = vrcp.pop %v1961
    %v1969 = vmul.f32 1.0, %v1968
    %v1970 = vtanh.pop %v1943
    %v1971 = vtanh.pop %v1945
    %v1974 = vrot.slane %v1737, 7
    %v1975 = vrot.slane %v1738, 7
    %v1978 = vmul.f32 %v1963, %v1974
    %v1979 = vmul.f32 %v1967, %v1975
    %1982 = vrot.lane.b32.xlu0 %v1970, 64
    %v1983 = vpop.permute.xlu0 %1982
    %1984 = vrot.lane.b32.xlu0 %v1971, 64
    %v1985 = vpop.permute.xlu0 %1984
    %v1988 = vmul.f32 %v1963, %v1983
    %v1989 = vmul.f32 %v1967, %v1985
    %1992 = vrot.lane.b32.xlu0 %v1988, 64
    %v1993 = vpop.permute.xlu0 %1992
    %1994 = vrot.lane.b32.xlu0 %v1989, 64
    %v1995 = vpop.permute.xlu0 %1994
    %v1998 = vadd.f32 %v1978, %v1993
    %v1999 = vadd.f32 %v1979, %v1995
    %v2000 = vtanh.pop %v1998
    %v2001 = vtanh.pop %v1999
    %2004 = vrot.lane.b32.xlu0 %v2000, 64
    %v2005 = vpop.permute.xlu0 %2004
    %2006 = vrot.lane.b32.xlu0 %v2001, 64
    %v2007 = vpop.permute.xlu0 %2006
    %v2010 = vmul.f32 %v1965, %v2005
    %v2011 = vmul.f32 %v1969, %v2007
    %v2014 = vrot.slane %v1926, 6
    %v2015 = vrot.slane %v1928, 6
    %v2016 = vrot.slane %v1926, 7
    %v2017 = vrot.slane %v1928, 7
    %v2022 = vadd.f32 %v385, %v2014
    %v2023 = vadd.f32 %v387, %v2015
    %v2024 = vadd.f32 %v389, %v2016
    %v2025 = vadd.f32 %v391, %v2017
    %v2026 = vxor.u32 %v2022, 2147483648
    %v2027 = vxor.u32 %v2023, 2147483648
    %v2028 = vxor.u32 %v2024, 2147483648
    %v2029 = vxor.u32 %v2025, 2147483648
    %v2030 = vmul.f32 %v2026, 1.442695
    %v2031 = vpow.pop %v2030
    %v2032 = vmul.f32 %v2027, 1.442695
    %v2033 = vpow.pop %v2032
    %v2034 = vmul.f32 %v2028, 1.442695
    %v2035 = vpow.pop %v2034
    %v2036 = vmul.f32 %v2029, 1.442695
    %v2037 = vpow.pop %v2036
    %v2038 = vadd.f32 %v2031, 1.0
    %v2039 = vadd.f32 %v2033, 1.0
    %v2040 = vadd.f32 %v2035, 1.0
    %v2041 = vadd.f32 %v2037, 1.0
    %v2042 = vrcp.pop %v2038
    %v2043 = vmul.f32 1.0, %v2042
    %v2044 = vrcp.pop %v2039
    %v2045 = vmul.f32 1.0, %v2044
    %v2046 = vrcp.pop %v2040
    %v2047 = vmul.f32 1.0, %v2046
    %v2048 = vrcp.pop %v2041
    %v2049 = vmul.f32 1.0, %v2048
    %v2050 = vtanh.pop %v2023
    %v2051 = vtanh.pop %v2025
    %v2054 = vrot.slane %v1817, 1
    %v2055 = vrot.slane %v1818, 1
    %v2058 = vmul.f32 %v2043, %v2054
    %v2059 = vmul.f32 %v2047, %v2055
    %2062 = vrot.lane.b32.xlu0 %v2050, 64
    %v2063 = vpop.permute.xlu0 %2062
    %2064 = vrot.lane.b32.xlu0 %v2051, 64
    %v2065 = vpop.permute.xlu0 %2064
    %v2068 = vmul.f32 %v2043, %v2063
    %v2069 = vmul.f32 %v2047, %v2065
    %2072 = vrot.lane.b32.xlu0 %v2068, 64
    %v2073 = vpop.permute.xlu0 %2072
    %2074 = vrot.lane.b32.xlu0 %v2069, 64
    %v2075 = vpop.permute.xlu0 %2074
    %v2078 = vadd.f32 %v2058, %v2073
    %v2079 = vadd.f32 %v2059, %v2075
    %v2080 = vtanh.pop %v2078
    %v2081 = vtanh.pop %v2079
    %2084 = vrot.lane.b32.xlu0 %v2080, 64
    %v2085 = vpop.permute.xlu0 %2084
    %2086 = vrot.lane.b32.xlu0 %v2081, 64
    %v2087 = vpop.permute.xlu0 %2086
    %v2090 = vmul.f32 %v2045, %v2085
    %v2091 = vmul.f32 %v2049, %v2087
    %v2094 = vrot.slane %v2011, 7
    %vm2095 = vcmask 1046534
    %v2096 = vsel %vm2095, %v2094, %v2010
    %v2100 = vrot.slane %v2090, 5
    %v2101 = vrot.slane %v2091, 4
    %v2102 = vsel %vm2095, %v2101, %v2100
    %2103 = vrot.lane.b32.xlu0 %v2102, 64
    %v2104 = vpop.permute.xlu0 %2103
    %v2106 = vsel %vm303, %v2096, %v2104
    %v2107 = vpack.c.bf16 %v2106, %v2106
    %v2109 = vshrl.u32 %v2107, 16
    %v2111 = vrot.slane %v2109, 2
    %v2112 = vshll.u32 %v2107, 16
    %v2114 = vrot.slane %v2112, 3
    %v2115 = vor.u32 %v2111, %v2114
    %2117 = vmatprep.subr.bf16.mxu0 %v491
    %2118 = vmatpush1.bf16.msra.mxu0 %v490
    %2119 = vmatprep.subr.bf16.mxu0 %v495
    %2120 = vmatpush1.bf16.msra.mxu0 %v494
    %2121 = vmatprep.subr.bf16.mxu0 %v499
    %2122 = vmatpush1.bf16.msra.mxu0 %v498
    %2123 = vmatprep.subr.bf16.mxu0 %v503
    %2124 = vmatpush1.bf16.msra.mxu0 %v502
    %2125 = vmatprep.subr.bf16.mxu0 %v507
    %2126 = vmatpush1.bf16.msra.mxu0 %v506
    %2127 = vmatprep.subr.bf16.mxu0 %v511
    %2128 = vmatpush1.bf16.msra.mxu0 %v510
    %2129 = vmatprep.subr.bf16.mxu0 %v515
    %2130 = vmatpush1.bf16.msra.mxu0 %v514
    %2131 = vmatprep.subr.bf16.mxu0 %v519
    %2132 = vmatpush1.bf16.msra.mxu0 %v518
    %2133 = vmatprep.subr.bf16.mxu0 0
    %2134 = vmatpush1.bf16.msra.mxu0 0
    %2135 = vmatprep.subr.bf16.mxu0 0
    %2136 = vmatpush1.bf16.msra.mxu0 0
    %2137 = vmatprep.subr.bf16.mxu0 0
    %2138 = vmatpush1.bf16.msra.mxu0 0
    %2139 = vmatprep.subr.bf16.mxu0 0
    %2140 = vmatpush1.bf16.msra.mxu0 0
    %2141 = vmatprep.subr.bf16.mxu0 0
    %2142 = vmatpush1.bf16.msra.mxu0 0
    %2143 = vmatprep.subr.bf16.mxu0 0
    %2144 = vmatpush1.bf16.msra.mxu0 0
    %2145 = vmatprep.subr.bf16.mxu0 0
    %2146 = vmatpush1.bf16.msra.mxu0 0
    %2147 = vmatprep.subr.bf16.mxu0 0
    %2148 = vmatpush1.bf16.msra.mxu0 0
    %2149 = vmatprep.mubr.bf16.mxu0 0
    %2150 = vmatmul.mubr.bf16.gmra.mrb[0].mxu0 %v2115
    %v2151 = vpop.f32.mrb[0].mxu0
    %v2152 = vadd.f32 0.0, %v2151
    %v2153 = vpop.f32.mrb[0].mxu0
    %v2154 = vadd.f32 0.0, %v2153
    %v2155 = vpop.f32.mrb[0].mxu0
    %v2156 = vpop.f32.mrb[0].mxu0
    %2157 = vdwg.mxu0
    %2158 = vmatprep.subr.bf16.mxu0 %v493
    %2159 = vmatpush1.bf16.msra.mxu0 %v492
    %2160 = vmatprep.subr.bf16.mxu0 %v497
    %2161 = vmatpush1.bf16.msra.mxu0 %v496
    %2162 = vmatprep.subr.bf16.mxu0 %v501
    %2163 = vmatpush1.bf16.msra.mxu0 %v500
    %2164 = vmatprep.subr.bf16.mxu0 %v505
    %2165 = vmatpush1.bf16.msra.mxu0 %v504
    %2166 = vmatprep.subr.bf16.mxu0 %v509
    %2167 = vmatpush1.bf16.msra.mxu0 %v508
    %2168 = vmatprep.subr.bf16.mxu0 %v513
    %2169 = vmatpush1.bf16.msra.mxu0 %v512
    %2170 = vmatprep.subr.bf16.mxu0 %v517
    %2171 = vmatpush1.bf16.msra.mxu0 %v516
    %2172 = vmatprep.subr.bf16.mxu0 %v521
    %2173 = vmatpush1.bf16.msra.mxu0 %v520
    %2174 = vmatprep.subr.bf16.mxu0 0
    %2175 = vmatpush1.bf16.msra.mxu0 0
    %2176 = vmatprep.subr.bf16.mxu0 0
    %2177 = vmatpush1.bf16.msra.mxu0 0
    %2178 = vmatprep.subr.bf16.mxu0 0
    %2179 = vmatpush1.bf16.msra.mxu0 0
    %2180 = vmatprep.subr.bf16.mxu0 0
    %2181 = vmatpush1.bf16.msra.mxu0 0
    %2182 = vmatprep.subr.bf16.mxu0 0
    %2183 = vmatpush1.bf16.msra.mxu0 0
    %2184 = vmatprep.subr.bf16.mxu0 0
    %2185 = vmatpush1.bf16.msra.mxu0 0
    %2186 = vmatprep.subr.bf16.mxu0 0
    %2187 = vmatpush1.bf16.msra.mxu0 0
    %2188 = vmatprep.subr.bf16.mxu0 0
    %2189 = vmatpush1.bf16.msra.mxu0 0
    %2190 = vmatprep.mubr.bf16.mxu0 0
    %2191 = vmatmul.mubr.bf16.gmra.mrb[0].mxu0 %v2115
    %v2192 = vpop.f32.mrb[0].mxu0
    %v2193 = vadd.f32 0.0, %v2192
    %v2194 = vpop.f32.mrb[0].mxu0
    %v2195 = vadd.f32 0.0, %v2194
    %v2196 = vpop.f32.mrb[0].mxu0
    %v2197 = vpop.f32.mrb[0].mxu0
    %2198 = vdwg.mxu0
    %v2201 = vrot.slane %v2152, 2
    %v2202 = vrot.slane %v2154, 2
    %v2203 = vrot.slane %v2152, 3
    %v2204 = vrot.slane %v2154, 3
    %v2209 = vadd.f32 %v342, %v2201
    %v2210 = vadd.f32 %v344, %v2202
    %v2211 = vadd.f32 %v346, %v2203
    %v2212 = vadd.f32 %v348, %v2204
    %v2213 = vxor.u32 %v2209, 2147483648
    %v2214 = vxor.u32 %v2210, 2147483648
    %v2215 = vxor.u32 %v2211, 2147483648
    %v2216 = vxor.u32 %v2212, 2147483648
    %v2217 = vmul.f32 %v2213, 1.442695
    %v2218 = vpow.pop %v2217
    %v2219 = vmul.f32 %v2214, 1.442695
    %v2220 = vpow.pop %v2219
    %v2221 = vmul.f32 %v2215, 1.442695
    %v2222 = vpow.pop %v2221
    %v2223 = vmul.f32 %v2216, 1.442695
    %v2224 = vpow.pop %v2223
    %v2225 = vadd.f32 %v2218, 1.0
    %v2226 = vadd.f32 %v2220, 1.0
    %v2227 = vadd.f32 %v2222, 1.0
    %v2228 = vadd.f32 %v2224, 1.0
    %v2229 = vrcp.pop %v2225
    %v2230 = vmul.f32 1.0, %v2229
    %v2231 = vrcp.pop %v2226
    %v2232 = vmul.f32 1.0, %v2231
    %v2233 = vrcp.pop %v2227
    %v2234 = vmul.f32 1.0, %v2233
    %v2235 = vrcp.pop %v2228
    %v2236 = vmul.f32 1.0, %v2235
    %v2237 = vtanh.pop %v2210
    %v2238 = vtanh.pop %v2212
    %v2241 = vrot.slane %v1998, 7
    %v2242 = vrot.slane %v1999, 7
    %v2245 = vmul.f32 %v2230, %v2241
    %v2246 = vmul.f32 %v2234, %v2242
    %2249 = vrot.lane.b32.xlu0 %v2237, 64
    %v2250 = vpop.permute.xlu0 %2249
    %2251 = vrot.lane.b32.xlu0 %v2238, 64
    %v2252 = vpop.permute.xlu0 %2251
    %v2255 = vmul.f32 %v2230, %v2250
    %v2256 = vmul.f32 %v2234, %v2252
    %2259 = vrot.lane.b32.xlu0 %v2255, 64
    %v2260 = vpop.permute.xlu0 %2259
    %2261 = vrot.lane.b32.xlu0 %v2256, 64
    %v2262 = vpop.permute.xlu0 %2261
    %v2265 = vadd.f32 %v2245, %v2260
    %v2266 = vadd.f32 %v2246, %v2262
    %v2267 = vtanh.pop %v2265
    %v2268 = vtanh.pop %v2266
    %2271 = vrot.lane.b32.xlu0 %v2267, 64
    %v2272 = vpop.permute.xlu0 %2271
    %2273 = vrot.lane.b32.xlu0 %v2268, 64
    %v2274 = vpop.permute.xlu0 %2273
    %v2277 = vmul.f32 %v2232, %v2272
    %v2278 = vmul.f32 %v2236, %v2274
    %v2281 = vrot.slane %v2193, 7
    %v2282 = vrot.slane %v2195, 7
    %v2287 = vadd.f32 %v385, %v2281
    %v2288 = vadd.f32 %v387, %v2282
    %v2289 = vadd.f32 %v389, %v2193
    %v2290 = vadd.f32 %v391, %v2195
    %v2291 = vxor.u32 %v2287, 2147483648
    %v2292 = vxor.u32 %v2288, 2147483648
    %v2293 = vxor.u32 %v2289, 2147483648
    %v2294 = vxor.u32 %v2290, 2147483648
    %v2295 = vmul.f32 %v2291, 1.442695
    %v2296 = vpow.pop %v2295
    %v2297 = vmul.f32 %v2292, 1.442695
    %v2298 = vpow.pop %v2297
    %v2299 = vmul.f32 %v2293, 1.442695
    %v2300 = vpow.pop %v2299
    %v2301 = vmul.f32 %v2294, 1.442695
    %v2302 = vpow.pop %v2301
    %v2303 = vadd.f32 %v2296, 1.0
    %v2304 = vadd.f32 %v2298, 1.0
    %v2305 = vadd.f32 %v2300, 1.0
    %v2306 = vadd.f32 %v2302, 1.0
    %v2307 = vrcp.pop %v2303
    %v2308 = vmul.f32 1.0, %v2307
    %v2309 = vrcp.pop %v2304
    %v2310 = vmul.f32 1.0, %v2309
    %v2311 = vrcp.pop %v2305
    %v2312 = vmul.f32 1.0, %v2311
    %v2313 = vrcp.pop %v2306
    %v2314 = vmul.f32 1.0, %v2313
    %v2315 = vtanh.pop %v2288
    %v2316 = vtanh.pop %v2290
    %v2319 = vrot.slane %v2078, 1
    %v2320 = vrot.slane %v2079, 1
    %v2323 = vmul.f32 %v2308, %v2319
    %v2324 = vmul.f32 %v2312, %v2320
    %2327 = vrot.lane.b32.xlu0 %v2315, 64
    %v2328 = vpop.permute.xlu0 %2327
    %2329 = vrot.lane.b32.xlu0 %v2316, 64
    %v2330 = vpop.permute.xlu0 %2329
    %v2333 = vmul.f32 %v2308, %v2328
    %v2334 = vmul.f32 %v2312, %v2330
    %2337 = vrot.lane.b32.xlu0 %v2333, 64
    %v2338 = vpop.permute.xlu0 %2337
    %2339 = vrot.lane.b32.xlu0 %v2334, 64
    %v2340 = vpop.permute.xlu0 %2339
    %v2343 = vadd.f32 %v2323, %v2338
    %v2344 = vadd.f32 %v2324, %v2340
    %v2345 = vtanh.pop %v2343
    %v2346 = vtanh.pop %v2344
    %2349 = vrot.lane.b32.xlu0 %v2345, 64
    %v2350 = vpop.permute.xlu0 %2349
    %2351 = vrot.lane.b32.xlu0 %v2346, 64
    %v2352 = vpop.permute.xlu0 %2351
    %v2355 = vmul.f32 %v2310, %v2350
    %v2356 = vmul.f32 %v2314, %v2352
    %v2359 = vrot.slane %v2278, 7
    %vm2360 = vcmask 1047559
    %v2361 = vsel %vm2360, %v2359, %v2277
    %v2365 = vrot.slane %v2355, 3
    %v2366 = vrot.slane %v2356, 2
    %v2367 = vsel %vm2360, %v2366, %v2365
    %2368 = vrot.lane.b32.xlu0 %v2367, 64
    %v2369 = vpop.permute.xlu0 %2368
    %v2371 = vsel %vm303, %v2361, %v2369
    %v2372 = vpack.c.bf16 %v2371, %v2371
    %v2374 = vrot.slane %v2372, 3
    %2376 = vmatprep.subr.bf16.mxu0 %v491
    %2377 = vmatpush1.bf16.msra.mxu0 %v490
    %2378 = vmatprep.subr.bf16.mxu0 %v495
    %2379 = vmatpush1.bf16.msra.mxu0 %v494
    %2380 = vmatprep.subr.bf16.mxu0 %v499
    %2381 = vmatpush1.bf16.msra.mxu0 %v498
    %2382 = vmatprep.subr.bf16.mxu0 %v503
    %2383 = vmatpush1.bf16.msra.mxu0 %v502
    %2384 = vmatprep.subr.bf16.mxu0 %v507
    %2385 = vmatpush1.bf16.msra.mxu0 %v506
    %2386 = vmatprep.subr.bf16.mxu0 %v511
    %2387 = vmatpush1.bf16.msra.mxu0 %v510
    %2388 = vmatprep.subr.bf16.mxu0 %v515
    %2389 = vmatpush1.bf16.msra.mxu0 %v514
    %2390 = vmatprep.subr.bf16.mxu0 %v519
    %2391 = vmatpush1.bf16.msra.mxu0 %v518
    %2392 = vmatprep.subr.bf16.mxu0 0
    %2393 = vmatpush1.bf16.msra.mxu0 0
    %2394 = vmatprep.subr.bf16.mxu0 0
    %2395 = vmatpush1.bf16.msra.mxu0 0
    %2396 = vmatprep.subr.bf16.mxu0 0
    %2397 = vmatpush1.bf16.msra.mxu0 0
    %2398 = vmatprep.subr.bf16.mxu0 0
    %2399 = vmatpush1.bf16.msra.mxu0 0
    %2400 = vmatprep.subr.bf16.mxu0 0
    %2401 = vmatpush1.bf16.msra.mxu0 0
    %2402 = vmatprep.subr.bf16.mxu0 0
    %2403 = vmatpush1.bf16.msra.mxu0 0
    %2404 = vmatprep.subr.bf16.mxu0 0
    %2405 = vmatpush1.bf16.msra.mxu0 0
    %2406 = vmatprep.subr.bf16.mxu0 0
    %2407 = vmatpush1.bf16.msra.mxu0 0
    %2408 = vmatprep.mubr.bf16.mxu0 0
    %2409 = vmatmul.mubr.bf16.gmra.mrb[0].mxu0 %v2374
    %v2410 = vpop.f32.mrb[0].mxu0
    %v2411 = vadd.f32 0.0, %v2410
    %v2412 = vpop.f32.mrb[0].mxu0
    %v2413 = vadd.f32 0.0, %v2412
    %v2414 = vpop.f32.mrb[0].mxu0
    %v2415 = vpop.f32.mrb[0].mxu0
    %2416 = vdwg.mxu0
    %2417 = vmatprep.subr.bf16.mxu0 %v493
    %2418 = vmatpush1.bf16.msra.mxu0 %v492
    %2419 = vmatprep.subr.bf16.mxu0 %v497
    %2420 = vmatpush1.bf16.msra.mxu0 %v496
    %2421 = vmatprep.subr.bf16.mxu0 %v501
    %2422 = vmatpush1.bf16.msra.mxu0 %v500
    %2423 = vmatprep.subr.bf16.mxu0 %v505
    %2424 = vmatpush1.bf16.msra.mxu0 %v504
    %2425 = vmatprep.subr.bf16.mxu0 %v509
    %2426 = vmatpush1.bf16.msra.mxu0 %v508
    %2427 = vmatprep.subr.bf16.mxu0 %v513
    %2428 = vmatpush1.bf16.msra.mxu0 %v512
    %2429 = vmatprep.subr.bf16.mxu0 %v517
    %2430 = vmatpush1.bf16.msra.mxu0 %v516
    %2431 = vmatprep.subr.bf16.mxu0 %v521
    %2432 = vmatpush1.bf16.msra.mxu0 %v520
    %2433 = vmatprep.subr.bf16.mxu0 0
    %2434 = vmatpush1.bf16.msra.mxu0 0
    %2435 = vmatprep.subr.bf16.mxu0 0
    %2436 = vmatpush1.bf16.msra.mxu0 0
    %2437 = vmatprep.subr.bf16.mxu0 0
    %2438 = vmatpush1.bf16.msra.mxu0 0
    %2439 = vmatprep.subr.bf16.mxu0 0
    %2440 = vmatpush1.bf16.msra.mxu0 0
    %2441 = vmatprep.subr.bf16.mxu0 0
    %2442 = vmatpush1.bf16.msra.mxu0 0
    %2443 = vmatprep.subr.bf16.mxu0 0
    %2444 = vmatpush1.bf16.msra.mxu0 0
    %2445 = vmatprep.subr.bf16.mxu0 0
    %2446 = vmatpush1.bf16.msra.mxu0 0
    %2447 = vmatprep.subr.bf16.mxu0 0
    %2448 = vmatpush1.bf16.msra.mxu0 0
    %2449 = vmatprep.mubr.bf16.mxu0 0
    %2450 = vmatmul.mubr.bf16.gmra.mrb[0].mxu0 %v2374
    %v2451 = vpop.f32.mrb[0].mxu0
    %v2452 = vadd.f32 0.0, %v2451
    %v2453 = vpop.f32.mrb[0].mxu0
    %v2454 = vadd.f32 0.0, %v2453
    %v2455 = vpop.f32.mrb[0].mxu0
    %v2456 = vpop.f32.mrb[0].mxu0
    %2457 = vdwg.mxu0
    %v2460 = vrot.slane %v2411, 1
    %v2461 = vrot.slane %v2413, 1
    %v2462 = vrot.slane %v2411, 2
    %v2463 = vrot.slane %v2413, 2
    %v2468 = vadd.f32 %v342, %v2460
    %v2469 = vadd.f32 %v344, %v2461
    %v2470 = vadd.f32 %v346, %v2462
    %v2471 = vadd.f32 %v348, %v2463
    %v2472 = vxor.u32 %v2468, 2147483648
    %v2473 = vxor.u32 %v2469, 2147483648
    %v2474 = vxor.u32 %v2470, 2147483648
    %v2475 = vxor.u32 %v2471, 2147483648
    %v2476 = vmul.f32 %v2472, 1.442695
    %v2477 = vpow.pop %v2476
    %v2478 = vmul.f32 %v2473, 1.442695
    %v2479 = vpow.pop %v2478
    %v2480 = vmul.f32 %v2474, 1.442695
    %v2481 = vpow.pop %v2480
    %v2482 = vmul.f32 %v2475, 1.442695
    %v2483 = vpow.pop %v2482
    %v2484 = vadd.f32 %v2477, 1.0
    %v2485 = vadd.f32 %v2479, 1.0
    %v2486 = vadd.f32 %v2481, 1.0
    %v2487 = vadd.f32 %v2483, 1.0
    %v2488 = vrcp.pop %v2484
    %v2489 = vmul.f32 1.0, %v2488
    %v2490 = vrcp.pop %v2485
    %v2491 = vmul.f32 1.0, %v2490
    %v2492 = vrcp.pop %v2486
    %v2493 = vmul.f32 1.0, %v2492
    %v2494 = vrcp.pop %v2487
    %v2495 = vmul.f32 1.0, %v2494
    %v2496 = vtanh.pop %v2469
    %v2497 = vtanh.pop %v2471
    %v2500 = vrot.slane %v2265, 7
    %v2501 = vrot.slane %v2266, 7
    %v2504 = vmul.f32 %v2489, %v2500
    %v2505 = vmul.f32 %v2493, %v2501
    %2508 = vrot.lane.b32.xlu0 %v2496, 64
    %v2509 = vpop.permute.xlu0 %2508
    %2510 = vrot.lane.b32.xlu0 %v2497, 64
    %v2511 = vpop.permute.xlu0 %2510
    %v2514 = vmul.f32 %v2489, %v2509
    %v2515 = vmul.f32 %v2493, %v2511
    %2518 = vrot.lane.b32.xlu0 %v2514, 64
    %v2519 = vpop.permute.xlu0 %2518
    %2520 = vrot.lane.b32.xlu0 %v2515, 64
    %v2521 = vpop.permute.xlu0 %2520
    %v2524 = vadd.f32 %v2504, %v2519
    %v2525 = vadd.f32 %v2505, %v2521
    %v2526 = vtanh.pop %v2524
    %v2527 = vtanh.pop %v2525
    %2530 = vrot.lane.b32.xlu0 %v2526, 64
    %v2531 = vpop.permute.xlu0 %2530
    %2532 = vrot.lane.b32.xlu0 %v2527, 64
    %v2533 = vpop.permute.xlu0 %2532
    %v2536 = vmul.f32 %v2491, %v2531
    %v2537 = vmul.f32 %v2495, %v2533
    %v2540 = vrot.slane %v2452, 1
    %v2541 = vrot.slane %v2454, 1
    %v2546 = vadd.f32 %v385, %v2452
    %v2547 = vadd.f32 %v387, %v2454
    %v2548 = vadd.f32 %v389, %v2540
    %v2549 = vadd.f32 %v391, %v2541
    %v2550 = vxor.u32 %v2546, 2147483648
    %v2551 = vxor.u32 %v2547, 2147483648
    %v2552 = vxor.u32 %v2548, 2147483648
    %v2553 = vxor.u32 %v2549, 2147483648
    %v2554 = vmul.f32 %v2550, 1.442695
    %v2555 = vpow.pop %v2554
    %v2556 = vmul.f32 %v2551, 1.442695
    %v2557 = vpow.pop %v2556
    %v2558 = vmul.f32 %v2552, 1.442695
    %v2559 = vpow.pop %v2558
    %v2560 = vmul.f32 %v2553, 1.442695
    %v2561 = vpow.pop %v2560
    %v2562 = vadd.f32 %v2555, 1.0
    %v2563 = vadd.f32 %v2557, 1.0
    %v2564 = vadd.f32 %v2559, 1.0
    %v2565 = vadd.f32 %v2561, 1.0
    %v2566 = vrcp.pop %v2562
    %v2567 = vmul.f32 1.0, %v2566
    %v2568 = vrcp.pop %v2563
    %v2569 = vmul.f32 1.0, %v2568
    %v2570 = vrcp.pop %v2564
    %v2571 = vmul.f32 1.0, %v2570
    %v2572 = vrcp.pop %v2565
    %v2573 = vmul.f32 1.0, %v2572
    %v2574 = vtanh.pop %v2547
    %v2575 = vtanh.pop %v2549
    %v2578 = vrot.slane %v2343, 1
    %v2579 = vrot.slane %v2344, 1
    %v2582 = vmul.f32 %v2567, %v2578
    %v2583 = vmul.f32 %v2571, %v2579
    %2586 = vrot.lane.b32.xlu0 %v2574, 64
    %v2587 = vpop.permute.xlu0 %2586
    %2588 = vrot.lane.b32.xlu0 %v2575, 64
    %v2589 = vpop.permute.xlu0 %2588
    %v2592 = vmul.f32 %v2567, %v2587
    %v2593 = vmul.f32 %v2571, %v2589
    %2596 = vrot.lane.b32.xlu0 %v2592, 64
    %v2597 = vpop.permute.xlu0 %2596
    %2598 = vrot.lane.b32.xlu0 %v2593, 64
    %v2599 = vpop.permute.xlu0 %2598
    %v2602 = vadd.f32 %v2582, %v2597
    %v2603 = vadd.f32 %v2583, %v2599
    %v2604 = vtanh.pop %v2602
    %v2605 = vtanh.pop %v2603
    %2608 = vrot.lane.b32.xlu0 %v2604, 64
    %v2609 = vpop.permute.xlu0 %2608
    %2610 = vrot.lane.b32.xlu0 %v2605, 64
    %v2611 = vpop.permute.xlu0 %2610
    %v2614 = vmul.f32 %v2569, %v2609
    %v2615 = vmul.f32 %v2573, %v2611
    %vm2616 = vcmask 1040384
    %v2617 = vsel %vm2616, %v706, %v956
    %v2618 = vsel %vm2616, %v707, %v957
    %vm2619 = vcmask 1041408
    %v2620 = vsel %vm2619, %v2617, %v1222
    %v2621 = vsel %vm2619, %v2618, %v1223
    %vm2622 = vcmask 1042432
    %v2623 = vsel %vm2622, %v2620, %v1483
    %v2624 = vsel %vm2622, %v2621, %v1484
    %vm2625 = vcmask 1043456
    %v2626 = vsel %vm2625, %v2623, %v1749
    %v2627 = vsel %vm2625, %v2624, %v1750
    %vm2628 = vcmask 1044480
    %v2629 = vsel %vm2628, %v2626, %v2010
    %v2630 = vsel %vm2628, %v2627, %v2011
    %vm2631 = vcmask 1045504
    %v2632 = vsel %vm2631, %v2629, %v2277
    %v2633 = vsel %vm2631, %v2630, %v2278
    %vm2634 = vcmask 1046528
    %v2635 = vsel %vm2634, %v2632, %v2536
    %v2636 = vsel %vm2634, %v2633, %v2537
    %v2637 = vsel %vm2616, %v2614, %v2355
    %v2638 = vsel %vm2616, %v2615, %v2356
    %v2639 = vsel %vm2619, %v2637, %v2090
    %v2640 = vsel %vm2619, %v2638, %v2091
    %v2641 = vsel %vm2622, %v2639, %v1829
    %v2642 = vsel %vm2622, %v2640, %v1830
    %v2643 = vsel %vm2625, %v2641, %v1563
    %v2644 = vsel %vm2625, %v2642, %v1564
    %v2645 = vsel %vm2628, %v2643, %v1302
    %v2646 = vsel %vm2628, %v2644, %v1303
    %v2647 = vsel %vm2631, %v2645, %v1036
    %v2648 = vsel %vm2631, %v2646, %v1037
    %v2649 = vsel %vm2634, %v2647, %v780
    %v2650 = vsel %vm2634, %v2648, %v781
    %2653 = vrot.lane.b32.xlu0 %v2649, 64
    %v2654 = vpop.permute.xlu0 %2653
    %2655 = vrot.lane.b32.xlu0 %v2650, 64
    %v2656 = vpop.permute.xlu0 %2655
    %v2659 = vsel %vm303, %v2635, %v2654
    %v2660 = vsel %vm303, %v2636, %v2656
    %v2661 = vpack.c.bf16 %v2659, %v2659
    %v2662 = vpack.c.bf16 %v2660, %v2660
    %v2665 = vunpack.c.l.b16 %v2661
    %v2666 = vunpack.c.l.b16 %v2662
    %v2667 = vrot.slane %v2665, 7
    %v2668 = vrot.slane %v2666, 6
    %v2669 = vsel %vm785, %v2668, %v2667
    %v2670 = vpack.c.b16 %v2669, %v2669
    %v2688 = vunpack.c.l.b16 %v160
    %v2689 = vunpack.c.l.b16 %v161
    %v2690 = vunpack.c.l.b16 %v162
    %v2691 = vunpack.c.l.b16 %v163
    %v2692 = vunpack.c.l.b16 %v164
    %v2693 = vunpack.c.l.b16 %v165
    %v2694 = vunpack.c.l.b16 %v166
    %v2695 = vunpack.c.l.b16 %v167
    %v2696 = vunpack.c.l.b16 %v168
    %v2697 = vunpack.c.l.b16 %v169
    %v2698 = vunpack.c.l.b16 %v170
    %v2699 = vunpack.c.l.b16 %v171
    %v2700 = vunpack.c.l.b16 %v172
    %v2701 = vunpack.c.l.b16 %v173
    %v2702 = vunpack.c.l.b16 %v174
    %v2703 = vunpack.c.l.b16 %v175
    %v2704 = vpack.c.b16 %v2689, %v2688
    %v2705 = vpack.c.b16 %v2691, %v2690
    %v2706 = vpack.c.b16 %v2693, %v2692
    %v2707 = vpack.c.b16 %v2695, %v2694
    %v2708 = vpack.c.b16 %v2697, %v2696
    %v2709 = vpack.c.b16 %v2699, %v2698
    %v2710 = vpack.c.b16 %v2701, %v2700
    %v2711 = vpack.c.b16 %v2703, %v2702
    %2720 = vmatprep.subr.bf16.mxu0 0
    %2721 = vmatpush1.bf16.msra.mxu0 %v2704
    %2722 = vmatprep.subr.bf16.mxu0 0
    %2723 = vmatpush1.bf16.msra.mxu0 %v2705
    %2724 = vmatprep.subr.bf16.mxu0 0
    %2725 = vmatpush1.bf16.msra.mxu0 %v2706
    %2726 = vmatprep.subr.bf16.mxu0 0
    %2727 = vmatpush1.bf16.msra.mxu0 %v2707
    %2728 = vmatprep.subr.bf16.mxu0 0
    %2729 = vmatpush1.bf16.msra.mxu0 %v2708
    %2730 = vmatprep.subr.bf16.mxu0 0
    %2731 = vmatpush1.bf16.msra.mxu0 %v2709
    %2732 = vmatprep.subr.bf16.mxu0 0
    %2733 = vmatpush1.bf16.msra.mxu0 %v2710
    %2734 = vmatprep.subr.bf16.mxu0 0
    %2735 = vmatpush1.bf16.msra.mxu0 %v2711
    %2736 = vmatprep.subr.bf16.mxu0 0
    %2737 = vmatpush1.bf16.msra.mxu0 0
    %2738 = vmatprep.subr.bf16.mxu0 0
    %2739 = vmatpush1.bf16.msra.mxu0 0
    %2740 = vmatprep.subr.bf16.mxu0 0
    %2741 = vmatpush1.bf16.msra.mxu0 0
    %2742 = vmatprep.subr.bf16.mxu0 0
    %2743 = vmatpush1.bf16.msra.mxu0 0
    %2744 = vmatprep.subr.bf16.mxu0 0
    %2745 = vmatpush1.bf16.msra.mxu0 0
    %2746 = vmatprep.subr.bf16.mxu0 0
    %2747 = vmatpush1.bf16.msra.mxu0 0
    %2748 = vmatprep.subr.bf16.mxu0 0
    %2749 = vmatpush1.bf16.msra.mxu0 0
    %2750 = vmatprep.subr.bf16.mxu0 0
    %2751 = vmatpush1.bf16.msra.mxu0 0
    %2752 = vmatprep.mubr.bf16.mxu0 0
    %2753 = vmatmul.mubr.bf16.gmra.mrb[0].mxu0 %v2670
    %v2754 = vpop.f32.mrb[0].mxu0
    %v2755 = vadd.f32 %v197, %v2754
    %v2756 = vpop.f32.mrb[0].mxu0
    %v2757 = vpop.f32.mrb[0].mxu0
    %v2758 = vpop.f32.mrb[0].mxu0
    %2759 = vdwg.mxu0
    %2760 = vst [vmem:[#allocation5] sm:$0x3] %v2755
    %v2761 = vmul.f32 %v2659, %v196
    %v2762 = vmul.f32 %v2660, %v196
    %2763 = vadd.xlane.f32.xlu0 %v2761
    %v2764 = vpop.xlane.xlu0 %2763
    %2765 = vadd.xlane.f32.xlu0 %v2762
    %v2766 = vpop.xlane.xlu0 %2765
    %v2769 = vlaneseq
    %v2770 = vand.u32 %v2769, 127
    %v2771 = vlaneseq
    %v2772 = vshrl.u32 %v2771, 7
    %v2773 = vsub.s32 %v2770, %v2772
    %v2774 = vrot.slane %v2764, %v2773
    %v2775 = vlaneseq
    %v2776 = vshrl.u32 %v2775, 7
    %v2777 = vsub.s32 %v2770, %v2776
    %v2778 = vrot.slane %v2766, %v2777
    %v2779 = vsel %vm785, %v2778, %v2774
    %vm2781 = vcmask 58368
    %v2782 = vsel %vm2781, %v2779, -inf
    %2783 = vmax.xlane.f32.xlu0 %v2782
    %v2784 = vpop.xlane.xlu0 %2783
    %v2786 = vlaneseq
    %v2787 = vshrl.u32 %v2786, 7
    %v2788 = vsub.s32 0, %v2787
    %v2789 = vrot.slane %v2784, %v2788
    %v2790 = vlaneseq
    %v2791 = vshrl.u32 %v2790, 7
    %v2792 = vsub.s32 1, %v2791
    %v2793 = vrot.slane %v2784, %v2792
    %v2796 = vsub.f32 %v2764, %v2789
    %v2797 = vsub.f32 %v2766, %v2793
    %v2798 = vmul.f32 %v2796, 1.442695
    %v2799 = vpow.pop %v2798
    %v2800 = vmul.f32 %v2797, 1.442695
    %v2801 = vpow.pop %v2800
    %2804 = vset.pattern.permute.xlu0 0
    %2805 = vperm.xlu0 %2804, %v2799
    %v2806 = vpop.permute.xlu0 %2805
    %2807 = vset.pattern.permute.xlu0 0
    %2808 = vperm.xlu0 %2807, %v2801
    %v2809 = vpop.permute.xlu0 %2808
    %v2810 = vlaneseq
    %v2811 = vshrl.u32 %v2810, 7
    %v2812 = vsub.s32 %v2770, %v2811
    %v2813 = vrot.slane %v2806, %v2812
    %v2814 = vlaneseq
    %v2815 = vshrl.u32 %v2814, 7
    %v2816 = vsub.s32 %v2770, %v2815
    %v2817 = vrot.slane %v2809, %v2816
    %v2818 = vsel %vm785, %v2817, %v2813
    %v2820 = vsel %vm2781, %v2818, 0.0
    %2821 = vadd.xlane.f32.xlu0 %v2820
    %v2822 = vpop.xlane.xlu0 %2821
    %v2823 = vrcp.pop %v2822
    %v2825 = vlaneseq
    %v2826 = vshrl.u32 %v2825, 7
    %v2827 = vsub.s32 0, %v2826
    %v2828 = vrot.slane %v2823, %v2827
    %v2829 = vlaneseq
    %v2830 = vshrl.u32 %v2829, 7
    %v2831 = vsub.s32 1, %v2830
    %v2832 = vrot.slane %v2823, %v2831
    %v2835 = vmul.f32 %v2799, %v2828
    %v2836 = vmul.f32 %v2801, %v2832
    %2838 = vset.pattern.permute.xlu0 0
    %2839 = vperm.xlu0 %2838, %v2835
    %v2840 = vpop.permute.xlu0 %2839
    %2843 = vset.pattern.permute.xlu0 0
    %2844 = vperm.xlu0 %2843, %v2836
    %v2845 = vpop.permute.xlu0 %2844
    %v2847 = vmul.f32 %v2840, %v2659
    %v2848 = vmul.f32 %v2845, %v2660
    %v2849 = vrot.slane %v2847, 4
    %v2850 = vadd.f32 %v2847, %v2849
    %v2851 = vrot.slane %v2850, 2
    %v2852 = vadd.f32 %v2850, %v2851
    %v2853 = vrot.slane %v2852, 1
    %v2854 = vadd.f32 %v2852, %v2853
    %v2855 = vrot.slane %v2848, 4
    %v2856 = vadd.f32 %v2848, %v2855
    %v2857 = vrot.slane %v2856, 2
    %v2858 = vadd.f32 %v2856, %v2857
    %v2859 = vrot.slane %v2858, 1
    %v2860 = vadd.f32 %v2858, %v2859
    %v2861 = vpack.c.bf16 %v2660, %v2659
    %v2878 = vunpack.c.l.b16 %v128
    %v2879 = vunpack.c.l.b16 %v129
    %v2880 = vunpack.c.l.b16 %v130
    %v2881 = vunpack.c.l.b16 %v131
    %v2882 = vunpack.c.l.b16 %v132
    %v2883 = vunpack.c.l.b16 %v133
    %v2884 = vunpack.c.l.b16 %v134
    %v2885 = vunpack.c.l.b16 %v135
    %v2886 = vunpack.c.l.b16 %v136
    %v2887 = vunpack.c.l.b16 %v137
    %v2888 = vunpack.c.l.b16 %v138
    %v2889 = vunpack.c.l.b16 %v139
    %v2890 = vunpack.c.l.b16 %v140
    %v2891 = vunpack.c.l.b16 %v141
    %v2892 = vunpack.c.l.b16 %v142
    %v2893 = vunpack.c.l.b16 %v143
    %v2894 = vpack.c.b16 %v2879, %v2878
    %v2895 = vpack.c.b16 %v2881, %v2880
    %v2896 = vpack.c.b16 %v2883, %v2882
    %v2897 = vpack.c.b16 %v2885, %v2884
    %v2898 = vpack.c.b16 %v2887, %v2886
    %v2899 = vpack.c.b16 %v2889, %v2888
    %v2900 = vpack.c.b16 %v2891, %v2890
    %v2901 = vpack.c.b16 %v2893, %v2892
    %2910 = vmatprep.subr.bf16.mxu0 0
    %2911 = vmatpush1.bf16.msra.mxu0 %v2894
    %2912 = vmatprep.subr.bf16.mxu0 0
    %2913 = vmatpush1.bf16.msra.mxu0 %v2895
    %2914 = vmatprep.subr.bf16.mxu0 0
    %2915 = vmatpush1.bf16.msra.mxu0 %v2896
    %2916 = vmatprep.subr.bf16.mxu0 0
    %2917 = vmatpush1.bf16.msra.mxu0 %v2897
    %2918 = vmatprep.subr.bf16.mxu0 0
    %2919 = vmatpush1.bf16.msra.mxu0 %v2898
    %2920 = vmatprep.subr.bf16.mxu0 0
    %2921 = vmatpush1.bf16.msra.mxu0 %v2899
    %2922 = vmatprep.subr.bf16.mxu0 0
    %2923 = vmatpush1.bf16.msra.mxu0 %v2900
    %2924 = vmatprep.subr.bf16.mxu0 0
    %2925 = vmatpush1.bf16.msra.mxu0 %v2901
    %2926 = vmatprep.subr.bf16.mxu0 0
    %2927 = vmatpush1.bf16.msra.mxu0 0
    %2928 = vmatprep.subr.bf16.mxu0 0
    %2929 = vmatpush1.bf16.msra.mxu0 0
    %2930 = vmatprep.subr.bf16.mxu0 0
    %2931 = vmatpush1.bf16.msra.mxu0 0
    %2932 = vmatprep.subr.bf16.mxu0 0
    %2933 = vmatpush1.bf16.msra.mxu0 0
    %2934 = vmatprep.subr.bf16.mxu0 0
    %2935 = vmatpush1.bf16.msra.mxu0 0
    %2936 = vmatprep.subr.bf16.mxu0 0
    %2937 = vmatpush1.bf16.msra.mxu0 0
    %2938 = vmatprep.subr.bf16.mxu0 0
    %2939 = vmatpush1.bf16.msra.mxu0 0
    %2940 = vmatprep.subr.bf16.mxu0 0
    %2941 = vmatpush1.bf16.msra.mxu0 0
    %2942 = vmatprep.mubr.bf16.mxu0 0
    %2943 = vmatmul.mubr.bf16.gmra.mrb[0].mxu0 %v2861
    %v2944 = vpop.f32.mrb[0].mxu0
    %v2945 = vadd.f32 0.0, %v2944
    %v2946 = vpop.f32.mrb[0].mxu0
    %v2947 = vpop.f32.mrb[0].mxu0
    %v2948 = vadd.f32 0.0, %v2947
    %v2949 = vpop.f32.mrb[0].mxu0
    %2950 = vdwg.mxu0
    %v2951 = vpack.c.bf16 %v2854, %v2854
    %v2952 = vpack.c.bf16 %v2860, %v2860
    %v2955 = vunpack.c.l.b16 %v2951
    %v2956 = vunpack.c.l.b16 %v2952
    %v2957 = vsel %vm785, %v2956, %v2955
    %v2958 = vpack.c.b16 %v2957, %v2957
    %v2976 = vunpack.c.l.b16 %v144
    %v2977 = vunpack.c.l.b16 %v145
    %v2978 = vunpack.c.l.b16 %v146
    %v2979 = vunpack.c.l.b16 %v147
    %v2980 = vunpack.c.l.b16 %v148
    %v2981 = vunpack.c.l.b16 %v149
    %v2982 = vunpack.c.l.b16 %v150
    %v2983 = vunpack.c.l.b16 %v151
    %v2984 = vunpack.c.l.b16 %v152
    %v2985 = vunpack.c.l.b16 %v153
    %v2986 = vunpack.c.l.b16 %v154
    %v2987 = vunpack.c.l.b16 %v155
    %v2988 = vunpack.c.l.b16 %v156
    %v2989 = vunpack.c.l.b16 %v157
    %v2990 = vunpack.c.l.b16 %v158
    %v2991 = vunpack.c.l.b16 %v159
    %v2992 = vpack.c.b16 %v2977, %v2976
    %v2993 = vpack.c.b16 %v2979, %v2978
    %v2994 = vpack.c.b16 %v2981, %v2980
    %v2995 = vpack.c.b16 %v2983, %v2982
    %v2996 = vpack.c.b16 %v2985, %v2984
    %v2997 = vpack.c.b16 %v2987, %v2986
    %v2998 = vpack.c.b16 %v2989, %v2988
    %v2999 = vpack.c.b16 %v2991, %v2990
    %3008 = vmatprep.subr.bf16.mxu0 0
    %3009 = vmatpush1.bf16.msra.mxu0 %v2992
    %3010 = vmatprep.subr.bf16.mxu0 0
    %3011 = vmatpush1.bf16.msra.mxu0 %v2993
    %3012 = vmatprep.subr.bf16.mxu0 0
    %3013 = vmatpush1.bf16.msra.mxu0 %v2994
    %3014 = vmatprep.subr.bf16.mxu0 0
    %3015 = vmatpush1.bf16.msra.mxu0 %v2995
    %3016 = vmatprep.subr.bf16.mxu0 0
    %3017 = vmatpush1.bf16.msra.mxu0 %v2996
    %3018 = vmatprep.subr.bf16.mxu0 0
    %3019 = vmatpush1.bf16.msra.mxu0 %v2997
    %3020 = vmatprep.subr.bf16.mxu0 0
    %3021 = vmatpush1.bf16.msra.mxu0 %v2998
    %3022 = vmatprep.subr.bf16.mxu0 0
    %3023 = vmatpush1.bf16.msra.mxu0 %v2999
    %3024 = vmatprep.subr.bf16.mxu0 0
    %3025 = vmatpush1.bf16.msra.mxu0 0
    %3026 = vmatprep.subr.bf16.mxu0 0
    %3027 = vmatpush1.bf16.msra.mxu0 0
    %3028 = vmatprep.subr.bf16.mxu0 0
    %3029 = vmatpush1.bf16.msra.mxu0 0
    %3030 = vmatprep.subr.bf16.mxu0 0
    %3031 = vmatpush1.bf16.msra.mxu0 0
    %3032 = vmatprep.subr.bf16.mxu0 0
    %3033 = vmatpush1.bf16.msra.mxu0 0
    %3034 = vmatprep.subr.bf16.mxu0 0
    %3035 = vmatpush1.bf16.msra.mxu0 0
    %3036 = vmatprep.subr.bf16.mxu0 0
    %3037 = vmatpush1.bf16.msra.mxu0 0
    %3038 = vmatprep.subr.bf16.mxu0 0
    %3039 = vmatpush1.bf16.msra.mxu0 0
    %3040 = vmatprep.mubr.bf16.mxu0 0
    %3041 = vmatmul.mubr.bf16.gmra.mrb[0].mxu0 %v2958
    %v3042 = vpop.f32.mrb[0].mxu0
    %v3043 = vadd.f32 %v195, %v3042
    %v3044 = vpop.f32.mrb[0].mxu0
    %v3045 = vpop.f32.mrb[0].mxu0
    %v3046 = vpop.f32.mrb[0].mxu0
    %3047 = vdwg.mxu0
    %v3050 = vunpack.c.l.s4 1966171168
    %v3051 = vunpack.c.0.s8 %v3050
    %v3052 = vlaneseq
    %v3053 = vshrl.u32 %v3052, 7
    %v3054 = vsub.s32 %v3051, %v3053
    %v3055 = vrot.slane %v3043, %v3054
    %v3056 = vcombine.high %v3055, %v3055
    %v3058 = vunpack.c.l.s4 1966171168
    %v3059 = vunpack.c.0.s8 %v3058
    %v3060 = vlaneseq
    %v3061 = vshrl.u32 %v3060, 7
    %v3062 = vsub.s32 %v3059, %v3061
    %v3063 = vrot.slane %v3055, %v3062
    %v3065 = vunpack.c.l.s4 1966171168
    %v3066 = vunpack.c.0.s8 %v3065
    %v3067 = vlaneseq
    %v3068 = vshrl.u32 %v3067, 7
    %v3069 = vsub.s32 %v3066, %v3068
    %v3070 = vrot.slane %v3056, %v3069
    %v3071 = vlaneseq
    %v3072 = vshrl.u32 %v3071, 7
    %v3073 = vsub.s32 0, %v3072
    %v3074 = vrot.slane %v3063, %v3073
    %v3075 = vlaneseq
    %v3076 = vshrl.u32 %v3075, 7
    %v3077 = vsub.s32 0, %v3076
    %v3078 = vrot.slane %v3070, %v3077
    %v3081 = vadd.f32 %v2945, %v3074
    %v3082 = vadd.f32 %v2948, %v3078
    %v3083 = vmax.f32 %v3081, 0.0
    %v3084 = vmax.f32 %v3082, 0.0
    %v3085 = vpack.c.bf16 %v3084, %v3083
    %v3087 = vlaneseq
    %v3088 = vshrl.u32 %v3087, 7
    %v3089 = vsub.s32 0, %v3088
    %v3090 = vrot.slane %v194, %v3089
    %v3091 = vlaneseq
    %v3092 = vshrl.u32 %v3091, 7
    %v3093 = vsub.s32 1, %v3092
    %v3094 = vrot.slane %v194, %v3093
    %v3095 = vlaneseq
    %v3096 = vshrl.u32 %v3095, 7
    %v3097 = vsub.s32 2, %v3096
    %v3098 = vrot.slane %v194, %v3097
    %v3099 = vlaneseq
    %v3100 = vshrl.u32 %v3099, 7
    %v3101 = vsub.s32 3, %v3100
    %v3102 = vrot.slane %v194, %v3101
    %v3123 = vunpack.c.l.b16 %v80
    %v3124 = vunpack.c.h.b16 %v80
    %v3125 = vunpack.c.l.b16 %v81
    %v3126 = vunpack.c.h.b16 %v81
    %v3127 = vunpack.c.l.b16 %v82
    %v3128 = vunpack.c.h.b16 %v82
    %v3129 = vunpack.c.l.b16 %v83
    %v3130 = vunpack.c.h.b16 %v83
    %v3131 = vunpack.c.l.b16 %v84
    %v3132 = vunpack.c.h.b16 %v84
    %v3133 = vunpack.c.l.b16 %v85
    %v3134 = vunpack.c.h.b16 %v85
    %v3135 = vunpack.c.l.b16 %v86
    %v3136 = vunpack.c.h.b16 %v86
    %v3137 = vunpack.c.l.b16 %v87
    %v3138 = vunpack.c.h.b16 %v87
    %v3139 = vunpack.c.l.b16 %v88
    %v3140 = vunpack.c.h.b16 %v88
    %v3141 = vunpack.c.l.b16 %v89
    %v3142 = vunpack.c.h.b16 %v89
    %v3143 = vunpack.c.l.b16 %v90
    %v3144 = vunpack.c.h.b16 %v90
    %v3145 = vunpack.c.l.b16 %v91
    %v3146 = vunpack.c.h.b16 %v91
    %v3147 = vunpack.c.l.b16 %v92
    %v3148 = vunpack.c.h.b16 %v92
    %v3149 = vunpack.c.l.b16 %v93
    %v3150 = vunpack.c.h.b16 %v93
    %v3151 = vunpack.c.l.b16 %v94
    %v3152 = vunpack.c.h.b16 %v94
    %v3153 = vunpack.c.l.b16 %v95
    %v3154 = vunpack.c.h.b16 %v95
    %v3155 = vpack.c.b16 %v3127, %v3123
    %v3156 = vpack.c.b16 %v3128, %v3124
    %v3157 = vpack.c.b16 %v3129, %v3125
    %v3158 = vpack.c.b16 %v3130, %v3126
    %v3159 = vpack.c.b16 %v3135, %v3131
    %v3160 = vpack.c.b16 %v3136, %v3132
    %v3161 = vpack.c.b16 %v3137, %v3133
    %v3162 = vpack.c.b16 %v3138, %v3134
    %v3163 = vpack.c.b16 %v3143, %v3139
    %v3164 = vpack.c.b16 %v3144, %v3140
    %v3165 = vpack.c.b16 %v3145, %v3141
    %v3166 = vpack.c.b16 %v3146, %v3142
    %v3167 = vpack.c.b16 %v3151, %v3147
    %v3168 = vpack.c.b16 %v3152, %v3148
    %v3169 = vpack.c.b16 %v3153, %v3149
    %v3170 = vpack.c.b16 %v3154, %v3150
    %v3188 = vsel %vm303, %v3085, 0
    %3190 = vmatprep.subr.bf16.mxu0 %v3156
    %3191 = vmatpush1.bf16.msra.mxu0 %v3155
    %3192 = vmatprep.subr.bf16.mxu0 %v3160
    %3193 = vmatpush1.bf16.msra.mxu0 %v3159
    %3194 = vmatprep.subr.bf16.mxu0 %v3164
    %3195 = vmatpush1.bf16.msra.mxu0 %v3163
    %3196 = vmatprep.subr.bf16.mxu0 %v3168
    %3197 = vmatpush1.bf16.msra.mxu0 %v3167
    %3198 = vmatprep.subr.bf16.mxu0 0
    %3199 = vmatpush1.bf16.msra.mxu0 0
    %3200 = vmatprep.subr.bf16.mxu0 0
    %3201 = vmatpush1.bf16.msra.mxu0 0
    %3202 = vmatprep.subr.bf16.mxu0 0
    %3203 = vmatpush1.bf16.msra.mxu0 0
    %3204 = vmatprep.subr.bf16.mxu0 0
    %3205 = vmatpush1.bf16.msra.mxu0 0
    %3206 = vmatprep.subr.bf16.mxu0 0
    %3207 = vmatpush1.bf16.msra.mxu0 0
    %3208 = vmatprep.subr.bf16.mxu0 0
    %3209 = vmatpush1.bf16.msra.mxu0 0
    %3210 = vmatprep.subr.bf16.mxu0 0
    %3211 = vmatpush1.bf16.msra.mxu0 0
    %3212 = vmatprep.subr.bf16.mxu0 0
    %3213 = vmatpush1.bf16.msra.mxu0 0
    %3214 = vmatprep.subr.bf16.mxu0 0
    %3215 = vmatpush1.bf16.msra.mxu0 0
    %3216 = vmatprep.subr.bf16.mxu0 0
    %3217 = vmatpush1.bf16.msra.mxu0 0
    %3218 = vmatprep.subr.bf16.mxu0 0
    %3219 = vmatpush1.bf16.msra.mxu0 0
    %3220 = vmatprep.subr.bf16.mxu0 0
    %3221 = vmatpush1.bf16.msra.mxu0 0
    %3222 = vmatprep.mubr.bf16.mxu0 0
    %3223 = vmatmul.mubr.bf16.gmra.mrb[0].mxu0 %v3188
    %v3224 = vpop.f32.mrb[0].mxu0
    %v3225 = vadd.f32 %v3090, %v3224
    %v3226 = vpop.f32.mrb[0].mxu0
    %v3227 = vadd.f32 %v3094, %v3226
    %v3228 = vpop.f32.mrb[0].mxu0
    %v3229 = vadd.f32 %v3090, %v3228
    %v3230 = vpop.f32.mrb[0].mxu0
    %v3231 = vadd.f32 %v3094, %v3230
    %3232 = vdwg.mxu0
    %3233 = vmatprep.subr.bf16.mxu0 %v3158
    %3234 = vmatpush1.bf16.msra.mxu0 %v3157
    %3235 = vmatprep.subr.bf16.mxu0 %v3162
    %3236 = vmatpush1.bf16.msra.mxu0 %v3161
    %3237 = vmatprep.subr.bf16.mxu0 %v3166
    %3238 = vmatpush1.bf16.msra.mxu0 %v3165
    %3239 = vmatprep.subr.bf16.mxu0 %v3170
    %3240 = vmatpush1.bf16.msra.mxu0 %v3169
    %3241 = vmatprep.subr.bf16.mxu0 0
    %3242 = vmatpush1.bf16.msra.mxu0 0
    %3243 = vmatprep.subr.bf16.mxu0 0
    %3244 = vmatpush1.bf16.msra.mxu0 0
    %3245 = vmatprep.subr.bf16.mxu0 0
    %3246 = vmatpush1.bf16.msra.mxu0 0
    %3247 = vmatprep.subr.bf16.mxu0 0
    %3248 = vmatpush1.bf16.msra.mxu0 0
    %3249 = vmatprep.subr.bf16.mxu0 0
    %3250 = vmatpush1.bf16.msra.mxu0 0
    %3251 = vmatprep.subr.bf16.mxu0 0
    %3252 = vmatpush1.bf16.msra.mxu0 0
    %3253 = vmatprep.subr.bf16.mxu0 0
    %3254 = vmatpush1.bf16.msra.mxu0 0
    %3255 = vmatprep.subr.bf16.mxu0 0
    %3256 = vmatpush1.bf16.msra.mxu0 0
    %3257 = vmatprep.subr.bf16.mxu0 0
    %3258 = vmatpush1.bf16.msra.mxu0 0
    %3259 = vmatprep.subr.bf16.mxu0 0
    %3260 = vmatpush1.bf16.msra.mxu0 0
    %3261 = vmatprep.subr.bf16.mxu0 0
    %3262 = vmatpush1.bf16.msra.mxu0 0
    %3263 = vmatprep.subr.bf16.mxu0 0
    %3264 = vmatpush1.bf16.msra.mxu0 0
    %3265 = vmatprep.mubr.bf16.mxu0 0
    %3266 = vmatmul.mubr.bf16.gmra.mrb[0].mxu0 %v3188
    %v3267 = vpop.f32.mrb[0].mxu0
    %v3268 = vadd.f32 %v3098, %v3267
    %v3269 = vpop.f32.mrb[0].mxu0
    %v3270 = vadd.f32 %v3102, %v3269
    %v3271 = vpop.f32.mrb[0].mxu0
    %v3272 = vadd.f32 %v3098, %v3271
    %v3273 = vpop.f32.mrb[0].mxu0
    %v3274 = vadd.f32 %v3102, %v3273
    %3275 = vdwg.mxu0
    %v3278 = vrot.slane %v2537, 7
    %v3283 = vrot.slane %v2614, 1
    %3284 = vrot.lane.b32.xlu0 %v3283, 64
    %v3285 = vpop.permute.xlu0 %3284
    %3286 = vrot.lane.b32.xlu0 %v2615, 64
    %v3287 = vpop.permute.xlu0 %3286
    %v3290 = vsel %vm303, %v2536, %v3285
    %v3291 = vsel %vm303, %v3278, %v3287
    %v3292 = vpack.c.bf16 %v3291, %v3290
    %v3294 = vshrl.u32 %v3292, 16
    %v3296 = vrot.slane %v3294, 3
    %v3297 = vshll.u32 %v3292, 16
    %v3299 = vrot.slane %v3297, 4
    %v3300 = vor.u32 %v3296, %v3299
    %v3334 = vunpack.c.l.b16 %v96
    %v3335 = vunpack.c.h.b16 %v96
    %v3336 = vunpack.c.l.b16 %v97
    %v3337 = vunpack.c.h.b16 %v97
    %v3338 = vunpack.c.l.b16 %v98
    %v3339 = vunpack.c.h.b16 %v98
    %v3340 = vunpack.c.l.b16 %v99
    %v3341 = vunpack.c.h.b16 %v99
    %v3342 = vunpack.c.l.b16 %v100
    %v3343 = vunpack.c.h.b16 %v100
    %v3344 = vunpack.c.l.b16 %v101
    %v3345 = vunpack.c.h.b16 %v101
    %v3346 = vunpack.c.l.b16 %v102
    %v3347 = vunpack.c.h.b16 %v102
    %v3348 = vunpack.c.l.b16 %v103
    %v3349 = vunpack.c.h.b16 %v103
    %v3350 = vunpack.c.l.b16 %v104
    %v3351 = vunpack.c.h.b16 %v104
    %v3352 = vunpack.c.l.b16 %v105
    %v3353 = vunpack.c.h.b16 %v105
    %v3354 = vunpack.c.l.b16 %v106
    %v3355 = vunpack.c.h.b16 %v106
    %v3356 = vunpack.c.l.b16 %v107
    %v3357 = vunpack.c.h.b16 %v107
    %v3358 = vunpack.c.l.b16 %v108
    %v3359 = vunpack.c.h.b16 %v108
    %v3360 = vunpack.c.l.b16 %v109
    %v3361 = vunpack.c.h.b16 %v109
    %v3362 = vunpack.c.l.b16 %v110
    %v3363 = vunpack.c.h.b16 %v110
    %v3364 = vunpack.c.l.b16 %v111
    %v3365 = vunpack.c.h.b16 %v111
    %v3366 = vunpack.c.l.b16 %v112
    %v3367 = vunpack.c.h.b16 %v112
    %v3368 = vunpack.c.l.b16 %v113
    %v3369 = vunpack.c.h.b16 %v113
    %v3370 = vunpack.c.l.b16 %v114
    %v3371 = vunpack.c.h.b16 %v114
    %v3372 = vunpack.c.l.b16 %v115
    %v3373 = vunpack.c.h.b16 %v115
    %v3374 = vunpack.c.l.b16 %v116
    %v3375 = vunpack.c.h.b16 %v116
    %v3376 = vunpack.c.l.b16 %v117
    %v3377 = vunpack.c.h.b16 %v117
    %v3378 = vunpack.c.l.b16 %v118
    %v3379 = vunpack.c.h.b16 %v118
    %v3380 = vunpack.c.l.b16 %v119
    %v3381 = vunpack.c.h.b16 %v119
    %v3382 = vunpack.c.l.b16 %v120
    %v3383 = vunpack.c.h.b16 %v120
    %v3384 = vunpack.c.l.b16 %v121
    %v3385 = vunpack.c.h.b16 %v121
    %v3386 = vunpack.c.l.b16 %v122
    %v3387 = vunpack.c.h.b16 %v122
    %v3388 = vunpack.c.l.b16 %v123
    %v3389 = vunpack.c.h.b16 %v123
    %v3390 = vunpack.c.l.b16 %v124
    %v3391 = vunpack.c.h.b16 %v124
    %v3392 = vunpack.c.l.b16 %v125
    %v3393 = vunpack.c.h.b16 %v125
    %v3394 = vunpack.c.l.b16 %v126
    %v3395 = vunpack.c.h.b16 %v126
    %v3396 = vunpack.c.l.b16 %v127
    %v3397 = vunpack.c.h.b16 %v127
    %v3398 = vpack.c.b16 %v3338, %v3334
    %v3399 = vpack.c.b16 %v3339, %v3335
    %v3400 = vpack.c.b16 %v3340, %v3336
    %v3401 = vpack.c.b16 %v3341, %v3337
    %v3402 = vpack.c.b16 %v3346, %v3342
    %v3403 = vpack.c.b16 %v3347, %v3343
    %v3404 = vpack.c.b16 %v3348, %v3344
    %v3405 = vpack.c.b16 %v3349, %v3345
    %v3406 = vpack.c.b16 %v3354, %v3350
    %v3407 = vpack.c.b16 %v3355, %v3351
    %v3408 = vpack.c.b16 %v3356, %v3352
    %v3409 = vpack.c.b16 %v3357, %v3353
    %v3410 = vpack.c.b16 %v3362, %v3358
    %v3411 = vpack.c.b16 %v3363, %v3359
    %v3412 = vpack.c.b16 %v3364, %v3360
    %v3413 = vpack.c.b16 %v3365, %v3361
    %v3414 = vpack.c.b16 %v3370, %v3366
    %v3415 = vpack.c.b16 %v3371, %v3367
    %v3416 = vpack.c.b16 %v3372, %v3368
    %v3417 = vpack.c.b16 %v3373, %v3369
    %v3418 = vpack.c.b16 %v3378, %v3374
    %v3419 = vpack.c.b16 %v3379, %v3375
    %v3420 = vpack.c.b16 %v3380, %v3376
    %v3421 = vpack.c.b16 %v3381, %v3377
    %v3422 = vpack.c.b16 %v3386, %v3382
    %v3423 = vpack.c.b16 %v3387, %v3383
    %v3424 = vpack.c.b16 %v3388, %v3384
    %v3425 = vpack.c.b16 %v3389, %v3385
    %v3426 = vpack.c.b16 %v3394, %v3390
    %v3427 = vpack.c.b16 %v3395, %v3391
    %v3428 = vpack.c.b16 %v3396, %v3392
    %v3429 = vpack.c.b16 %v3397, %v3393
    %3462 = vmatprep.subr.bf16.mxu0 %v3399
    %3463 = vmatpush1.bf16.msra.mxu0 %v3398
    %3464 = vmatprep.subr.bf16.mxu0 %v3403
    %3465 = vmatpush1.bf16.msra.mxu0 %v3402
    %3466 = vmatprep.subr.bf16.mxu0 %v3407
    %3467 = vmatpush1.bf16.msra.mxu0 %v3406
    %3468 = vmatprep.subr.bf16.mxu0 %v3411
    %3469 = vmatpush1.bf16.msra.mxu0 %v3410
    %3470 = vmatprep.subr.bf16.mxu0 %v3415
    %3471 = vmatpush1.bf16.msra.mxu0 %v3414
    %3472 = vmatprep.subr.bf16.mxu0 %v3419
    %3473 = vmatpush1.bf16.msra.mxu0 %v3418
    %3474 = vmatprep.subr.bf16.mxu0 %v3423
    %3475 = vmatpush1.bf16.msra.mxu0 %v3422
    %3476 = vmatprep.subr.bf16.mxu0 %v3427
    %3477 = vmatpush1.bf16.msra.mxu0 %v3426
    %3478 = vmatprep.subr.bf16.mxu0 0
    %3479 = vmatpush1.bf16.msra.mxu0 0
    %3480 = vmatprep.subr.bf16.mxu0 0
    %3481 = vmatpush1.bf16.msra.mxu0 0
    %3482 = vmatprep.subr.bf16.mxu0 0
    %3483 = vmatpush1.bf16.msra.mxu0 0
    %3484 = vmatprep.subr.bf16.mxu0 0
    %3485 = vmatpush1.bf16.msra.mxu0 0
    %3486 = vmatprep.subr.bf16.mxu0 0
    %3487 = vmatpush1.bf16.msra.mxu0 0
    %3488 = vmatprep.subr.bf16.mxu0 0
    %3489 = vmatpush1.bf16.msra.mxu0 0
    %3490 = vmatprep.subr.bf16.mxu0 0
    %3491 = vmatpush1.bf16.msra.mxu0 0
    %3492 = vmatprep.subr.bf16.mxu0 0
    %3493 = vmatpush1.bf16.msra.mxu0 0
    %3494 = vmatprep.mubr.bf16.mxu0 0
    %3495 = vmatmul.mubr.bf16.gmra.mrb[0].mxu0 %v3300
    %v3496 = vpop.f32.mrb[0].mxu0
    %v3497 = vadd.f32 0.0, %v3496
    %v3498 = vpop.f32.mrb[0].mxu0
    %v3499 = vadd.f32 0.0, %v3498
    %v3500 = vpop.f32.mrb[0].mxu0
    %v3501 = vpop.f32.mrb[0].mxu0
    %3502 = vdwg.mxu0
    %3503 = vmatprep.subr.bf16.mxu0 %v3401
    %3504 = vmatpush1.bf16.msra.mxu0 %v3400
    %3505 = vmatprep.subr.bf16.mxu0 %v3405
    %3506 = vmatpush1.bf16.msra.mxu0 %v3404
    %3507 = vmatprep.subr.bf16.mxu0 %v3409
    %3508 = vmatpush1.bf16.msra.mxu0 %v3408
    %3509 = vmatprep.subr.bf16.mxu0 %v3413
    %3510 = vmatpush1.bf16.msra.mxu0 %v3412
    %3511 = vmatprep.subr.bf16.mxu0 %v3417
    %3512 = vmatpush1.bf16.msra.mxu0 %v3416
    %3513 = vmatprep.subr.bf16.mxu0 %v3421
    %3514 = vmatpush1.bf16.msra.mxu0 %v3420
    %3515 = vmatprep.subr.bf16.mxu0 %v3425
    %3516 = vmatpush1.bf16.msra.mxu0 %v3424
    %3517 = vmatprep.subr.bf16.mxu0 %v3429
    %3518 = vmatpush1.bf16.msra.mxu0 %v3428
    %3519 = vmatprep.subr.bf16.mxu0 0
    %3520 = vmatpush1.bf16.msra.mxu0 0
    %3521 = vmatprep.subr.bf16.mxu0 0
    %3522 = vmatpush1.bf16.msra.mxu0 0
    %3523 = vmatprep.subr.bf16.mxu0 0
    %3524 = vmatpush1.bf16.msra.mxu0 0
    %3525 = vmatprep.subr.bf16.mxu0 0
    %3526 = vmatpush1.bf16.msra.mxu0 0
    %3527 = vmatprep.subr.bf16.mxu0 0
    %3528 = vmatpush1.bf16.msra.mxu0 0
    %3529 = vmatprep.subr.bf16.mxu0 0
    %3530 = vmatpush1.bf16.msra.mxu0 0
    %3531 = vmatprep.subr.bf16.mxu0 0
    %3532 = vmatpush1.bf16.msra.mxu0 0
    %3533 = vmatprep.subr.bf16.mxu0 0
    %3534 = vmatpush1.bf16.msra.mxu0 0
    %3535 = vmatprep.mubr.bf16.mxu0 0
    %3536 = vmatmul.mubr.bf16.gmra.mrb[0].mxu0 %v3300
    %v3537 = vpop.f32.mrb[0].mxu0
    %v3538 = vadd.f32 0.0, %v3537
    %v3539 = vpop.f32.mrb[0].mxu0
    %v3540 = vadd.f32 0.0, %v3539
    %v3541 = vpop.f32.mrb[0].mxu0
    %v3542 = vpop.f32.mrb[0].mxu0
    %3543 = vdwg.mxu0
    %v3548 = vrot.slane %v3497, 1
    %v3549 = vrot.slane %v3499, 1
    %v3550 = vrot.slane %v3538, 1
    %v3551 = vrot.slane %v3540, 1
    %v3560 = vadd.f32 %v3225, %v3497
    %v3561 = vadd.f32 %v3227, %v3499
    %v3562 = vadd.f32 %v3268, %v3538
    %v3563 = vadd.f32 %v3270, %v3540
    %v3564 = vadd.f32 %v3229, %v3548
    %v3565 = vadd.f32 %v3231, %v3549
    %v3566 = vadd.f32 %v3272, %v3550
    %v3567 = vadd.f32 %v3274, %v3551
    %v3568 = vxor.u32 %v3560, 2147483648
    %v3569 = vxor.u32 %v3561, 2147483648
    %v3570 = vxor.u32 %v3564, 2147483648
    %v3571 = vxor.u32 %v3565, 2147483648
    %v3572 = vmul.f32 %v3568, 1.442695
    %v3573 = vpow.pop %v3572
    %v3574 = vmul.f32 %v3569, 1.442695
    %v3575 = vpow.pop %v3574
    %v3576 = vmul.f32 %v3570, 1.442695
    %v3577 = vpow.pop %v3576
    %v3578 = vmul.f32 %v3571, 1.442695
    %v3579 = vpow.pop %v3578
    %v3580 = vadd.f32 %v3573, 1.0
    %v3581 = vadd.f32 %v3575, 1.0
    %v3582 = vadd.f32 %v3577, 1.0
    %v3583 = vadd.f32 %v3579, 1.0
    %v3584 = vrcp.pop %v3580
    %v3585 = vmul.f32 1.0, %v3584
    %v3586 = vrcp.pop %v3581
    %v3587 = vmul.f32 1.0, %v3586
    %v3588 = vrcp.pop %v3582
    %v3589 = vmul.f32 1.0, %v3588
    %v3590 = vrcp.pop %v3583
    %v3591 = vmul.f32 1.0, %v3590
    %v3592 = vtanh.pop %v3561
    %v3593 = vtanh.pop %v3565
    %v3596 = vrot.slane %v2524, 7
    %v3597 = vrot.slane %v2525, 7
    %v3600 = vmul.f32 %v3585, %v3596
    %v3601 = vmul.f32 %v3589, %v3597
    %3604 = vrot.lane.b32.xlu0 %v3592, 64
    %v3605 = vpop.permute.xlu0 %3604
    %3606 = vrot.lane.b32.xlu0 %v3593, 64
    %v3607 = vpop.permute.xlu0 %3606
    %v3610 = vmul.f32 %v3585, %v3605
    %v3611 = vmul.f32 %v3589, %v3607
    %3614 = vrot.lane.b32.xlu0 %v3610, 64
    %v3615 = vpop.permute.xlu0 %3614
    %3616 = vrot.lane.b32.xlu0 %v3611, 64
    %v3617 = vpop.permute.xlu0 %3616
    %v3620 = vadd.f32 %v3600, %v3615
    %v3621 = vadd.f32 %v3601, %v3617
    %v3622 = vtanh.pop %v3620
    %v3623 = vtanh.pop %v3621
    %3626 = vrot.lane.b32.xlu0 %v3622, 64
    %v3627 = vpop.permute.xlu0 %3626
    %3628 = vrot.lane.b32.xlu0 %v3623, 64
    %v3629 = vpop.permute.xlu0 %3628
    %v3632 = vmul.f32 %v3587, %v3627
    %v3633 = vmul.f32 %v3591, %v3629
    %v3634 = vxor.u32 %v3562, 2147483648
    %v3635 = vxor.u32 %v3563, 2147483648
    %v3636 = vxor.u32 %v3566, 2147483648
    %v3637 = vxor.u32 %v3567, 2147483648
    %v3638 = vmul.f32 %v3634, 1.442695
    %v3639 = vpow.pop %v3638
    %v3640 = vmul.f32 %v3635, 1.442695
    %v3641 = vpow.pop %v3640
    %v3642 = vmul.f32 %v3636, 1.442695
    %v3643 = vpow.pop %v3642
    %v3644 = vmul.f32 %v3637, 1.442695
    %v3645 = vpow.pop %v3644
    %v3646 = vadd.f32 %v3639, 1.0
    %v3647 = vadd.f32 %v3641, 1.0
    %v3648 = vadd.f32 %v3643, 1.0
    %v3649 = vadd.f32 %v3645, 1.0
    %v3650 = vrcp.pop %v3646
    %v3651 = vmul.f32 1.0, %v3650
    %v3652 = vrcp.pop %v3647
    %v3653 = vmul.f32 1.0, %v3652
    %v3654 = vrcp.pop %v3648
    %v3655 = vmul.f32 1.0, %v3654
    %v3656 = vrcp.pop %v3649
    %v3657 = vmul.f32 1.0, %v3656
    %v3658 = vtanh.pop %v3563
    %v3659 = vtanh.pop %v3567
    %v3660 = vmul.f32 %v3651, %v2602
    %v3661 = vmul.f32 %v3655, %v2603
    %3664 = vrot.lane.b32.xlu0 %v3658, 64
    %v3665 = vpop.permute.xlu0 %3664
    %3666 = vrot.lane.b32.xlu0 %v3659, 64
    %v3667 = vpop.permute.xlu0 %3666
    %v3670 = vmul.f32 %v3651, %v3665
    %v3671 = vmul.f32 %v3655, %v3667
    %3674 = vrot.lane.b32.xlu0 %v3670, 64
    %v3675 = vpop.permute.xlu0 %3674
    %3676 = vrot.lane.b32.xlu0 %v3671, 64
    %v3677 = vpop.permute.xlu0 %3676
    %v3680 = vadd.f32 %v3660, %v3675
    %v3681 = vadd.f32 %v3661, %v3677
    %v3682 = vtanh.pop %v3680
    %v3683 = vtanh.pop %v3681
    %3686 = vrot.lane.b32.xlu0 %v3682, 64
    %v3687 = vpop.permute.xlu0 %3686
    %3688 = vrot.lane.b32.xlu0 %v3683, 64
    %v3689 = vpop.permute.xlu0 %3688
    %v3692 = vmul.f32 %v3653, %v3687
    %v3693 = vmul.f32 %v3657, %v3689
    %v3696 = vrot.slane %v3633, 7
    %v3697 = vsel %vm785, %v3696, %v3632
    %v3701 = vrot.slane %v3693, 7
    %v3702 = vsel %vm785, %v3701, %v3692
    %3703 = vrot.lane.b32.xlu0 %v3702, 64
    %v3704 = vpop.permute.xlu0 %3703
    %v3706 = vsel %vm303, %v3697, %v3704
    %v3707 = vpack.c.bf16 %v3706, %v3706
    %3708 = vmatprep.subr.bf16.mxu0 %v3399
    %3709 = vmatpush1.bf16.msra.mxu0 %v3398
    %3710 = vmatprep.subr.bf16.mxu0 %v3403
    %3711 = vmatpush1.bf16.msra.mxu0 %v3402
    %3712 = vmatprep.subr.bf16.mxu0 %v3407
    %3713 = vmatpush1.bf16.msra.mxu0 %v3406
    %3714 = vmatprep.subr.bf16.mxu0 %v3411
    %3715 = vmatpush1.bf16.msra.mxu0 %v3410
    %3716 = vmatprep.subr.bf16.mxu0 %v3415
    %3717 = vmatpush1.bf16.msra.mxu0 %v3414
    %3718 = vmatprep.subr.bf16.mxu0 %v3419
    %3719 = vmatpush1.bf16.msra.mxu0 %v3418
    %3720 = vmatprep.subr.bf16.mxu0 %v3423
    %3721 = vmatpush1.bf16.msra.mxu0 %v3422
    %3722 = vmatprep.subr.bf16.mxu0 %v3427
    %3723 = vmatpush1.bf16.msra.mxu0 %v3426
    %3724 = vmatprep.subr.bf16.mxu0 0
    %3725 = vmatpush1.bf16.msra.mxu0 0
    %3726 = vmatprep.subr.bf16.mxu0 0
    %3727 = vmatpush1.bf16.msra.mxu0 0
    %3728 = vmatprep.subr.bf16.mxu0 0
    %3729 = vmatpush1.bf16.msra.mxu0 0
    %3730 = vmatprep.subr.bf16.mxu0 0
    %3731 = vmatpush1.bf16.msra.mxu0 0
    %3732 = vmatprep.subr.bf16.mxu0 0
    %3733 = vmatpush1.bf16.msra.mxu0 0
    %3734 = vmatprep.subr.bf16.mxu0 0
    %3735 = vmatpush1.bf16.msra.mxu0 0
    %3736 = vmatprep.subr.bf16.mxu0 0
    %3737 = vmatpush1.bf16.msra.mxu0 0
    %3738 = vmatprep.subr.bf16.mxu0 0
    %3739 = vmatpush1.bf16.msra.mxu0 0
    %3740 = vmatprep.mubr.bf16.mxu0 0
    %3741 = vmatmul.mubr.bf16.gmra.mrb[0].mxu0 %v3707
    %v3742 = vpop.f32.mrb[0].mxu0
    %v3743 = vadd.f32 0.0, %v3742
    %v3744 = vpop.f32.mrb[0].mxu0
    %v3745 = vadd.f32 0.0, %v3744
    %v3746 = vpop.f32.mrb[0].mxu0
    %v3747 = vpop.f32.mrb[0].mxu0
    %3748 = vdwg.mxu0
    %3749 = vmatprep.subr.bf16.mxu0 %v3401
    %3750 = vmatpush1.bf16.msra.mxu0 %v3400
    %3751 = vmatprep.subr.bf16.mxu0 %v3405
    %3752 = vmatpush1.bf16.msra.mxu0 %v3404
    %3753 = vmatprep.subr.bf16.mxu0 %v3409
    %3754 = vmatpush1.bf16.msra.mxu0 %v3408
    %3755 = vmatprep.subr.bf16.mxu0 %v3413
    %3756 = vmatpush1.bf16.msra.mxu0 %v3412
    %3757 = vmatprep.subr.bf16.mxu0 %v3417
    %3758 = vmatpush1.bf16.msra.mxu0 %v3416
    %3759 = vmatprep.subr.bf16.mxu0 %v3421
    %3760 = vmatpush1.bf16.msra.mxu0 %v3420
    %3761 = vmatprep.subr.bf16.mxu0 %v3425
    %3762 = vmatpush1.bf16.msra.mxu0 %v3424
    %3763 = vmatprep.subr.bf16.mxu0 %v3429
    %3764 = vmatpush1.bf16.msra.mxu0 %v3428
    %3765 = vmatprep.subr.bf16.mxu0 0
    %3766 = vmatpush1.bf16.msra.mxu0 0
    %3767 = vmatprep.subr.bf16.mxu0 0
    %3768 = vmatpush1.bf16.msra.mxu0 0
    %3769 = vmatprep.subr.bf16.mxu0 0
    %3770 = vmatpush1.bf16.msra.mxu0 0
    %3771 = vmatprep.subr.bf16.mxu0 0
    %3772 = vmatpush1.bf16.msra.mxu0 0
    %3773 = vmatprep.subr.bf16.mxu0 0
    %3774 = vmatpush1.bf16.msra.mxu0 0
    %3775 = vmatprep.subr.bf16.mxu0 0
    %3776 = vmatpush1.bf16.msra.mxu0 0
    %3777 = vmatprep.subr.bf16.mxu0 0
    %3778 = vmatpush1.bf16.msra.mxu0 0
    %3779 = vmatprep.subr.bf16.mxu0 0
    %3780 = vmatpush1.bf16.msra.mxu0 0
    %3781 = vmatprep.mubr.bf16.mxu0 0
    %3782 = vmatmul.mubr.bf16.gmra.mrb[0].mxu0 %v3707
    %v3783 = vpop.f32.mrb[0].mxu0
    %v3784 = vadd.f32 0.0, %v3783
    %v3785 = vpop.f32.mrb[0].mxu0
    %v3786 = vadd.f32 0.0, %v3785
    %v3787 = vpop.f32.mrb[0].mxu0
    %v3788 = vpop.f32.mrb[0].mxu0
    %3789 = vdwg.mxu0
    %v3794 = vrot.slane %v3743, 7
    %v3795 = vrot.slane %v3745, 7
    %v3796 = vrot.slane %v3784, 7
    %v3797 = vrot.slane %v3786, 7
    %v3806 = vadd.f32 %v3225, %v3794
    %v3807 = vadd.f32 %v3227, %v3795
    %v3808 = vadd.f32 %v3268, %v3796
    %v3809 = vadd.f32 %v3270, %v3797
    %v3810 = vadd.f32 %v3229, %v3743
    %v3811 = vadd.f32 %v3231, %v3745
    %v3812 = vadd.f32 %v3272, %v3784
    %v3813 = vadd.f32 %v3274, %v3786
    %v3814 = vxor.u32 %v3806, 2147483648
    %v3815 = vxor.u32 %v3807, 2147483648
    %v3816 = vxor.u32 %v3810, 2147483648
    %v3817 = vxor.u32 %v3811, 2147483648
    %v3818 = vmul.f32 %v3814, 1.442695
    %v3819 = vpow.pop %v3818
    %v3820 = vmul.f32 %v3815, 1.442695
    %v3821 = vpow.pop %v3820
    %v3822 = vmul.f32 %v3816, 1.442695
    %v3823 = vpow.pop %v3822
    %v3824 = vmul.f32 %v3817, 1.442695
    %v3825 = vpow.pop %v3824
    %v3826 = vadd.f32 %v3819, 1.0
    %v3827 = vadd.f32 %v3821, 1.0
    %v3828 = vadd.f32 %v3823, 1.0
    %v3829 = vadd.f32 %v3825, 1.0
    %v3830 = vrcp.pop %v3826
    %v3831 = vmul.f32 1.0, %v3830
    %v3832 = vrcp.pop %v3827
    %v3833 = vmul.f32 1.0, %v3832
    %v3834 = vrcp.pop %v3828
    %v3835 = vmul.f32 1.0, %v3834
    %v3836 = vrcp.pop %v3829
    %v3837 = vmul.f32 1.0, %v3836
    %v3838 = vtanh.pop %v3807
    %v3839 = vtanh.pop %v3811
    %v3842 = vrot.slane %v3620, 7
    %v3843 = vrot.slane %v3621, 7
    %v3846 = vmul.f32 %v3831, %v3842
    %v3847 = vmul.f32 %v3835, %v3843
    %3850 = vrot.lane.b32.xlu0 %v3838, 64
    %v3851 = vpop.permute.xlu0 %3850
    %3852 = vrot.lane.b32.xlu0 %v3839, 64
    %v3853 = vpop.permute.xlu0 %3852
    %v3856 = vmul.f32 %v3831, %v3851
    %v3857 = vmul.f32 %v3835, %v3853
    %3860 = vrot.lane.b32.xlu0 %v3856, 64
    %v3861 = vpop.permute.xlu0 %3860
    %3862 = vrot.lane.b32.xlu0 %v3857, 64
    %v3863 = vpop.permute.xlu0 %3862
    %v3866 = vadd.f32 %v3846, %v3861
    %v3867 = vadd.f32 %v3847, %v3863
    %v3868 = vtanh.pop %v3866
    %v3869 = vtanh.pop %v3867
    %3872 = vrot.lane.b32.xlu0 %v3868, 64
    %v3873 = vpop.permute.xlu0 %3872
    %3874 = vrot.lane.b32.xlu0 %v3869, 64
    %v3875 = vpop.permute.xlu0 %3874
    %v3878 = vmul.f32 %v3833, %v3873
    %v3879 = vmul.f32 %v3837, %v3875
    %v3880 = vxor.u32 %v3808, 2147483648
    %v3881 = vxor.u32 %v3809, 2147483648
    %v3882 = vxor.u32 %v3812, 2147483648
    %v3883 = vxor.u32 %v3813, 2147483648
    %v3884 = vmul.f32 %v3880, 1.442695
    %v3885 = vpow.pop %v3884
    %v3886 = vmul.f32 %v3881, 1.442695
    %v3887 = vpow.pop %v3886
    %v3888 = vmul.f32 %v3882, 1.442695
    %v3889 = vpow.pop %v3888
    %v3890 = vmul.f32 %v3883, 1.442695
    %v3891 = vpow.pop %v3890
    %v3892 = vadd.f32 %v3885, 1.0
    %v3893 = vadd.f32 %v3887, 1.0
    %v3894 = vadd.f32 %v3889, 1.0
    %v3895 = vadd.f32 %v3891, 1.0
    %v3896 = vrcp.pop %v3892
    %v3897 = vmul.f32 1.0, %v3896
    %v3898 = vrcp.pop %v3893
    %v3899 = vmul.f32 1.0, %v3898
    %v3900 = vrcp.pop %v3894
    %v3901 = vmul.f32 1.0, %v3900
    %v3902 = vrcp.pop %v3895
    %v3903 = vmul.f32 1.0, %v3902
    %v3904 = vtanh.pop %v3809
    %v3905 = vtanh.pop %v3813
    %v3908 = vrot.slane %v3680, 7
    %v3909 = vrot.slane %v3681, 7
    %v3912 = vmul.f32 %v3897, %v3908
    %v3913 = vmul.f32 %v3901, %v3909
    %3916 = vrot.lane.b32.xlu0 %v3904, 64
    %v3917 = vpop.permute.xlu0 %3916
    %3918 = vrot.lane.b32.xlu0 %v3905, 64
    %v3919 = vpop.permute.xlu0 %3918
    %v3922 = vmul.f32 %v3897, %v3917
    %v3923 = vmul.f32 %v3901, %v3919
    %3926 = vrot.lane.b32.xlu0 %v3922, 64
    %v3927 = vpop.permute.xlu0 %3926
    %3928 = vrot.lane.b32.xlu0 %v3923, 64
    %v3929 = vpop.permute.xlu0 %3928
    %v3932 = vadd.f32 %v3912, %v3927
    %v3933 = vadd.f32 %v3913, %v3929
    %v3934 = vtanh.pop %v3932
    %v3935 = vtanh.pop %v3933
    %3938 = vrot.lane.b32.xlu0 %v3934, 64
    %v3939 = vpop.permute.xlu0 %3938
    %3940 = vrot.lane.b32.xlu0 %v3935, 64
    %v3941 = vpop.permute.xlu0 %3940
    %v3944 = vmul.f32 %v3899, %v3939
    %v3945 = vmul.f32 %v3903, %v3941
    %v3948 = vrot.slane %v3879, 7
    %v3949 = vsel %vm1041, %v3948, %v3878
    %v3953 = vrot.slane %v3945, 7
    %v3954 = vsel %vm1041, %v3953, %v3944
    %3955 = vrot.lane.b32.xlu0 %v3954, 64
    %v3956 = vpop.permute.xlu0 %3955
    %v3958 = vsel %vm303, %v3949, %v3956
    %v3959 = vpack.c.bf16 %v3958, %v3958
    %v3961 = vshrl.u32 %v3959, 16
    %v3963 = vshll.u32 %v3959, 16
    %v3965 = vrot.slane %v3963, 1
    %v3966 = vor.u32 %v3961, %v3965
    %3968 = vmatprep.subr.bf16.mxu0 %v3399
    %3969 = vmatpush1.bf16.msra.mxu0 %v3398
    %3970 = vmatprep.subr.bf16.mxu0 %v3403
    %3971 = vmatpush1.bf16.msra.mxu0 %v3402
    %3972 = vmatprep.subr.bf16.mxu0 %v3407
    %3973 = vmatpush1.bf16.msra.mxu0 %v3406
    %3974 = vmatprep.subr.bf16.mxu0 %v3411
    %3975 = vmatpush1.bf16.msra.mxu0 %v3410
    %3976 = vmatprep.subr.bf16.mxu0 %v3415
    %3977 = vmatpush1.bf16.msra.mxu0 %v3414
    %3978 = vmatprep.subr.bf16.mxu0 %v3419
    %3979 = vmatpush1.bf16.msra.mxu0 %v3418
    %3980 = vmatprep.subr.bf16.mxu0 %v3423
    %3981 = vmatpush1.bf16.msra.mxu0 %v3422
    %3982 = vmatprep.subr.bf16.mxu0 %v3427
    %3983 = vmatpush1.bf16.msra.mxu0 %v3426
    %3984 = vmatprep.subr.bf16.mxu0 0
    %3985 = vmatpush1.bf16.msra.mxu0 0
    %3986 = vmatprep.subr.bf16.mxu0 0
    %3987 = vmatpush1.bf16.msra.mxu0 0
    %3988 = vmatprep.subr.bf16.mxu0 0
    %3989 = vmatpush1.bf16.msra.mxu0 0
    %3990 = vmatprep.subr.bf16.mxu0 0
    %3991 = vmatpush1.bf16.msra.mxu0 0
    %3992 = vmatprep.subr.bf16.mxu0 0
    %3993 = vmatpush1.bf16.msra.mxu0 0
    %3994 = vmatprep.subr.bf16.mxu0 0
    %3995 = vmatpush1.bf16.msra.mxu0 0
    %3996 = vmatprep.subr.bf16.mxu0 0
    %3997 = vmatpush1.bf16.msra.mxu0 0
    %3998 = vmatprep.subr.bf16.mxu0 0
    %3999 = vmatpush1.bf16.msra.mxu0 0
    %4000 = vmatprep.mubr.bf16.mxu0 0
    %4001 = vmatmul.mubr.bf16.gmra.mrb[0].mxu0 %v3966
    %v4002 = vpop.f32.mrb[0].mxu0
    %v4003 = vadd.f32 0.0, %v4002
    %v4004 = vpop.f32.mrb[0].mxu0
    %v4005 = vadd.f32 0.0, %v4004
    %v4006 = vpop.f32.mrb[0].mxu0
    %v4007 = vpop.f32.mrb[0].mxu0
    %4008 = vdwg.mxu0
    %4009 = vmatprep.subr.bf16.mxu0 %v3401
    %4010 = vmatpush1.bf16.msra.mxu0 %v3400
    %4011 = vmatprep.subr.bf16.mxu0 %v3405
    %4012 = vmatpush1.bf16.msra.mxu0 %v3404
    %4013 = vmatprep.subr.bf16.mxu0 %v3409
    %4014 = vmatpush1.bf16.msra.mxu0 %v3408
    %4015 = vmatprep.subr.bf16.mxu0 %v3413
    %4016 = vmatpush1.bf16.msra.mxu0 %v3412
    %4017 = vmatprep.subr.bf16.mxu0 %v3417
    %4018 = vmatpush1.bf16.msra.mxu0 %v3416
    %4019 = vmatprep.subr.bf16.mxu0 %v3421
    %4020 = vmatpush1.bf16.msra.mxu0 %v3420
    %4021 = vmatprep.subr.bf16.mxu0 %v3425
    %4022 = vmatpush1.bf16.msra.mxu0 %v3424
    %4023 = vmatprep.subr.bf16.mxu0 %v3429
    %4024 = vmatpush1.bf16.msra.mxu0 %v3428
    %4025 = vmatprep.subr.bf16.mxu0 0
    %4026 = vmatpush1.bf16.msra.mxu0 0
    %4027 = vmatprep.subr.bf16.mxu0 0
    %4028 = vmatpush1.bf16.msra.mxu0 0
    %4029 = vmatprep.subr.bf16.mxu0 0
    %4030 = vmatpush1.bf16.msra.mxu0 0
    %4031 = vmatprep.subr.bf16.mxu0 0
    %4032 = vmatpush1.bf16.msra.mxu0 0
    %4033 = vmatprep.subr.bf16.mxu0 0
    %4034 = vmatpush1.bf16.msra.mxu0 0
    %4035 = vmatprep.subr.bf16.mxu0 0
    %4036 = vmatpush1.bf16.msra.mxu0 0
    %4037 = vmatprep.subr.bf16.mxu0 0
    %4038 = vmatpush1.bf16.msra.mxu0 0
    %4039 = vmatprep.subr.bf16.mxu0 0
    %4040 = vmatpush1.bf16.msra.mxu0 0
    %4041 = vmatprep.mubr.bf16.mxu0 0
    %4042 = vmatmul.mubr.bf16.gmra.mrb[0].mxu0 %v3966
    %v4043 = vpop.f32.mrb[0].mxu0
    %v4044 = vadd.f32 0.0, %v4043
    %v4045 = vpop.f32.mrb[0].mxu0
    %v4046 = vadd.f32 0.0, %v4045
    %v4047 = vpop.f32.mrb[0].mxu0
    %v4048 = vpop.f32.mrb[0].mxu0
    %4049 = vdwg.mxu0
    %v4054 = vrot.slane %v4003, 6
    %v4055 = vrot.slane %v4005, 6
    %v4056 = vrot.slane %v4044, 6
    %v4057 = vrot.slane %v4046, 6
    %v4058 = vrot.slane %v4003, 7
    %v4059 = vrot.slane %v4005, 7
    %v4060 = vrot.slane %v4044, 7
    %v4061 = vrot.slane %v4046, 7
    %v4070 = vadd.f32 %v3225, %v4054
    %v4071 = vadd.f32 %v3227, %v4055
    %v4072 = vadd.f32 %v3268, %v4056
    %v4073 = vadd.f32 %v3270, %v4057
    %v4074 = vadd.f32 %v3229, %v4058
    %v4075 = vadd.f32 %v3231, %v4059
    %v4076 = vadd.f32 %v3272, %v4060
    %v4077 = vadd.f32 %v3274, %v4061
    %v4078 = vxor.u32 %v4070, 2147483648
    %v4079 = vxor.u32 %v4071, 2147483648
    %v4080 = vxor.u32 %v4074, 2147483648
    %v4081 = vxor.u32 %v4075, 2147483648
    %v4082 = vmul.f32 %v4078, 1.442695
    %v4083 = vpow.pop %v4082
    %v4084 = vmul.f32 %v4079, 1.442695
    %v4085 = vpow.pop %v4084
    %v4086 = vmul.f32 %v4080, 1.442695
    %v4087 = vpow.pop %v4086
    %v4088 = vmul.f32 %v4081, 1.442695
    %v4089 = vpow.pop %v4088
    %v4090 = vadd.f32 %v4083, 1.0
    %v4091 = vadd.f32 %v4085, 1.0
    %v4092 = vadd.f32 %v4087, 1.0
    %v4093 = vadd.f32 %v4089, 1.0
    %v4094 = vrcp.pop %v4090
    %v4095 = vmul.f32 1.0, %v4094
    %v4096 = vrcp.pop %v4091
    %v4097 = vmul.f32 1.0, %v4096
    %v4098 = vrcp.pop %v4092
    %v4099 = vmul.f32 1.0, %v4098
    %v4100 = vrcp.pop %v4093
    %v4101 = vmul.f32 1.0, %v4100
    %v4102 = vtanh.pop %v4071
    %v4103 = vtanh.pop %v4075
    %v4106 = vrot.slane %v3866, 7
    %v4107 = vrot.slane %v3867, 7
    %v4110 = vmul.f32 %v4095, %v4106
    %v4111 = vmul.f32 %v4099, %v4107
    %4114 = vrot.lane.b32.xlu0 %v4102, 64
    %v4115 = vpop.permute.xlu0 %4114
    %4116 = vrot.lane.b32.xlu0 %v4103, 64
    %v4117 = vpop.permute.xlu0 %4116
    %v4120 = vmul.f32 %v4095, %v4115
    %v4121 = vmul.f32 %v4099, %v4117
    %4124 = vrot.lane.b32.xlu0 %v4120, 64
    %v4125 = vpop.permute.xlu0 %4124
    %4126 = vrot.lane.b32.xlu0 %v4121, 64
    %v4127 = vpop.permute.xlu0 %4126
    %v4130 = vadd.f32 %v4110, %v4125
    %v4131 = vadd.f32 %v4111, %v4127
    %v4132 = vtanh.pop %v4130
    %v4133 = vtanh.pop %v4131
    %4136 = vrot.lane.b32.xlu0 %v4132, 64
    %v4137 = vpop.permute.xlu0 %4136
    %4138 = vrot.lane.b32.xlu0 %v4133, 64
    %v4139 = vpop.permute.xlu0 %4138
    %v4142 = vmul.f32 %v4097, %v4137
    %v4143 = vmul.f32 %v4101, %v4139
    %v4144 = vxor.u32 %v4072, 2147483648
    %v4145 = vxor.u32 %v4073, 2147483648
    %v4146 = vxor.u32 %v4076, 2147483648
    %v4147 = vxor.u32 %v4077, 2147483648
    %v4148 = vmul.f32 %v4144, 1.442695
    %v4149 = vpow.pop %v4148
    %v4150 = vmul.f32 %v4145, 1.442695
    %v4151 = vpow.pop %v4150
    %v4152 = vmul.f32 %v4146, 1.442695
    %v4153 = vpow.pop %v4152
    %v4154 = vmul.f32 %v4147, 1.442695
    %v4155 = vpow.pop %v4154
    %v4156 = vadd.f32 %v4149, 1.0
    %v4157 = vadd.f32 %v4151, 1.0
    %v4158 = vadd.f32 %v4153, 1.0
    %v4159 = vadd.f32 %v4155, 1.0
    %v4160 = vrcp.pop %v4156
    %v4161 = vmul.f32 1.0, %v4160
    %v4162 = vrcp.pop %v4157
    %v4163 = vmul.f32 1.0, %v4162
    %v4164 = vrcp.pop %v4158
    %v4165 = vmul.f32 1.0, %v4164
    %v4166 = vrcp.pop %v4159
    %v4167 = vmul.f32 1.0, %v4166
    %v4168 = vtanh.pop %v4073
    %v4169 = vtanh.pop %v4077
    %v4172 = vrot.slane %v3932, 7
    %v4173 = vrot.slane %v3933, 7
    %v4176 = vmul.f32 %v4161, %v4172
    %v4177 = vmul.f32 %v4165, %v4173
    %4180 = vrot.lane.b32.xlu0 %v4168, 64
    %v4181 = vpop.permute.xlu0 %4180
    %4182 = vrot.lane.b32.xlu0 %v4169, 64
    %v4183 = vpop.permute.xlu0 %4182
    %v4186 = vmul.f32 %v4161, %v4181
    %v4187 = vmul.f32 %v4165, %v4183
    %4190 = vrot.lane.b32.xlu0 %v4186, 64
    %v4191 = vpop.permute.xlu0 %4190
    %4192 = vrot.lane.b32.xlu0 %v4187, 64
    %v4193 = vpop.permute.xlu0 %4192
    %v4196 = vadd.f32 %v4176, %v4191
    %v4197 = vadd.f32 %v4177, %v4193
    %v4198 = vtanh.pop %v4196
    %v4199 = vtanh.pop %v4197
    %4202 = vrot.lane.b32.xlu0 %v4198, 64
    %v4203 = vpop.permute.xlu0 %4202
    %4204 = vrot.lane.b32.xlu0 %v4199, 64
    %v4205 = vpop.permute.xlu0 %4204
    %v4208 = vmul.f32 %v4163, %v4203
    %v4209 = vmul.f32 %v4167, %v4205
    %v4212 = vrot.slane %v4143, 7
    %v4213 = vsel %vm1307, %v4212, %v4142
    %v4217 = vrot.slane %v4209, 7
    %v4218 = vsel %vm1307, %v4217, %v4208
    %4219 = vrot.lane.b32.xlu0 %v4218, 64
    %v4220 = vpop.permute.xlu0 %4219
    %v4222 = vsel %vm303, %v4213, %v4220
    %v4223 = vpack.c.bf16 %v4222, %v4222
    %v4225 = vrot.slane %v4223, 1
    %4227 = vmatprep.subr.bf16.mxu0 %v3399
    %4228 = vmatpush1.bf16.msra.mxu0 %v3398
    %4229 = vmatprep.subr.bf16.mxu0 %v3403
    %4230 = vmatpush1.bf16.msra.mxu0 %v3402
    %4231 = vmatprep.subr.bf16.mxu0 %v3407
    %4232 = vmatpush1.bf16.msra.mxu0 %v3406
    %4233 = vmatprep.subr.bf16.mxu0 %v3411
    %4234 = vmatpush1.bf16.msra.mxu0 %v3410
    %4235 = vmatprep.subr.bf16.mxu0 %v3415
    %4236 = vmatpush1.bf16.msra.mxu0 %v3414
    %4237 = vmatprep.subr.bf16.mxu0 %v3419
    %4238 = vmatpush1.bf16.msra.mxu0 %v3418
    %4239 = vmatprep.subr.bf16.mxu0 %v3423
    %4240 = vmatpush1.bf16.msra.mxu0 %v3422
    %4241 = vmatprep.subr.bf16.mxu0 %v3427
    %4242 = vmatpush1.bf16.msra.mxu0 %v3426
    %4243 = vmatprep.subr.bf16.mxu0 0
    %4244 = vmatpush1.bf16.msra.mxu0 0
    %4245 = vmatprep.subr.bf16.mxu0 0
    %4246 = vmatpush1.bf16.msra.mxu0 0
    %4247 = vmatprep.subr.bf16.mxu0 0
    %4248 = vmatpush1.bf16.msra.mxu0 0
    %4249 = vmatprep.subr.bf16.mxu0 0
    %4250 = vmatpush1.bf16.msra.mxu0 0
    %4251 = vmatprep.subr.bf16.mxu0 0
    %4252 = vmatpush1.bf16.msra.mxu0 0
    %4253 = vmatprep.subr.bf16.mxu0 0
    %4254 = vmatpush1.bf16.msra.mxu0 0
    %4255 = vmatprep.subr.bf16.mxu0 0
    %4256 = vmatpush1.bf16.msra.mxu0 0
    %4257 = vmatprep.subr.bf16.mxu0 0
    %4258 = vmatpush1.bf16.msra.mxu0 0
    %4259 = vmatprep.mubr.bf16.mxu0 0
    %4260 = vmatmul.mubr.bf16.gmra.mrb[0].mxu0 %v4225
    %v4261 = vpop.f32.mrb[0].mxu0
    %v4262 = vadd.f32 0.0, %v4261
    %v4263 = vpop.f32.mrb[0].mxu0
    %v4264 = vadd.f32 0.0, %v4263
    %v4265 = vpop.f32.mrb[0].mxu0
    %v4266 = vpop.f32.mrb[0].mxu0
    %4267 = vdwg.mxu0
    %4268 = vmatprep.subr.bf16.mxu0 %v3401
    %4269 = vmatpush1.bf16.msra.mxu0 %v3400
    %4270 = vmatprep.subr.bf16.mxu0 %v3405
    %4271 = vmatpush1.bf16.msra.mxu0 %v3404
    %4272 = vmatprep.subr.bf16.mxu0 %v3409
    %4273 = vmatpush1.bf16.msra.mxu0 %v3408
    %4274 = vmatprep.subr.bf16.mxu0 %v3413
    %4275 = vmatpush1.bf16.msra.mxu0 %v3412
    %4276 = vmatprep.subr.bf16.mxu0 %v3417
    %4277 = vmatpush1.bf16.msra.mxu0 %v3416
    %4278 = vmatprep.subr.bf16.mxu0 %v3421
    %4279 = vmatpush1.bf16.msra.mxu0 %v3420
    %4280 = vmatprep.subr.bf16.mxu0 %v3425
    %4281 = vmatpush1.bf16.msra.mxu0 %v3424
    %4282 = vmatprep.subr.bf16.mxu0 %v3429
    %4283 = vmatpush1.bf16.msra.mxu0 %v3428
    %4284 = vmatprep.subr.bf16.mxu0 0
    %4285 = vmatpush1.bf16.msra.mxu0 0
    %4286 = vmatprep.subr.bf16.mxu0 0
    %4287 = vmatpush1.bf16.msra.mxu0 0
    %4288 = vmatprep.subr.bf16.mxu0 0
    %4289 = vmatpush1.bf16.msra.mxu0 0
    %4290 = vmatprep.subr.bf16.mxu0 0
    %4291 = vmatpush1.bf16.msra.mxu0 0
    %4292 = vmatprep.subr.bf16.mxu0 0
    %4293 = vmatpush1.bf16.msra.mxu0 0
    %4294 = vmatprep.subr.bf16.mxu0 0
    %4295 = vmatpush1.bf16.msra.mxu0 0
    %4296 = vmatprep.subr.bf16.mxu0 0
    %4297 = vmatpush1.bf16.msra.mxu0 0
    %4298 = vmatprep.subr.bf16.mxu0 0
    %4299 = vmatpush1.bf16.msra.mxu0 0
    %4300 = vmatprep.mubr.bf16.mxu0 0
    %4301 = vmatmul.mubr.bf16.gmra.mrb[0].mxu0 %v4225
    %v4302 = vpop.f32.mrb[0].mxu0
    %v4303 = vadd.f32 0.0, %v4302
    %v4304 = vpop.f32.mrb[0].mxu0
    %v4305 = vadd.f32 0.0, %v4304
    %v4306 = vpop.f32.mrb[0].mxu0
    %v4307 = vpop.f32.mrb[0].mxu0
    %4308 = vdwg.mxu0
    %v4313 = vrot.slane %v4262, 5
    %v4314 = vrot.slane %v4264, 5
    %v4315 = vrot.slane %v4303, 5
    %v4316 = vrot.slane %v4305, 5
    %v4317 = vrot.slane %v4262, 6
    %v4318 = vrot.slane %v4264, 6
    %v4319 = vrot.slane %v4303, 6
    %v4320 = vrot.slane %v4305, 6
    %v4329 = vadd.f32 %v3225, %v4313
    %v4330 = vadd.f32 %v3227, %v4314
    %v4331 = vadd.f32 %v3268, %v4315
    %v4332 = vadd.f32 %v3270, %v4316
    %v4333 = vadd.f32 %v3229, %v4317
    %v4334 = vadd.f32 %v3231, %v4318
    %v4335 = vadd.f32 %v3272, %v4319
    %v4336 = vadd.f32 %v3274, %v4320
    %v4337 = vxor.u32 %v4329, 2147483648
    %v4338 = vxor.u32 %v4330, 2147483648
    %v4339 = vxor.u32 %v4333, 2147483648
    %v4340 = vxor.u32 %v4334, 2147483648
    %v4341 = vmul.f32 %v4337, 1.442695
    %v4342 = vpow.pop %v4341
    %v4343 = vmul.f32 %v4338, 1.442695
    %v4344 = vpow.pop %v4343
    %v4345 = vmul.f32 %v4339, 1.442695
    %v4346 = vpow.pop %v4345
    %v4347 = vmul.f32 %v4340, 1.442695
    %v4348 = vpow.pop %v4347
    %v4349 = vadd.f32 %v4342, 1.0
    %v4350 = vadd.f32 %v4344, 1.0
    %v4351 = vadd.f32 %v4346, 1.0
    %v4352 = vadd.f32 %v4348, 1.0
    %v4353 = vrcp.pop %v4349
    %v4354 = vmul.f32 1.0, %v4353
    %v4355 = vrcp.pop %v4350
    %v4356 = vmul.f32 1.0, %v4355
    %v4357 = vrcp.pop %v4351
    %v4358 = vmul.f32 1.0, %v4357
    %v4359 = vrcp.pop %v4352
    %v4360 = vmul.f32 1.0, %v4359
    %v4361 = vtanh.pop %v4330
    %v4362 = vtanh.pop %v4334
    %v4365 = vrot.slane %v4130, 7
    %v4366 = vrot.slane %v4131, 7
    %v4369 = vmul.f32 %v4354, %v4365
    %v4370 = vmul.f32 %v4358, %v4366
    %4373 = vrot.lane.b32.xlu0 %v4361, 64
    %v4374 = vpop.permute.xlu0 %4373
    %4375 = vrot.lane.b32.xlu0 %v4362, 64
    %v4376 = vpop.permute.xlu0 %4375
    %v4379 = vmul.f32 %v4354, %v4374
    %v4380 = vmul.f32 %v4358, %v4376
    %4383 = vrot.lane.b32.xlu0 %v4379, 64
    %v4384 = vpop.permute.xlu0 %4383
    %4385 = vrot.lane.b32.xlu0 %v4380, 64
    %v4386 = vpop.permute.xlu0 %4385
    %v4389 = vadd.f32 %v4369, %v4384
    %v4390 = vadd.f32 %v4370, %v4386
    %v4391 = vtanh.pop %v4389
    %v4392 = vtanh.pop %v4390
    %4395 = vrot.lane.b32.xlu0 %v4391, 64
    %v4396 = vpop.permute.xlu0 %4395
    %4397 = vrot.lane.b32.xlu0 %v4392, 64
    %v4398 = vpop.permute.xlu0 %4397
    %v4401 = vmul.f32 %v4356, %v4396
    %v4402 = vmul.f32 %v4360, %v4398
    %v4403 = vxor.u32 %v4331, 2147483648
    %v4404 = vxor.u32 %v4332, 2147483648
    %v4405 = vxor.u32 %v4335, 2147483648
    %v4406 = vxor.u32 %v4336, 2147483648
    %v4407 = vmul.f32 %v4403, 1.442695
    %v4408 = vpow.pop %v4407
    %v4409 = vmul.f32 %v4404, 1.442695
    %v4410 = vpow.pop %v4409
    %v4411 = vmul.f32 %v4405, 1.442695
    %v4412 = vpow.pop %v4411
    %v4413 = vmul.f32 %v4406, 1.442695
    %v4414 = vpow.pop %v4413
    %v4415 = vadd.f32 %v4408, 1.0
    %v4416 = vadd.f32 %v4410, 1.0
    %v4417 = vadd.f32 %v4412, 1.0
    %v4418 = vadd.f32 %v4414, 1.0
    %v4419 = vrcp.pop %v4415
    %v4420 = vmul.f32 1.0, %v4419
    %v4421 = vrcp.pop %v4416
    %v4422 = vmul.f32 1.0, %v4421
    %v4423 = vrcp.pop %v4417
    %v4424 = vmul.f32 1.0, %v4423
    %v4425 = vrcp.pop %v4418
    %v4426 = vmul.f32 1.0, %v4425
    %v4427 = vtanh.pop %v4332
    %v4428 = vtanh.pop %v4336
    %v4431 = vrot.slane %v4196, 7
    %v4432 = vrot.slane %v4197, 7
    %v4435 = vmul.f32 %v4420, %v4431
    %v4436 = vmul.f32 %v4424, %v4432
    %4439 = vrot.lane.b32.xlu0 %v4427, 64
    %v4440 = vpop.permute.xlu0 %4439
    %4441 = vrot.lane.b32.xlu0 %v4428, 64
    %v4442 = vpop.permute.xlu0 %4441
    %v4445 = vmul.f32 %v4420, %v4440
    %v4446 = vmul.f32 %v4424, %v4442
    %4449 = vrot.lane.b32.xlu0 %v4445, 64
    %v4450 = vpop.permute.xlu0 %4449
    %4451 = vrot.lane.b32.xlu0 %v4446, 64
    %v4452 = vpop.permute.xlu0 %4451
    %v4455 = vadd.f32 %v4435, %v4450
    %v4456 = vadd.f32 %v4436, %v4452
    %v4457 = vtanh.pop %v4455
    %v4458 = vtanh.pop %v4456
    %4461 = vrot.lane.b32.xlu0 %v4457, 64
    %v4462 = vpop.permute.xlu0 %4461
    %4463 = vrot.lane.b32.xlu0 %v4458, 64
    %v4464 = vpop.permute.xlu0 %4463
    %v4467 = vmul.f32 %v4422, %v4462
    %v4468 = vmul.f32 %v4426, %v4464
    %v4471 = vrot.slane %v4402, 7
    %v4472 = vsel %vm1568, %v4471, %v4401
    %v4476 = vrot.slane %v4468, 7
    %v4477 = vsel %vm1568, %v4476, %v4467
    %4478 = vrot.lane.b32.xlu0 %v4477, 64
    %v4479 = vpop.permute.xlu0 %4478
    %v4481 = vsel %vm303, %v4472, %v4479
    %v4482 = vpack.c.bf16 %v4481, %v4481
    %v4484 = vshrl.u32 %v4482, 16
    %v4486 = vrot.slane %v4484, 1
    %v4487 = vshll.u32 %v4482, 16
    %v4489 = vrot.slane %v4487, 2
    %v4490 = vor.u32 %v4486, %v4489
    %4492 = vmatprep.subr.bf16.mxu0 %v3399
    %4493 = vmatpush1.bf16.msra.mxu0 %v3398
    %4494 = vmatprep.subr.bf16.mxu0 %v3403
    %4495 = vmatpush1.bf16.msra.mxu0 %v3402
    %4496 = vmatprep.subr.bf16.mxu0 %v3407
    %4497 = vmatpush1.bf16.msra.mxu0 %v3406
    %4498 = vmatprep.subr.bf16.mxu0 %v3411
    %4499 = vmatpush1.bf16.msra.mxu0 %v3410
    %4500 = vmatprep.subr.bf16.mxu0 %v3415
    %4501 = vmatpush1.bf16.msra.mxu0 %v3414
    %4502 = vmatprep.subr.bf16.mxu0 %v3419
    %4503 = vmatpush1.bf16.msra.mxu0 %v3418
    %4504 = vmatprep.subr.bf16.mxu0 %v3423
    %4505 = vmatpush1.bf16.msra.mxu0 %v3422
    %4506 = vmatprep.subr.bf16.mxu0 %v3427
    %4507 = vmatpush1.bf16.msra.mxu0 %v3426
    %4508 = vmatprep.subr.bf16.mxu0 0
    %4509 = vmatpush1.bf16.msra.mxu0 0
    %4510 = vmatprep.subr.bf16.mxu0 0
    %4511 = vmatpush1.bf16.msra.mxu0 0
    %4512 = vmatprep.subr.bf16.mxu0 0
    %4513 = vmatpush1.bf16.msra.mxu0 0
    %4514 = vmatprep.subr.bf16.mxu0 0
    %4515 = vmatpush1.bf16.msra.mxu0 0
    %4516 = vmatprep.subr.bf16.mxu0 0
    %4517 = vmatpush1.bf16.msra.mxu0 0
    %4518 = vmatprep.subr.bf16.mxu0 0
    %4519 = vmatpush1.bf16.msra.mxu0 0
    %4520 = vmatprep.subr.bf16.mxu0 0
    %4521 = vmatpush1.bf16.msra.mxu0 0
    %4522 = vmatprep.subr.bf16.mxu0 0
    %4523 = vmatpush1.bf16.msra.mxu0 0
    %4524 = vmatprep.mubr.bf16.mxu0 0
    %4525 = vmatmul.mubr.bf16.gmra.mrb[0].mxu0 %v4490
    %v4526 = vpop.f32.mrb[0].mxu0
    %v4527 = vadd.f32 0.0, %v4526
    %v4528 = vpop.f32.mrb[0].mxu0
    %v4529 = vadd.f32 0.0, %v4528
    %v4530 = vpop.f32.mrb[0].mxu0
    %v4531 = vpop.f32.mrb[0].mxu0
    %4532 = vdwg.mxu0
    %4533 = vmatprep.subr.bf16.mxu0 %v3401
    %4534 = vmatpush1.bf16.msra.mxu0 %v3400
    %4535 = vmatprep.subr.bf16.mxu0 %v3405
    %4536 = vmatpush1.bf16.msra.mxu0 %v3404
    %4537 = vmatprep.subr.bf16.mxu0 %v3409
    %4538 = vmatpush1.bf16.msra.mxu0 %v3408
    %4539 = vmatprep.subr.bf16.mxu0 %v3413
    %4540 = vmatpush1.bf16.msra.mxu0 %v3412
    %4541 = vmatprep.subr.bf16.mxu0 %v3417
    %4542 = vmatpush1.bf16.msra.mxu0 %v3416
    %4543 = vmatprep.subr.bf16.mxu0 %v3421
    %4544 = vmatpush1.bf16.msra.mxu0 %v3420
    %4545 = vmatprep.subr.bf16.mxu0 %v3425
    %4546 = vmatpush1.bf16.msra.mxu0 %v3424
    %4547 = vmatprep.subr.bf16.mxu0 %v3429
    %4548 = vmatpush1.bf16.msra.mxu0 %v3428
    %4549 = vmatprep.subr.bf16.mxu0 0
    %4550 = vmatpush1.bf16.msra.mxu0 0
    %4551 = vmatprep.subr.bf16.mxu0 0
    %4552 = vmatpush1.bf16.msra.mxu0 0
    %4553 = vmatprep.subr.bf16.mxu0 0
    %4554 = vmatpush1.bf16.msra.mxu0 0
    %4555 = vmatprep.subr.bf16.mxu0 0
    %4556 = vmatpush1.bf16.msra.mxu0 0
    %4557 = vmatprep.subr.bf16.mxu0 0
    %4558 = vmatpush1.bf16.msra.mxu0 0
    %4559 = vmatprep.subr.bf16.mxu0 0
    %4560 = vmatpush1.bf16.msra.mxu0 0
    %4561 = vmatprep.subr.bf16.mxu0 0
    %4562 = vmatpush1.bf16.msra.mxu0 0
    %4563 = vmatprep.subr.bf16.mxu0 0
    %4564 = vmatpush1.bf16.msra.mxu0 0
    %4565 = vmatprep.mubr.bf16.mxu0 0
    %4566 = vmatmul.mubr.bf16.gmra.mrb[0].mxu0 %v4490
    %v4567 = vpop.f32.mrb[0].mxu0
    %v4568 = vadd.f32 0.0, %v4567
    %v4569 = vpop.f32.mrb[0].mxu0
    %v4570 = vadd.f32 0.0, %v4569
    %v4571 = vpop.f32.mrb[0].mxu0
    %v4572 = vpop.f32.mrb[0].mxu0
    %4573 = vdwg.mxu0
    %v4578 = vrot.slane %v4527, 4
    %v4579 = vrot.slane %v4529, 4
    %v4580 = vrot.slane %v4568, 4
    %v4581 = vrot.slane %v4570, 4
    %v4582 = vrot.slane %v4527, 5
    %v4583 = vrot.slane %v4529, 5
    %v4584 = vrot.slane %v4568, 5
    %v4585 = vrot.slane %v4570, 5
    %v4594 = vadd.f32 %v3225, %v4578
    %v4595 = vadd.f32 %v3227, %v4579
    %v4596 = vadd.f32 %v3268, %v4580
    %v4597 = vadd.f32 %v3270, %v4581
    %v4598 = vadd.f32 %v3229, %v4582
    %v4599 = vadd.f32 %v3231, %v4583
    %v4600 = vadd.f32 %v3272, %v4584
    %v4601 = vadd.f32 %v3274, %v4585
    %v4602 = vxor.u32 %v4594, 2147483648
    %v4603 = vxor.u32 %v4595, 2147483648
    %v4604 = vxor.u32 %v4598, 2147483648
    %v4605 = vxor.u32 %v4599, 2147483648
    %v4606 = vmul.f32 %v4602, 1.442695
    %v4607 = vpow.pop %v4606
    %v4608 = vmul.f32 %v4603, 1.442695
    %v4609 = vpow.pop %v4608
    %v4610 = vmul.f32 %v4604, 1.442695
    %v4611 = vpow.pop %v4610
    %v4612 = vmul.f32 %v4605, 1.442695
    %v4613 = vpow.pop %v4612
    %v4614 = vadd.f32 %v4607, 1.0
    %v4615 = vadd.f32 %v4609, 1.0
    %v4616 = vadd.f32 %v4611, 1.0
    %v4617 = vadd.f32 %v4613, 1.0
    %v4618 = vrcp.pop %v4614
    %v4619 = vmul.f32 1.0, %v4618
    %v4620 = vrcp.pop %v4615
    %v4621 = vmul.f32 1.0, %v4620
    %v4622 = vrcp.pop %v4616
    %v4623 = vmul.f32 1.0, %v4622
    %v4624 = vrcp.pop %v4617
    %v4625 = vmul.f32 1.0, %v4624
    %v4626 = vtanh.pop %v4595
    %v4627 = vtanh.pop %v4599
    %v4630 = vrot.slane %v4389, 7
    %v4631 = vrot.slane %v4390, 7
    %v4634 = vmul.f32 %v4619, %v4630
    %v4635 = vmul.f32 %v4623, %v4631
    %4638 = vrot.lane.b32.xlu0 %v4626, 64
    %v4639 = vpop.permute.xlu0 %4638
    %4640 = vrot.lane.b32.xlu0 %v4627, 64
    %v4641 = vpop.permute.xlu0 %4640
    %v4644 = vmul.f32 %v4619, %v4639
    %v4645 = vmul.f32 %v4623, %v4641
    %4648 = vrot.lane.b32.xlu0 %v4644, 64
    %v4649 = vpop.permute.xlu0 %4648
    %4650 = vrot.lane.b32.xlu0 %v4645, 64
    %v4651 = vpop.permute.xlu0 %4650
    %v4654 = vadd.f32 %v4634, %v4649
    %v4655 = vadd.f32 %v4635, %v4651
    %v4656 = vtanh.pop %v4654
    %v4657 = vtanh.pop %v4655
    %4660 = vrot.lane.b32.xlu0 %v4656, 64
    %v4661 = vpop.permute.xlu0 %4660
    %4662 = vrot.lane.b32.xlu0 %v4657, 64
    %v4663 = vpop.permute.xlu0 %4662
    %v4666 = vmul.f32 %v4621, %v4661
    %v4667 = vmul.f32 %v4625, %v4663
    %v4668 = vxor.u32 %v4596, 2147483648
    %v4669 = vxor.u32 %v4597, 2147483648
    %v4670 = vxor.u32 %v4600, 2147483648
    %v4671 = vxor.u32 %v4601, 2147483648
    %v4672 = vmul.f32 %v4668, 1.442695
    %v4673 = vpow.pop %v4672
    %v4674 = vmul.f32 %v4669, 1.442695
    %v4675 = vpow.pop %v4674
    %v4676 = vmul.f32 %v4670, 1.442695
    %v4677 = vpow.pop %v4676
    %v4678 = vmul.f32 %v4671, 1.442695
    %v4679 = vpow.pop %v4678
    %v4680 = vadd.f32 %v4673, 1.0
    %v4681 = vadd.f32 %v4675, 1.0
    %v4682 = vadd.f32 %v4677, 1.0
    %v4683 = vadd.f32 %v4679, 1.0
    %v4684 = vrcp.pop %v4680
    %v4685 = vmul.f32 1.0, %v4684
    %v4686 = vrcp.pop %v4681
    %v4687 = vmul.f32 1.0, %v4686
    %v4688 = vrcp.pop %v4682
    %v4689 = vmul.f32 1.0, %v4688
    %v4690 = vrcp.pop %v4683
    %v4691 = vmul.f32 1.0, %v4690
    %v4692 = vtanh.pop %v4597
    %v4693 = vtanh.pop %v4601
    %v4696 = vrot.slane %v4455, 7
    %v4697 = vrot.slane %v4456, 7
    %v4700 = vmul.f32 %v4685, %v4696
    %v4701 = vmul.f32 %v4689, %v4697
    %4704 = vrot.lane.b32.xlu0 %v4692, 64
    %v4705 = vpop.permute.xlu0 %4704
    %4706 = vrot.lane.b32.xlu0 %v4693, 64
    %v4707 = vpop.permute.xlu0 %4706
    %v4710 = vmul.f32 %v4685, %v4705
    %v4711 = vmul.f32 %v4689, %v4707
    %4714 = vrot.lane.b32.xlu0 %v4710, 64
    %v4715 = vpop.permute.xlu0 %4714
    %4716 = vrot.lane.b32.xlu0 %v4711, 64
    %v4717 = vpop.permute.xlu0 %4716
    %v4720 = vadd.f32 %v4700, %v4715
    %v4721 = vadd.f32 %v4701, %v4717
    %v4722 = vtanh.pop %v4720
    %v4723 = vtanh.pop %v4721
    %4726 = vrot.lane.b32.xlu0 %v4722, 64
    %v4727 = vpop.permute.xlu0 %4726
    %4728 = vrot.lane.b32.xlu0 %v4723, 64
    %v4729 = vpop.permute.xlu0 %4728
    %v4732 = vmul.f32 %v4687, %v4727
    %v4733 = vmul.f32 %v4691, %v4729
    %v4736 = vrot.slane %v4667, 7
    %v4737 = vsel %vm1834, %v4736, %v4666
    %v4741 = vrot.slane %v4733, 7
    %v4742 = vsel %vm1834, %v4741, %v4732
    %4743 = vrot.lane.b32.xlu0 %v4742, 64
    %v4744 = vpop.permute.xlu0 %4743
    %v4746 = vsel %vm303, %v4737, %v4744
    %v4747 = vpack.c.bf16 %v4746, %v4746
    %v4749 = vrot.slane %v4747, 2
    %4751 = vmatprep.subr.bf16.mxu0 %v3399
    %4752 = vmatpush1.bf16.msra.mxu0 %v3398
    %4753 = vmatprep.subr.bf16.mxu0 %v3403
    %4754 = vmatpush1.bf16.msra.mxu0 %v3402
    %4755 = vmatprep.subr.bf16.mxu0 %v3407
    %4756 = vmatpush1.bf16.msra.mxu0 %v3406
    %4757 = vmatprep.subr.bf16.mxu0 %v3411
    %4758 = vmatpush1.bf16.msra.mxu0 %v3410
    %4759 = vmatprep.subr.bf16.mxu0 %v3415
    %4760 = vmatpush1.bf16.msra.mxu0 %v3414
    %4761 = vmatprep.subr.bf16.mxu0 %v3419
    %4762 = vmatpush1.bf16.msra.mxu0 %v3418
    %4763 = vmatprep.subr.bf16.mxu0 %v3423
    %4764 = vmatpush1.bf16.msra.mxu0 %v3422
    %4765 = vmatprep.subr.bf16.mxu0 %v3427
    %4766 = vmatpush1.bf16.msra.mxu0 %v3426
    %4767 = vmatprep.subr.bf16.mxu0 0
    %4768 = vmatpush1.bf16.msra.mxu0 0
    %4769 = vmatprep.subr.bf16.mxu0 0
    %4770 = vmatpush1.bf16.msra.mxu0 0
    %4771 = vmatprep.subr.bf16.mxu0 0
    %4772 = vmatpush1.bf16.msra.mxu0 0
    %4773 = vmatprep.subr.bf16.mxu0 0
    %4774 = vmatpush1.bf16.msra.mxu0 0
    %4775 = vmatprep.subr.bf16.mxu0 0
    %4776 = vmatpush1.bf16.msra.mxu0 0
    %4777 = vmatprep.subr.bf16.mxu0 0
    %4778 = vmatpush1.bf16.msra.mxu0 0
    %4779 = vmatprep.subr.bf16.mxu0 0
    %4780 = vmatpush1.bf16.msra.mxu0 0
    %4781 = vmatprep.subr.bf16.mxu0 0
    %4782 = vmatpush1.bf16.msra.mxu0 0
    %4783 = vmatprep.mubr.bf16.mxu0 0
    %4784 = vmatmul.mubr.bf16.gmra.mrb[0].mxu0 %v4749
    %v4785 = vpop.f32.mrb[0].mxu0
    %v4786 = vadd.f32 0.0, %v4785
    %v4787 = vpop.f32.mrb[0].mxu0
    %v4788 = vadd.f32 0.0, %v4787
    %v4789 = vpop.f32.mrb[0].mxu0
    %v4790 = vpop.f32.mrb[0].mxu0
    %4791 = vdwg.mxu0
    %4792 = vmatprep.subr.bf16.mxu0 %v3401
    %4793 = vmatpush1.bf16.msra.mxu0 %v3400
    %4794 = vmatprep.subr.bf16.mxu0 %v3405
    %4795 = vmatpush1.bf16.msra.mxu0 %v3404
    %4796 = vmatprep.subr.bf16.mxu0 %v3409
    %4797 = vmatpush1.bf16.msra.mxu0 %v3408
    %4798 = vmatprep.subr.bf16.mxu0 %v3413
    %4799 = vmatpush1.bf16.msra.mxu0 %v3412
    %4800 = vmatprep.subr.bf16.mxu0 %v3417
    %4801 = vmatpush1.bf16.msra.mxu0 %v3416
    %4802 = vmatprep.subr.bf16.mxu0 %v3421
    %4803 = vmatpush1.bf16.msra.mxu0 %v3420
    %4804 = vmatprep.subr.bf16.mxu0 %v3425
    %4805 = vmatpush1.bf16.msra.mxu0 %v3424
    %4806 = vmatprep.subr.bf16.mxu0 %v3429
    %4807 = vmatpush1.bf16.msra.mxu0 %v3428
    %4808 = vmatprep.subr.bf16.mxu0 0
    %4809 = vmatpush1.bf16.msra.mxu0 0
    %4810 = vmatprep.subr.bf16.mxu0 0
    %4811 = vmatpush1.bf16.msra.mxu0 0
    %4812 = vmatprep.subr.bf16.mxu0 0
    %4813 = vmatpush1.bf16.msra.mxu0 0
    %4814 = vmatprep.subr.bf16.mxu0 0
    %4815 = vmatpush1.bf16.msra.mxu0 0
    %4816 = vmatprep.subr.bf16.mxu0 0
    %4817 = vmatpush1.bf16.msra.mxu0 0
    %4818 = vmatprep.subr.bf16.mxu0 0
    %4819 = vmatpush1.bf16.msra.mxu0 0
    %4820 = vmatprep.subr.bf16.mxu0 0
    %4821 = vmatpush1.bf16.msra.mxu0 0
    %4822 = vmatprep.subr.bf16.mxu0 0
    %4823 = vmatpush1.bf16.msra.mxu0 0
    %4824 = vmatprep.mubr.bf16.mxu0 0
    %4825 = vmatmul.mubr.bf16.gmra.mrb[0].mxu0 %v4749
    %v4826 = vpop.f32.mrb[0].mxu0
    %v4827 = vadd.f32 0.0, %v4826
    %v4828 = vpop.f32.mrb[0].mxu0
    %v4829 = vadd.f32 0.0, %v4828
    %v4830 = vpop.f32.mrb[0].mxu0
    %v4831 = vpop.f32.mrb[0].mxu0
    %4832 = vdwg.mxu0
    %v4837 = vrot.slane %v4786, 3
    %v4838 = vrot.slane %v4788, 3
    %v4839 = vrot.slane %v4827, 3
    %v4840 = vrot.slane %v4829, 3
    %v4841 = vrot.slane %v4786, 4
    %v4842 = vrot.slane %v4788, 4
    %v4843 = vrot.slane %v4827, 4
    %v4844 = vrot.slane %v4829, 4
    %v4853 = vadd.f32 %v3225, %v4837
    %v4854 = vadd.f32 %v3227, %v4838
    %v4855 = vadd.f32 %v3268, %v4839
    %v4856 = vadd.f32 %v3270, %v4840
    %v4857 = vadd.f32 %v3229, %v4841
    %v4858 = vadd.f32 %v3231, %v4842
    %v4859 = vadd.f32 %v3272, %v4843
    %v4860 = vadd.f32 %v3274, %v4844
    %v4861 = vxor.u32 %v4853, 2147483648
    %v4862 = vxor.u32 %v4854, 2147483648
    %v4863 = vxor.u32 %v4857, 2147483648
    %v4864 = vxor.u32 %v4858, 2147483648
    %v4865 = vmul.f32 %v4861, 1.442695
    %v4866 = vpow.pop %v4865
    %v4867 = vmul.f32 %v4862, 1.442695
    %v4868 = vpow.pop %v4867
    %v4869 = vmul.f32 %v4863, 1.442695
    %v4870 = vpow.pop %v4869
    %v4871 = vmul.f32 %v4864, 1.442695
    %v4872 = vpow.pop %v4871
    %v4873 = vadd.f32 %v4866, 1.0
    %v4874 = vadd.f32 %v4868, 1.0
    %v4875 = vadd.f32 %v4870, 1.0
    %v4876 = vadd.f32 %v4872, 1.0
    %v4877 = vrcp.pop %v4873
    %v4878 = vmul.f32 1.0, %v4877
    %v4879 = vrcp.pop %v4874
    %v4880 = vmul.f32 1.0, %v4879
    %v4881 = vrcp.pop %v4875
    %v4882 = vmul.f32 1.0, %v4881
    %v4883 = vrcp.pop %v4876
    %v4884 = vmul.f32 1.0, %v4883
    %v4885 = vtanh.pop %v4854
    %v4886 = vtanh.pop %v4858
    %v4889 = vrot.slane %v4654, 7
    %v4890 = vrot.slane %v4655, 7
    %v4893 = vmul.f32 %v4878, %v4889
    %v4894 = vmul.f32 %v4882, %v4890
    %4897 = vrot.lane.b32.xlu0 %v4885, 64
    %v4898 = vpop.permute.xlu0 %4897
    %4899 = vrot.lane.b32.xlu0 %v4886, 64
    %v4900 = vpop.permute.xlu0 %4899
    %v4903 = vmul.f32 %v4878, %v4898
    %v4904 = vmul.f32 %v4882, %v4900
    %4907 = vrot.lane.b32.xlu0 %v4903, 64
    %v4908 = vpop.permute.xlu0 %4907
    %4909 = vrot.lane.b32.xlu0 %v4904, 64
    %v4910 = vpop.permute.xlu0 %4909
    %v4913 = vadd.f32 %v4893, %v4908
    %v4914 = vadd.f32 %v4894, %v4910
    %v4915 = vtanh.pop %v4913
    %v4916 = vtanh.pop %v4914
    %4919 = vrot.lane.b32.xlu0 %v4915, 64
    %v4920 = vpop.permute.xlu0 %4919
    %4921 = vrot.lane.b32.xlu0 %v4916, 64
    %v4922 = vpop.permute.xlu0 %4921
    %v4925 = vmul.f32 %v4880, %v4920
    %v4926 = vmul.f32 %v4884, %v4922
    %v4927 = vxor.u32 %v4855, 2147483648
    %v4928 = vxor.u32 %v4856, 2147483648
    %v4929 = vxor.u32 %v4859, 2147483648
    %v4930 = vxor.u32 %v4860, 2147483648
    %v4931 = vmul.f32 %v4927, 1.442695
    %v4932 = vpow.pop %v4931
    %v4933 = vmul.f32 %v4928, 1.442695
    %v4934 = vpow.pop %v4933
    %v4935 = vmul.f32 %v4929, 1.442695
    %v4936 = vpow.pop %v4935
    %v4937 = vmul.f32 %v4930, 1.442695
    %v4938 = vpow.pop %v4937
    %v4939 = vadd.f32 %v4932, 1.0
    %v4940 = vadd.f32 %v4934, 1.0
    %v4941 = vadd.f32 %v4936, 1.0
    %v4942 = vadd.f32 %v4938, 1.0
    %v4943 = vrcp.pop %v4939
    %v4944 = vmul.f32 1.0, %v4943
    %v4945 = vrcp.pop %v4940
    %v4946 = vmul.f32 1.0, %v4945
    %v4947 = vrcp.pop %v4941
    %v4948 = vmul.f32 1.0, %v4947
    %v4949 = vrcp.pop %v4942
    %v4950 = vmul.f32 1.0, %v4949
    %v4951 = vtanh.pop %v4856
    %v4952 = vtanh.pop %v4860
    %v4955 = vrot.slane %v4720, 7
    %v4956 = vrot.slane %v4721, 7
    %v4959 = vmul.f32 %v4944, %v4955
    %v4960 = vmul.f32 %v4948, %v4956
    %4963 = vrot.lane.b32.xlu0 %v4951, 64
    %v4964 = vpop.permute.xlu0 %4963
    %4965 = vrot.lane.b32.xlu0 %v4952, 64
    %v4966 = vpop.permute.xlu0 %4965
    %v4969 = vmul.f32 %v4944, %v4964
    %v4970 = vmul.f32 %v4948, %v4966
    %4973 = vrot.lane.b32.xlu0 %v4969, 64
    %v4974 = vpop.permute.xlu0 %4973
    %4975 = vrot.lane.b32.xlu0 %v4970, 64
    %v4976 = vpop.permute.xlu0 %4975
    %v4979 = vadd.f32 %v4959, %v4974
    %v4980 = vadd.f32 %v4960, %v4976
    %v4981 = vtanh.pop %v4979
    %v4982 = vtanh.pop %v4980
    %4985 = vrot.lane.b32.xlu0 %v4981, 64
    %v4986 = vpop.permute.xlu0 %4985
    %4987 = vrot.lane.b32.xlu0 %v4982, 64
    %v4988 = vpop.permute.xlu0 %4987
    %v4991 = vmul.f32 %v4946, %v4986
    %v4992 = vmul.f32 %v4950, %v4988
    %v4995 = vrot.slane %v4926, 7
    %v4996 = vsel %vm2095, %v4995, %v4925
    %v5000 = vrot.slane %v4992, 7
    %v5001 = vsel %vm2095, %v5000, %v4991
    %5002 = vrot.lane.b32.xlu0 %v5001, 64
    %v5003 = vpop.permute.xlu0 %5002
    %v5005 = vsel %vm303, %v4996, %v5003
    %v5006 = vpack.c.bf16 %v5005, %v5005
    %v5008 = vshrl.u32 %v5006, 16
    %v5010 = vrot.slane %v5008, 2
    %v5011 = vshll.u32 %v5006, 16
    %v5013 = vrot.slane %v5011, 3
    %v5014 = vor.u32 %v5010, %v5013
    %5016 = vmatprep.subr.bf16.mxu0 %v3399
    %5017 = vmatpush1.bf16.msra.mxu0 %v3398
    %5018 = vmatprep.subr.bf16.mxu0 %v3403
    %5019 = vmatpush1.bf16.msra.mxu0 %v3402
    %5020 = vmatprep.subr.bf16.mxu0 %v3407
    %5021 = vmatpush1.bf16.msra.mxu0 %v3406
    %5022 = vmatprep.subr.bf16.mxu0 %v3411
    %5023 = vmatpush1.bf16.msra.mxu0 %v3410
    %5024 = vmatprep.subr.bf16.mxu0 %v3415
    %5025 = vmatpush1.bf16.msra.mxu0 %v3414
    %5026 = vmatprep.subr.bf16.mxu0 %v3419
    %5027 = vmatpush1.bf16.msra.mxu0 %v3418
    %5028 = vmatprep.subr.bf16.mxu0 %v3423
    %5029 = vmatpush1.bf16.msra.mxu0 %v3422
    %5030 = vmatprep.subr.bf16.mxu0 %v3427
    %5031 = vmatpush1.bf16.msra.mxu0 %v3426
    %5032 = vmatprep.subr.bf16.mxu0 0
    %5033 = vmatpush1.bf16.msra.mxu0 0
    %5034 = vmatprep.subr.bf16.mxu0 0
    %5035 = vmatpush1.bf16.msra.mxu0 0
    %5036 = vmatprep.subr.bf16.mxu0 0
    %5037 = vmatpush1.bf16.msra.mxu0 0
    %5038 = vmatprep.subr.bf16.mxu0 0
    %5039 = vmatpush1.bf16.msra.mxu0 0
    %5040 = vmatprep.subr.bf16.mxu0 0
    %5041 = vmatpush1.bf16.msra.mxu0 0
    %5042 = vmatprep.subr.bf16.mxu0 0
    %5043 = vmatpush1.bf16.msra.mxu0 0
    %5044 = vmatprep.subr.bf16.mxu0 0
    %5045 = vmatpush1.bf16.msra.mxu0 0
    %5046 = vmatprep.subr.bf16.mxu0 0
    %5047 = vmatpush1.bf16.msra.mxu0 0
    %5048 = vmatprep.mubr.bf16.mxu0 0
    %5049 = vmatmul.mubr.bf16.gmra.mrb[0].mxu0 %v5014
    %v5050 = vpop.f32.mrb[0].mxu0
    %v5051 = vadd.f32 0.0, %v5050
    %v5052 = vpop.f32.mrb[0].mxu0
    %v5053 = vadd.f32 0.0, %v5052
    %v5054 = vpop.f32.mrb[0].mxu0
    %v5055 = vpop.f32.mrb[0].mxu0
    %5056 = vdwg.mxu0
    %5057 = vmatprep.subr.bf16.mxu0 %v3401
    %5058 = vmatpush1.bf16.msra.mxu0 %v3400
    %5059 = vmatprep.subr.bf16.mxu0 %v3405
    %5060 = vmatpush1.bf16.msra.mxu0 %v3404
    %5061 = vmatprep.subr.bf16.mxu0 %v3409
    %5062 = vmatpush1.bf16.msra.mxu0 %v3408
    %5063 = vmatprep.subr.bf16.mxu0 %v3413
    %5064 = vmatpush1.bf16.msra.mxu0 %v3412
    %5065 = vmatprep.subr.bf16.mxu0 %v3417
    %5066 = vmatpush1.bf16.msra.mxu0 %v3416
    %5067 = vmatprep.subr.bf16.mxu0 %v3421
    %5068 = vmatpush1.bf16.msra.mxu0 %v3420
    %5069 = vmatprep.subr.bf16.mxu0 %v3425
    %5070 = vmatpush1.bf16.msra.mxu0 %v3424
    %5071 = vmatprep.subr.bf16.mxu0 %v3429
    %5072 = vmatpush1.bf16.msra.mxu0 %v3428
    %5073 = vmatprep.subr.bf16.mxu0 0
    %5074 = vmatpush1.bf16.msra.mxu0 0
    %5075 = vmatprep.subr.bf16.mxu0 0
    %5076 = vmatpush1.bf16.msra.mxu0 0
    %5077 = vmatprep.subr.bf16.mxu0 0
    %5078 = vmatpush1.bf16.msra.mxu0 0
    %5079 = vmatprep.subr.bf16.mxu0 0
    %5080 = vmatpush1.bf16.msra.mxu0 0
    %5081 = vmatprep.subr.bf16.mxu0 0
    %5082 = vmatpush1.bf16.msra.mxu0 0
    %5083 = vmatprep.subr.bf16.mxu0 0
    %5084 = vmatpush1.bf16.msra.mxu0 0
    %5085 = vmatprep.subr.bf16.mxu0 0
    %5086 = vmatpush1.bf16.msra.mxu0 0
    %5087 = vmatprep.subr.bf16.mxu0 0
    %5088 = vmatpush1.bf16.msra.mxu0 0
    %5089 = vmatprep.mubr.bf16.mxu0 0
    %5090 = vmatmul.mubr.bf16.gmra.mrb[0].mxu0 %v5014
    %v5091 = vpop.f32.mrb[0].mxu0
    %v5092 = vadd.f32 0.0, %v5091
    %v5093 = vpop.f32.mrb[0].mxu0
    %v5094 = vadd.f32 0.0, %v5093
    %v5095 = vpop.f32.mrb[0].mxu0
    %v5096 = vpop.f32.mrb[0].mxu0
    %5097 = vdwg.mxu0
    %v5102 = vrot.slane %v5051, 2
    %v5103 = vrot.slane %v5053, 2
    %v5104 = vrot.slane %v5092, 2
    %v5105 = vrot.slane %v5094, 2
    %v5106 = vrot.slane %v5051, 3
    %v5107 = vrot.slane %v5053, 3
    %v5108 = vrot.slane %v5092, 3
    %v5109 = vrot.slane %v5094, 3
    %v5118 = vadd.f32 %v3225, %v5102
    %v5119 = vadd.f32 %v3227, %v5103
    %v5120 = vadd.f32 %v3268, %v5104
    %v5121 = vadd.f32 %v3270, %v5105
    %v5122 = vadd.f32 %v3229, %v5106
    %v5123 = vadd.f32 %v3231, %v5107
    %v5124 = vadd.f32 %v3272, %v5108
    %v5125 = vadd.f32 %v3274, %v5109
    %v5126 = vxor.u32 %v5118, 2147483648
    %v5127 = vxor.u32 %v5119, 2147483648
    %v5128 = vxor.u32 %v5122, 2147483648
    %v5129 = vxor.u32 %v5123, 2147483648
    %v5130 = vmul.f32 %v5126, 1.442695
    %v5131 = vpow.pop %v5130
    %v5132 = vmul.f32 %v5127, 1.442695
    %v5133 = vpow.pop %v5132
    %v5134 = vmul.f32 %v5128, 1.442695
    %v5135 = vpow.pop %v5134
    %v5136 = vmul.f32 %v5129, 1.442695
    %v5137 = vpow.pop %v5136
    %v5138 = vadd.f32 %v5131, 1.0
    %v5139 = vadd.f32 %v5133, 1.0
    %v5140 = vadd.f32 %v5135, 1.0
    %v5141 = vadd.f32 %v5137, 1.0
    %v5142 = vrcp.pop %v5138
    %v5143 = vmul.f32 1.0, %v5142
    %v5144 = vrcp.pop %v5139
    %v5145 = vmul.f32 1.0, %v5144
    %v5146 = vrcp.pop %v5140
    %v5147 = vmul.f32 1.0, %v5146
    %v5148 = vrcp.pop %v5141
    %v5149 = vmul.f32 1.0, %v5148
    %v5150 = vtanh.pop %v5119
    %v5151 = vtanh.pop %v5123
    %v5154 = vrot.slane %v4913, 7
    %v5155 = vrot.slane %v4914, 7
    %v5158 = vmul.f32 %v5143, %v5154
    %v5159 = vmul.f32 %v5147, %v5155
    %5162 = vrot.lane.b32.xlu0 %v5150, 64
    %v5163 = vpop.permute.xlu0 %5162
    %5164 = vrot.lane.b32.xlu0 %v5151, 64
    %v5165 = vpop.permute.xlu0 %5164
    %v5168 = vmul.f32 %v5143, %v5163
    %v5169 = vmul.f32 %v5147, %v5165
    %5172 = vrot.lane.b32.xlu0 %v5168, 64
    %v5173 = vpop.permute.xlu0 %5172
    %5174 = vrot.lane.b32.xlu0 %v5169, 64
    %v5175 = vpop.permute.xlu0 %5174
    %v5178 = vadd.f32 %v5158, %v5173
    %v5179 = vadd.f32 %v5159, %v5175
    %v5180 = vtanh.pop %v5178
    %v5181 = vtanh.pop %v5179
    %5184 = vrot.lane.b32.xlu0 %v5180, 64
    %v5185 = vpop.permute.xlu0 %5184
    %5186 = vrot.lane.b32.xlu0 %v5181, 64
    %v5187 = vpop.permute.xlu0 %5186
    %v5190 = vmul.f32 %v5145, %v5185
    %v5191 = vmul.f32 %v5149, %v5187
    %v5192 = vxor.u32 %v5120, 2147483648
    %v5193 = vxor.u32 %v5121, 2147483648
    %v5194 = vxor.u32 %v5124, 2147483648
    %v5195 = vxor.u32 %v5125, 2147483648
    %v5196 = vmul.f32 %v5192, 1.442695
    %v5197 = vpow.pop %v5196
    %v5198 = vmul.f32 %v5193, 1.442695
    %v5199 = vpow.pop %v5198
    %v5200 = vmul.f32 %v5194, 1.442695
    %v5201 = vpow.pop %v5200
    %v5202 = vmul.f32 %v5195, 1.442695
    %v5203 = vpow.pop %v5202
    %v5204 = vadd.f32 %v5197, 1.0
    %v5205 = vadd.f32 %v5199, 1.0
    %v5206 = vadd.f32 %v5201, 1.0
    %v5207 = vadd.f32 %v5203, 1.0
    %v5208 = vrcp.pop %v5204
    %v5209 = vmul.f32 1.0, %v5208
    %v5210 = vrcp.pop %v5205
    %v5211 = vmul.f32 1.0, %v5210
    %v5212 = vrcp.pop %v5206
    %v5213 = vmul.f32 1.0, %v5212
    %v5214 = vrcp.pop %v5207
    %v5215 = vmul.f32 1.0, %v5214
    %v5216 = vtanh.pop %v5121
    %v5217 = vtanh.pop %v5125
    %v5220 = vrot.slane %v4979, 7
    %v5221 = vrot.slane %v4980, 7
    %v5224 = vmul.f32 %v5209, %v5220
    %v5225 = vmul.f32 %v5213, %v5221
    %5228 = vrot.lane.b32.xlu0 %v5216, 64
    %v5229 = vpop.permute.xlu0 %5228
    %5230 = vrot.lane.b32.xlu0 %v5217, 64
    %v5231 = vpop.permute.xlu0 %5230
    %v5234 = vmul.f32 %v5209, %v5229
    %v5235 = vmul.f32 %v5213, %v5231
    %5238 = vrot.lane.b32.xlu0 %v5234, 64
    %v5239 = vpop.permute.xlu0 %5238
    %5240 = vrot.lane.b32.xlu0 %v5235, 64
    %v5241 = vpop.permute.xlu0 %5240
    %v5244 = vadd.f32 %v5224, %v5239
    %v5245 = vadd.f32 %v5225, %v5241
    %v5246 = vtanh.pop %v5244
    %v5247 = vtanh.pop %v5245
    %5250 = vrot.lane.b32.xlu0 %v5246, 64
    %v5251 = vpop.permute.xlu0 %5250
    %5252 = vrot.lane.b32.xlu0 %v5247, 64
    %v5253 = vpop.permute.xlu0 %5252
    %v5256 = vmul.f32 %v5211, %v5251
    %v5257 = vmul.f32 %v5215, %v5253
    %v5260 = vrot.slane %v5191, 7
    %v5261 = vsel %vm2360, %v5260, %v5190
    %v5265 = vrot.slane %v5257, 7
    %v5266 = vsel %vm2360, %v5265, %v5256
    %5267 = vrot.lane.b32.xlu0 %v5266, 64
    %v5268 = vpop.permute.xlu0 %5267
    %v5270 = vsel %vm303, %v5261, %v5268
    %v5271 = vpack.c.bf16 %v5270, %v5270
    %v5273 = vrot.slane %v5271, 3
    %5275 = vmatprep.subr.bf16.mxu0 %v3399
    %5276 = vmatpush1.bf16.msra.mxu0 %v3398
    %5277 = vmatprep.subr.bf16.mxu0 %v3403
    %5278 = vmatpush1.bf16.msra.mxu0 %v3402
    %5279 = vmatprep.subr.bf16.mxu0 %v3407
    %5280 = vmatpush1.bf16.msra.mxu0 %v3406
    %5281 = vmatprep.subr.bf16.mxu0 %v3411
    %5282 = vmatpush1.bf16.msra.mxu0 %v3410
    %5283 = vmatprep.subr.bf16.mxu0 %v3415
    %5284 = vmatpush1.bf16.msra.mxu0 %v3414
    %5285 = vmatprep.subr.bf16.mxu0 %v3419
    %5286 = vmatpush1.bf16.msra.mxu0 %v3418
    %5287 = vmatprep.subr.bf16.mxu0 %v3423
    %5288 = vmatpush1.bf16.msra.mxu0 %v3422
    %5289 = vmatprep.subr.bf16.mxu0 %v3427
    %5290 = vmatpush1.bf16.msra.mxu0 %v3426
    %5291 = vmatprep.subr.bf16.mxu0 0
    %5292 = vmatpush1.bf16.msra.mxu0 0
    %5293 = vmatprep.subr.bf16.mxu0 0
    %5294 = vmatpush1.bf16.msra.mxu0 0
    %5295 = vmatprep.subr.bf16.mxu0 0
    %5296 = vmatpush1.bf16.msra.mxu0 0
    %5297 = vmatprep.subr.bf16.mxu0 0
    %5298 = vmatpush1.bf16.msra.mxu0 0
    %5299 = vmatprep.subr.bf16.mxu0 0
    %5300 = vmatpush1.bf16.msra.mxu0 0
    %5301 = vmatprep.subr.bf16.mxu0 0
    %5302 = vmatpush1.bf16.msra.mxu0 0
    %5303 = vmatprep.subr.bf16.mxu0 0
    %5304 = vmatpush1.bf16.msra.mxu0 0
    %5305 = vmatprep.subr.bf16.mxu0 0
    %5306 = vmatpush1.bf16.msra.mxu0 0
    %5307 = vmatprep.mubr.bf16.mxu0 0
    %5308 = vmatmul.mubr.bf16.gmra.mrb[0].mxu0 %v5273
    %v5309 = vpop.f32.mrb[0].mxu0
    %v5310 = vadd.f32 0.0, %v5309
    %v5311 = vpop.f32.mrb[0].mxu0
    %v5312 = vadd.f32 0.0, %v5311
    %v5313 = vpop.f32.mrb[0].mxu0
    %v5314 = vpop.f32.mrb[0].mxu0
    %5315 = vdwg.mxu0
    %5316 = vmatprep.subr.bf16.mxu0 %v3401
    %5317 = vmatpush1.bf16.msra.mxu0 %v3400
    %5318 = vmatprep.subr.bf16.mxu0 %v3405
    %5319 = vmatpush1.bf16.msra.mxu0 %v3404
    %5320 = vmatprep.subr.bf16.mxu0 %v3409
    %5321 = vmatpush1.bf16.msra.mxu0 %v3408
    %5322 = vmatprep.subr.bf16.mxu0 %v3413
    %5323 = vmatpush1.bf16.msra.mxu0 %v3412
    %5324 = vmatprep.subr.bf16.mxu0 %v3417
    %5325 = vmatpush1.bf16.msra.mxu0 %v3416
    %5326 = vmatprep.subr.bf16.mxu0 %v3421
    %5327 = vmatpush1.bf16.msra.mxu0 %v3420
    %5328 = vmatprep.subr.bf16.mxu0 %v3425
    %5329 = vmatpush1.bf16.msra.mxu0 %v3424
    %5330 = vmatprep.subr.bf16.mxu0 %v3429
    %5331 = vmatpush1.bf16.msra.mxu0 %v3428
    %5332 = vmatprep.subr.bf16.mxu0 0
    %5333 = vmatpush1.bf16.msra.mxu0 0
    %5334 = vmatprep.subr.bf16.mxu0 0
    %5335 = vmatpush1.bf16.msra.mxu0 0
    %5336 = vmatprep.subr.bf16.mxu0 0
    %5337 = vmatpush1.bf16.msra.mxu0 0
    %5338 = vmatprep.subr.bf16.mxu0 0
    %5339 = vmatpush1.bf16.msra.mxu0 0
    %5340 = vmatprep.subr.bf16.mxu0 0
    %5341 = vmatpush1.bf16.msra.mxu0 0
    %5342 = vmatprep.subr.bf16.mxu0 0
    %5343 = vmatpush1.bf16.msra.mxu0 0
    %5344 = vmatprep.subr.bf16.mxu0 0
    %5345 = vmatpush1.bf16.msra.mxu0 0
    %5346 = vmatprep.subr.bf16.mxu0 0
    %5347 = vmatpush1.bf16.msra.mxu0 0
    %5348 = vmatprep.mubr.bf16.mxu0 0
    %5349 = vmatmul.mubr.bf16.gmra.mrb[0].mxu0 %v5273
    %v5350 = vpop.f32.mrb[0].mxu0
    %v5351 = vadd.f32 0.0, %v5350
    %v5352 = vpop.f32.mrb[0].mxu0
    %v5353 = vadd.f32 0.0, %v5352
    %v5354 = vpop.f32.mrb[0].mxu0
    %v5355 = vpop.f32.mrb[0].mxu0
    %5356 = vdwg.mxu0
    %v5361 = vrot.slane %v5310, 1
    %v5362 = vrot.slane %v5312, 1
    %v5363 = vrot.slane %v5351, 1
    %v5364 = vrot.slane %v5353, 1
    %v5365 = vrot.slane %v5310, 2
    %v5366 = vrot.slane %v5312, 2
    %v5367 = vrot.slane %v5351, 2
    %v5368 = vrot.slane %v5353, 2
    %v5377 = vadd.f32 %v3225, %v5361
    %v5378 = vadd.f32 %v3227, %v5362
    %v5379 = vadd.f32 %v3268, %v5363
    %v5380 = vadd.f32 %v3270, %v5364
    %v5381 = vadd.f32 %v3229, %v5365
    %v5382 = vadd.f32 %v3231, %v5366
    %v5383 = vadd.f32 %v3272, %v5367
    %v5384 = vadd.f32 %v3274, %v5368
    %v5385 = vxor.u32 %v5377, 2147483648
    %v5386 = vxor.u32 %v5378, 2147483648
    %v5387 = vxor.u32 %v5381, 2147483648
    %v5388 = vxor.u32 %v5382, 2147483648
    %v5389 = vmul.f32 %v5385, 1.442695
    %v5390 = vpow.pop %v5389
    %v5391 = vmul.f32 %v5386, 1.442695
    %v5392 = vpow.pop %v5391
    %v5393 = vmul.f32 %v5387, 1.442695
    %v5394 = vpow.pop %v5393
    %v5395 = vmul.f32 %v5388, 1.442695
    %v5396 = vpow.pop %v5395
    %v5397 = vadd.f32 %v5390, 1.0
    %v5398 = vadd.f32 %v5392, 1.0
    %v5399 = vadd.f32 %v5394, 1.0
    %v5400 = vadd.f32 %v5396, 1.0
    %v5401 = vrcp.pop %v5397
    %v5402 = vmul.f32 1.0, %v5401
    %v5403 = vrcp.pop %v5398
    %v5404 = vmul.f32 1.0, %v5403
    %v5405 = vrcp.pop %v5399
    %v5406 = vmul.f32 1.0, %v5405
    %v5407 = vrcp.pop %v5400
    %v5408 = vmul.f32 1.0, %v5407
    %v5409 = vtanh.pop %v5378
    %v5410 = vtanh.pop %v5382
    %v5413 = vrot.slane %v5178, 7
    %v5414 = vrot.slane %v5179, 7
    %v5417 = vmul.f32 %v5402, %v5413
    %v5418 = vmul.f32 %v5406, %v5414
    %5421 = vrot.lane.b32.xlu0 %v5409, 64
    %v5422 = vpop.permute.xlu0 %5421
    %5423 = vrot.lane.b32.xlu0 %v5410, 64
    %v5424 = vpop.permute.xlu0 %5423
    %v5427 = vmul.f32 %v5402, %v5422
    %v5428 = vmul.f32 %v5406, %v5424
    %5431 = vrot.lane.b32.xlu0 %v5427, 64
    %v5432 = vpop.permute.xlu0 %5431
    %5433 = vrot.lane.b32.xlu0 %v5428, 64
    %v5434 = vpop.permute.xlu0 %5433
    %v5437 = vadd.f32 %v5417, %v5432
    %v5438 = vadd.f32 %v5418, %v5434
    %v5439 = vtanh.pop %v5437
    %v5440 = vtanh.pop %v5438
    %5443 = vrot.lane.b32.xlu0 %v5439, 64
    %v5444 = vpop.permute.xlu0 %5443
    %5445 = vrot.lane.b32.xlu0 %v5440, 64
    %v5446 = vpop.permute.xlu0 %5445
    %v5449 = vmul.f32 %v5404, %v5444
    %v5450 = vmul.f32 %v5408, %v5446
    %v5451 = vxor.u32 %v5379, 2147483648
    %v5452 = vxor.u32 %v5380, 2147483648
    %v5453 = vxor.u32 %v5383, 2147483648
    %v5454 = vxor.u32 %v5384, 2147483648
    %v5455 = vmul.f32 %v5451, 1.442695
    %v5456 = vpow.pop %v5455
    %v5457 = vmul.f32 %v5452, 1.442695
    %v5458 = vpow.pop %v5457
    %v5459 = vmul.f32 %v5453, 1.442695
    %v5460 = vpow.pop %v5459
    %v5461 = vmul.f32 %v5454, 1.442695
    %v5462 = vpow.pop %v5461
    %v5463 = vadd.f32 %v5456, 1.0
    %v5464 = vadd.f32 %v5458, 1.0
    %v5465 = vadd.f32 %v5460, 1.0
    %v5466 = vadd.f32 %v5462, 1.0
    %v5467 = vrcp.pop %v5463
    %v5468 = vmul.f32 1.0, %v5467
    %v5469 = vrcp.pop %v5464
    %v5470 = vmul.f32 1.0, %v5469
    %v5471 = vrcp.pop %v5465
    %v5472 = vmul.f32 1.0, %v5471
    %v5473 = vrcp.pop %v5466
    %v5474 = vmul.f32 1.0, %v5473
    %v5475 = vtanh.pop %v5380
    %v5476 = vtanh.pop %v5384
    %v5479 = vrot.slane %v5244, 7
    %v5480 = vrot.slane %v5245, 7
    %v5483 = vmul.f32 %v5468, %v5479
    %v5484 = vmul.f32 %v5472, %v5480
    %5487 = vrot.lane.b32.xlu0 %v5475, 64
    %v5488 = vpop.permute.xlu0 %5487
    %5489 = vrot.lane.b32.xlu0 %v5476, 64
    %v5490 = vpop.permute.xlu0 %5489
    %v5493 = vmul.f32 %v5468, %v5488
    %v5494 = vmul.f32 %v5472, %v5490
    %5497 = vrot.lane.b32.xlu0 %v5493, 64
    %v5498 = vpop.permute.xlu0 %5497
    %5499 = vrot.lane.b32.xlu0 %v5494, 64
    %v5500 = vpop.permute.xlu0 %5499
    %v5503 = vadd.f32 %v5483, %v5498
    %v5504 = vadd.f32 %v5484, %v5500
    %v5505 = vtanh.pop %v5503
    %v5506 = vtanh.pop %v5504
    %5509 = vrot.lane.b32.xlu0 %v5505, 64
    %v5510 = vpop.permute.xlu0 %5509
    %5511 = vrot.lane.b32.xlu0 %v5506, 64
    %v5512 = vpop.permute.xlu0 %5511
    %v5515 = vmul.f32 %v5470, %v5510
    %v5516 = vmul.f32 %v5474, %v5512
    %v5519 = vrot.slane %v5450, 7
    %v5524 = vrot.slane %v5516, 7
    %5525 = vrot.lane.b32.xlu0 %v5515, 64
    %v5526 = vpop.permute.xlu0 %5525
    %5527 = vrot.lane.b32.xlu0 %v5524, 64
    %v5528 = vpop.permute.xlu0 %5527
    %v5531 = vsel %vm303, %v5449, %v5526
    %v5532 = vsel %vm303, %v5519, %v5528
    %v5535 = vunpack.c.l.s4 1966171168
    %v5536 = vunpack.c.0.s8 %v5535
    %v5537 = vlaneseq
    %v5538 = vshrl.u32 %v5537, 7
    %v5539 = vsub.s32 %v5536, %v5538
    %v5540 = vrot.slane %v3706, %v5539
    %v5541 = vcombine.high %v5540, %v5540
    %v5543 = vunpack.c.l.s4 1966171168
    %v5544 = vunpack.c.0.s8 %v5543
    %v5545 = vlaneseq
    %v5546 = vshrl.u32 %v5545, 7
    %v5547 = vsub.s32 %v5544, %v5546
    %v5548 = vrot.slane %v5540, %v5547
    %v5550 = vunpack.c.l.s4 1966171168
    %v5551 = vunpack.c.0.s8 %v5550
    %v5552 = vlaneseq
    %v5553 = vshrl.u32 %v5552, 7
    %v5554 = vsub.s32 %v5551, %v5553
    %v5555 = vrot.slane %v5541, %v5554
    %v5560 = vunpack.c.l.s4 1966171168
    %v5561 = vunpack.c.0.s8 %v5560
    %v5562 = vlaneseq
    %v5563 = vshrl.u32 %v5562, 7
    %v5564 = vsub.s32 %v5561, %v5563
    %v5565 = vrot.slane %v3958, %v5564
    %v5566 = vcombine.high %v5565, %v5565
    %v5568 = vunpack.c.l.s4 1966171168
    %v5569 = vunpack.c.0.s8 %v5568
    %v5570 = vlaneseq
    %v5571 = vshrl.u32 %v5570, 7
    %v5572 = vsub.s32 %v5569, %v5571
    %v5573 = vrot.slane %v5565, %v5572
    %v5575 = vunpack.c.l.s4 1966171168
    %v5576 = vunpack.c.0.s8 %v5575
    %v5577 = vlaneseq
    %v5578 = vshrl.u32 %v5577, 7
    %v5579 = vsub.s32 %v5576, %v5578
    %v5580 = vrot.slane %v5566, %v5579
    %v5581 = vcombine.high %v5573, %v5573
    %v5584 = vunpack.c.l.s4 1966171168
    %v5585 = vunpack.c.0.s8 %v5584
    %v5586 = vlaneseq
    %v5587 = vshrl.u32 %v5586, 7
    %v5588 = vsub.s32 %v5585, %v5587
    %v5589 = vrot.slane %v4222, %v5588
    %v5590 = vcombine.high %v5589, %v5589
    %v5592 = vunpack.c.l.s4 1966171168
    %v5593 = vunpack.c.0.s8 %v5592
    %v5594 = vlaneseq
    %v5595 = vshrl.u32 %v5594, 7
    %v5596 = vsub.s32 %v5593, %v5595
    %v5597 = vrot.slane %v5589, %v5596
    %v5599 = vunpack.c.l.s4 1966171168
    %v5600 = vunpack.c.0.s8 %v5599
    %v5601 = vlaneseq
    %v5602 = vshrl.u32 %v5601, 7
    %v5603 = vsub.s32 %v5600, %v5602
    %v5604 = vrot.slane %v5590, %v5603
    %v5605 = vcombine.high %v5597, %v5597
    %v5606 = vcombine.high %v5604, %v5604
    %v5608 = vcombine.high %v4481, %v4481
    %v5610 = vunpack.c.l.s4 1966171168
    %v5611 = vunpack.c.0.s8 %v5610
    %v5612 = vlaneseq
    %v5613 = vshrl.u32 %v5612, 7
    %v5614 = vsub.s32 %v5611, %v5613
    %v5615 = vrot.slane %v4481, %v5614
    %v5617 = vunpack.c.l.s4 1966171168
    %v5618 = vunpack.c.0.s8 %v5617
    %v5619 = vlaneseq
    %v5620 = vshrl.u32 %v5619, 7
    %v5621 = vsub.s32 %v5618, %v5620
    %v5622 = vrot.slane %v5608, %v5621
    %v5623 = vcombine.high %v5615, %v5615
    %v5625 = vunpack.c.l.s4 1966171168
    %v5626 = vunpack.c.0.s8 %v5625
    %v5627 = vlaneseq
    %v5628 = vshrl.u32 %v5627, 7
    %v5629 = vsub.s32 %v5626, %v5628
    %v5630 = vrot.slane %v5622, %v5629
    %v5632 = vunpack.c.l.s4 1966171168
    %v5633 = vunpack.c.0.s8 %v5632
    %v5634 = vlaneseq
    %v5635 = vshrl.u32 %v5634, 7
    %v5636 = vsub.s32 %v5633, %v5635
    %v5637 = vrot.slane %v5623, %v5636
    %v5638 = vcombine.high %v5637, %v5637
    %v5640 = vcombine.high %v4746, %v4746
    %v5642 = vunpack.c.l.s4 1966171168
    %v5643 = vunpack.c.0.s8 %v5642
    %v5644 = vlaneseq
    %v5645 = vshrl.u32 %v5644, 7
    %v5646 = vsub.s32 %v5643, %v5645
    %v5647 = vrot.slane %v5640, %v5646
    %v5648 = vcombine.high %v5647, %v5647
    %v5650 = vunpack.c.l.s4 1966171168
    %v5651 = vunpack.c.0.s8 %v5650
    %v5652 = vlaneseq
    %v5653 = vshrl.u32 %v5652, 7
    %v5654 = vsub.s32 %v5651, %v5653
    %v5655 = vrot.slane %v5647, %v5654
    %v5657 = vunpack.c.l.s4 1966171168
    %v5658 = vunpack.c.0.s8 %v5657
    %v5659 = vlaneseq
    %v5660 = vshrl.u32 %v5659, 7
    %v5661 = vsub.s32 %v5658, %v5660
    %v5662 = vrot.slane %v5648, %v5661
    %v5664 = vcombine.high %v5005, %v5005
    %v5666 = vunpack.c.l.s4 1966171168
    %v5667 = vunpack.c.0.s8 %v5666
    %v5668 = vlaneseq
    %v5669 = vshrl.u32 %v5668, 7
    %v5670 = vsub.s32 %v5667, %v5669
    %v5671 = vrot.slane %v5664, %v5670
    %v5672 = vcombine.high %v5671, %v5671
    %v5674 = vunpack.c.l.s4 1966171168
    %v5675 = vunpack.c.0.s8 %v5674
    %v5676 = vlaneseq
    %v5677 = vshrl.u32 %v5676, 7
    %v5678 = vsub.s32 %v5675, %v5677
    %v5679 = vrot.slane %v5671, %v5678
    %v5681 = vunpack.c.l.s4 1966171168
    %v5682 = vunpack.c.0.s8 %v5681
    %v5683 = vlaneseq
    %v5684 = vshrl.u32 %v5683, 7
    %v5685 = vsub.s32 %v5682, %v5684
    %v5686 = vrot.slane %v5672, %v5685
    %v5687 = vcombine.high %v5679, %v5679
    %v5689 = vcombine.high %v5270, %v5270
    %v5691 = vunpack.c.l.s4 1966171168
    %v5692 = vunpack.c.0.s8 %v5691
    %v5693 = vlaneseq
    %v5694 = vshrl.u32 %v5693, 7
    %v5695 = vsub.s32 %v5692, %v5694
    %v5696 = vrot.slane %v5689, %v5695
    %v5697 = vcombine.high %v5696, %v5696
    %v5699 = vunpack.c.l.s4 1966171168
    %v5700 = vunpack.c.0.s8 %v5699
    %v5701 = vlaneseq
    %v5702 = vshrl.u32 %v5701, 7
    %v5703 = vsub.s32 %v5700, %v5702
    %v5704 = vrot.slane %v5696, %v5703
    %v5706 = vunpack.c.l.s4 1966171168
    %v5707 = vunpack.c.0.s8 %v5706
    %v5708 = vlaneseq
    %v5709 = vshrl.u32 %v5708, 7
    %v5710 = vsub.s32 %v5707, %v5709
    %v5711 = vrot.slane %v5697, %v5710
    %v5712 = vcombine.high %v5704, %v5704
    %v5713 = vcombine.high %v5711, %v5711
    %v5716 = vcombine.high %v5531, %v5531
    %v5718 = vunpack.c.l.s4 1966171168
    %v5719 = vunpack.c.0.s8 %v5718
    %v5720 = vlaneseq
    %v5721 = vshrl.u32 %v5720, 7
    %v5722 = vsub.s32 %v5719, %v5721
    %v5723 = vrot.slane %v5716, %v5722
    %v5724 = vcombine.high %v5723, %v5723
    %v5726 = vunpack.c.l.s4 1966171168
    %v5727 = vunpack.c.0.s8 %v5726
    %v5728 = vlaneseq
    %v5729 = vshrl.u32 %v5728, 7
    %v5730 = vsub.s32 %v5727, %v5729
    %v5731 = vrot.slane %v5724, %v5730
    %v5732 = vcombine.high %v5731, %v5731
    %v5734 = vunpack.c.l.s4 1966171168
    %v5735 = vunpack.c.0.s8 %v5734
    %v5736 = vlaneseq
    %v5737 = vshrl.u32 %v5736, 7
    %v5738 = vsub.s32 %v5735, %v5737
    %v5739 = vrot.slane %v5532, %v5738
    %v5741 = vunpack.c.l.s4 1966171168
    %v5742 = vunpack.c.0.s8 %v5741
    %v5743 = vlaneseq
    %v5744 = vshrl.u32 %v5743, 7
    %v5745 = vsub.s32 %v5742, %v5744
    %v5746 = vrot.slane %v5739, %v5745
    %v5747 = vlaneseq
    %v5748 = vshrl.u32 %v5747, 7
    %v5749 = vsub.s32 0, %v5748
    %v5750 = vrot.slane %v5580, %v5749
    %v5751 = vlaneseq
    %v5752 = vshrl.u32 %v5751, 7
    %v5753 = vsub.s32 0, %v5752
    %v5754 = vrot.slane %v5581, %v5753
    %v5757 = vlaneseq
    %v5758 = vshrl.u32 %v5757, 7
    %v5759 = vsub.s32 0, %v5758
    %v5760 = vrot.slane %v5605, %v5759
    %v5761 = vlaneseq
    %v5762 = vshrl.u32 %v5761, 7
    %v5763 = vsub.s32 0, %v5762
    %v5764 = vrot.slane %v5606, %v5763
    %v5767 = vlaneseq
    %v5768 = vshrl.u32 %v5767, 7
    %v5769 = vsub.s32 0, %v5768
    %v5770 = vrot.slane %v5638, %v5769
    %v5771 = vlaneseq
    %v5772 = vshrl.u32 %v5771, 7
    %v5773 = vsub.s32 0, %v5772
    %v5774 = vrot.slane %v5630, %v5773
    %v5777 = vlaneseq
    %v5778 = vshrl.u32 %v5777, 7
    %v5779 = vsub.s32 0, %v5778
    %v5780 = vrot.slane %v5655, %v5779
    %v5781 = vlaneseq
    %v5782 = vshrl.u32 %v5781, 7
    %v5783 = vsub.s32 0, %v5782
    %v5784 = vrot.slane %v5662, %v5783
    %v5787 = vlaneseq
    %v5788 = vshrl.u32 %v5787, 7
    %v5789 = vsub.s32 0, %v5788
    %v5790 = vrot.slane %v5686, %v5789
    %v5791 = vlaneseq
    %v5792 = vshrl.u32 %v5791, 7
    %v5793 = vsub.s32 0, %v5792
    %v5794 = vrot.slane %v5687, %v5793
    %v5797 = vlaneseq
    %v5798 = vshrl.u32 %v5797, 7
    %v5799 = vsub.s32 0, %v5798
    %v5800 = vrot.slane %v5712, %v5799
    %v5801 = vlaneseq
    %v5802 = vshrl.u32 %v5801, 7
    %v5803 = vsub.s32 0, %v5802
    %v5804 = vrot.slane %v5713, %v5803
    %v5807 = vlaneseq
    %v5808 = vshrl.u32 %v5807, 7
    %v5809 = vsub.s32 0, %v5808
    %v5810 = vrot.slane %v5732, %v5809
    %v5811 = vlaneseq
    %v5812 = vshrl.u32 %v5811, 7
    %v5813 = vsub.s32 0, %v5812
    %v5814 = vrot.slane %v5746, %v5813
    %v5817 = vsel %vm2616, %v5548, %v5750
    %v5818 = vsel %vm2616, %v5555, %v5754
    %v5819 = vsel %vm2619, %v5817, %v5760
    %v5820 = vsel %vm2619, %v5818, %v5764
    %v5821 = vsel %vm2622, %v5819, %v5770
    %v5822 = vsel %vm2622, %v5820, %v5774
    %v5823 = vsel %vm2625, %v5821, %v5780
    %v5824 = vsel %vm2625, %v5822, %v5784
    %v5825 = vsel %vm2628, %v5823, %v5790
    %v5826 = vsel %vm2628, %v5824, %v5794
    %v5827 = vsel %vm2631, %v5825, %v5800
    %v5828 = vsel %vm2631, %v5826, %v5804
    %v5829 = vsel %vm2634, %v5827, %v5810
    %v5830 = vsel %vm2634, %v5828, %v5814
    %v5831 = vpack.c.bf16 %v5830, %v5829
    %v5848 = vunpack.c.l.b16 %v176
    %v5849 = vunpack.c.l.b16 %v177
    %v5850 = vunpack.c.l.b16 %v178
    %v5851 = vunpack.c.l.b16 %v179
    %v5852 = vunpack.c.l.b16 %v180
    %v5853 = vunpack.c.l.b16 %v181
    %v5854 = vunpack.c.l.b16 %v182
    %v5855 = vunpack.c.l.b16 %v183
    %v5856 = vunpack.c.l.b16 %v184
    %v5857 = vunpack.c.l.b16 %v185
    %v5858 = vunpack.c.l.b16 %v186
    %v5859 = vunpack.c.l.b16 %v187
    %v5860 = vunpack.c.l.b16 %v188
    %v5861 = vunpack.c.l.b16 %v189
    %v5862 = vunpack.c.l.b16 %v190
    %v5863 = vunpack.c.l.b16 %v191
    %v5864 = vpack.c.b16 %v5849, %v5848
    %v5865 = vpack.c.b16 %v5851, %v5850
    %v5866 = vpack.c.b16 %v5853, %v5852
    %v5867 = vpack.c.b16 %v5855, %v5854
    %v5868 = vpack.c.b16 %v5857, %v5856
    %v5869 = vpack.c.b16 %v5859, %v5858
    %v5870 = vpack.c.b16 %v5861, %v5860
    %v5871 = vpack.c.b16 %v5863, %v5862
    %5880 = vmatprep.subr.bf16.mxu0 0
    %5881 = vmatpush1.bf16.msra.mxu0 %v5864
    %5882 = vmatprep.subr.bf16.mxu0 0
    %5883 = vmatpush1.bf16.msra.mxu0 %v5865
    %5884 = vmatprep.subr.bf16.mxu0 0
    %5885 = vmatpush1.bf16.msra.mxu0 %v5866
    %5886 = vmatprep.subr.bf16.mxu0 0
    %5887 = vmatpush1.bf16.msra.mxu0 %v5867
    %5888 = vmatprep.subr.bf16.mxu0 0
    %5889 = vmatpush1.bf16.msra.mxu0 %v5868
    %5890 = vmatprep.subr.bf16.mxu0 0
    %5891 = vmatpush1.bf16.msra.mxu0 %v5869
    %5892 = vmatprep.subr.bf16.mxu0 0
    %5893 = vmatpush1.bf16.msra.mxu0 %v5870
    %5894 = vmatprep.subr.bf16.mxu0 0
    %5895 = vmatpush1.bf16.msra.mxu0 %v5871
    %5896 = vmatprep.subr.bf16.mxu0 0
    %5897 = vmatpush1.bf16.msra.mxu0 0
    %5898 = vmatprep.subr.bf16.mxu0 0
    %5899 = vmatpush1.bf16.msra.mxu0 0
    %5900 = vmatprep.subr.bf16.mxu0 0
    %5901 = vmatpush1.bf16.msra.mxu0 0
    %5902 = vmatprep.subr.bf16.mxu0 0
    %5903 = vmatpush1.bf16.msra.mxu0 0
    %5904 = vmatprep.subr.bf16.mxu0 0
    %5905 = vmatpush1.bf16.msra.mxu0 0
    %5906 = vmatprep.subr.bf16.mxu0 0
    %5907 = vmatpush1.bf16.msra.mxu0 0
    %5908 = vmatprep.subr.bf16.mxu0 0
    %5909 = vmatpush1.bf16.msra.mxu0 0
    %5910 = vmatprep.subr.bf16.mxu0 0
    %5911 = vmatpush1.bf16.msra.mxu0 0
    %5912 = vmatprep.mubr.bf16.mxu0 0
    %5913 = vmatmul.mubr.bf16.gmra.mrb[0].mxu0 %v5831
    %v5914 = vpop.f32.mrb[0].mxu0
    %v5915 = vadd.f32 %v198, %v5914
    %v5916 = vpop.f32.mrb[0].mxu0
    %v5917 = vpop.f32.mrb[0].mxu0
    %v5918 = vadd.f32 %v198, %v5917
    %v5919 = vpop.f32.mrb[0].mxu0
    %5920 = vdwg.mxu0
    %5921 = vst [vmem:[%s4] sm:$0xff] %v5915
    %5922 = vst [vmem:[%s4 + $0x8] sm:$0xff] %v5918
    // Predicated region
    $region18: #{multi_forward_impl.1} parent=1 // pred_check
      _
    $region19: #{multi_forward_impl.1} parent=1 // pred_check_branch
      %5924 = sbr.rel (0) target = $region21
    $region20: #{multi_forward_impl.1} parent=1 // pred_region
      %s5926 = ssub.s32 32, 32
      %5927 = vsyncadd [#allocation4], %s5926
      %s5929 = sshll.u32 [#allocation5], 4
      %s5930 = int_to_ptr.vmem [resolvable:$true] %s5929
      %5932 = dma.vmem_to_hbm [thread:$0]  %s5930, 32, %s3, [#allocation4]
    $region21: #{multi_forward_impl.1} parent=1 // pred_fallthru
      _
    // Predicated region
    $region22: #{multi_forward_impl.1} parent=1 // pred_check
      _
    $region23: #{multi_forward_impl.1} parent=1 // pred_check_branch
      %5934 = sbr.rel (0) target = $region25
    $region24: #{multi_forward_impl.1} parent=1 // pred_region
      _
    $region25: #{multi_forward_impl.1} parent=1 // pred_fallthru
      _
    // Predicated region
    $region26: #{multi_forward_impl.1} parent=1 // pred_check
      _
    $region27: #{multi_forward_impl.1} parent=1 // pred_check_branch
      %5936 = sbr.rel (0) target = $region29
    $region28: #{multi_forward_impl.1} parent=1 // pred_region
      %5937 = dma.done [#allocation4], 32
    $region29: #{multi_forward_impl.1} parent=1 // pred_fallthru
      _
    // Predicated region
    $region30: #{multi_forward_impl.1} parent=1 // pred_check
      _
    $region31: #{multi_forward_impl.1} parent=1 // pred_check_branch
      %5939 = sbr.rel (0) target = $region33
    $region32: #{multi_forward_impl.1} parent=1 // pred_region
      _
    $region33: #{multi_forward_impl.1} parent=1 // pred_fallthru
      _
    %5940 = vsyncpa [#allocation3], 1
    %5941 = vsyncpa [#allocation4], 1

</llo_original>
